<compile_context>
chip_gen: v7x
topology: tpu7x:2x2x1
jax: 0.10.0
libtpu: 0.0.40
codegen_flags: <defaults>
</compile_context>

<pallas_src>
import numpy as np
import jax
import jax.numpy as jnp
from jax.experimental import pallas as pl
from jax.experimental.pallas import tpu as pltpu

NUM_REGIONS = 36      # AdaptiveAvgPool2d target rows
FEAT_DIM = 2048       # AdaptiveAvgPool2d target cols / region-feature dim
_LANE = 128


# ---------------------------------------------------------------------------
# elementwise helpers (pure jnp -> usable both inside the kernel and in the ref)
# ---------------------------------------------------------------------------
def _gelu(x):
    # tanh-approximation GELU: one EUP tanh + a few VALU ops.
    # TODO(synk): LXMERT's GeLU uses exact erf; tanh approx differs by < ~1e-3 abs.
    return 0.5 * x * (1.0 + jnp.tanh(0.7978845608028654 * (x + 0.044715 * x * x * x)))


def _adaptive_pool_matrix(in_size, out_size):
    # Rows = output index, cols = input index; exact AdaptiveAvgPool1d window weights.
    mat = np.zeros((out_size, in_size), np.float32)
    for i in range(out_size):
        start = (i * in_size) // out_size
        end = -((-(i + 1) * in_size) // out_size)  # ceil
        mat[i, start:end] = 1.0 / (end - start)
    return mat


def _pick_batch_tile(batch, per_item_bytes, budget_bytes):
    """Batch rows per grid step.

    Largest Bt whose double-buffered img block (2 * Bt * per_item_bytes) fits the
    budget; Bt == batch or a multiple of 8 dividing batch so the (Bt, ncpad) output
    block keeps an (8, 128)-legal second-minor dim.
    """
    cap = max(1, budget_bytes // max(1, 2 * per_item_bytes))
    if cap >= batch:
        return batch
    bt = (min(cap, batch) // 8) * 8
    while bt >= 8:
        if batch % bt == 0:
            return bt
        bt -= 8
    # TODO(synk): ragged/prime batch sizes fall back to a single whole-batch block.
    return batch


# ---------------------------------------------------------------------------
# Fused kernel: folded pool/mean reduction + pooler stand-in + logit_fc head
# ---------------------------------------------------------------------------
def _fused_kernel(img_ref, wh_ref, wv_ref, bv_ref, w1_ref, b1_ref,
                  g_ref, be_ref, w2_ref, b2_ref, out_ref):
    # img_ref: (Bt, C, H, W)
    # wh_ref:  (H, 1) folded AdaptiveAvgPool(H->36) * 1/C * 1/36 weights
    # wv_ref:  (W, hid) visual projection with the W-axis adaptive pool pre-folded in
    x4 = img_ref[...].astype(jnp.float32)
    xm = jnp.sum(x4, axis=1)                                   # channel sum    -> (Bt, H, W)
    vis = jnp.sum(xm * wh_ref[...][None, :, :], axis=1)        # weighted H sum -> (Bt, W)

    # TODO(synk): the pretrained LXMERT cross-modal transformer (self.lxrt_encoder) has
    # no Pallas equivalent; stand-in = region mean (folded above) + Linear + tanh pooler.
    x = jnp.tanh(jnp.dot(vis, wv_ref[...], preferred_element_type=jnp.float32)
                 + bv_ref[...])                                # (Bt, hid)

    # logit_fc: Linear(hid, 2*hid) -> GeLU -> BertLayerNorm(eps=1e-12) -> Linear(2*hid, nc)
    h = jnp.dot(x, w1_ref[...], preferred_element_type=jnp.float32) + b1_ref[...]
    h = _gelu(h)
    mu = jnp.mean(h, axis=-1, keepdims=True)
    var = jnp.mean(jnp.square(h - mu), axis=-1, keepdims=True)
    h = (h - mu) * jax.lax.rsqrt(var + 1e-12)
    h = h * g_ref[...] + be_ref[...]
    out_ref[...] = jnp.dot(h, w2_ref[...], preferred_element_type=jnp.float32) + b2_ref[...]


# ---------------------------------------------------------------------------
# Wrapper (glue)
# ---------------------------------------------------------------------------
def vcsd_forward(utterance, response, img, params):
    # TODO(synk): utterance + '<sep>' + response string handling / tokenization is
    # untranslatable; the text args are accepted but unused.
    del utterance, response

    B, C, H, W = img.shape

    # Fold AdaptiveAvgPool2d H-axis + torch.mean(dim=1) + stand-in region mean into one
    # (H, 1) weight vector (all three are linear, so this is exact up to FP reorder).
    ph = _adaptive_pool_matrix(H, NUM_REGIONS)                            # (36, H) numpy
    wh = jnp.asarray(ph.sum(axis=0) / (C * NUM_REGIONS),
                     dtype=jnp.float32).reshape(H, 1)

    # Fold the W-axis adaptive pool (W -> 2048) into the visual projection weight so
    # the kernel never materializes the pooled (B, 36, 2048) tensor.  When W == 2048
    # the pool matrix is identity, so skip the fold entirely.
    wv = params["wv"]
    if W != FEAT_DIM:
        pw = jnp.asarray(_adaptive_pool_matrix(W, FEAT_DIM))              # (2048, W)
        wv = pw.T @ wv                                                    # (W, hid)

    bv = params["bv"].reshape(1, -1)
    w1 = params["w1"]
    b1 = params["b1"].reshape(1, -1)
    ln_g = params["ln_g"].reshape(1, -1)
    ln_b = params["ln_b"].reshape(1, -1)
    w2 = params["w2"]
    b2 = params["b2"].reshape(1, -1)
    nc = w2.shape[1]

    # Lane-dense logits: pad the class dim to a multiple of 128 so the output store is a
    # full-lane unmasked vst; slice back to nc in the wrapper.
    ncpad = max(_LANE, ((nc + _LANE - 1) // _LANE) * _LANE)
    w2p = jnp.zeros((w2.shape[0], ncpad), jnp.float32).at[:, :nc].set(w2)
    b2p = jnp.zeros((1, ncpad), jnp.float32).at[:, :nc].set(b2)

    # Batch tile sized so the double-buffered img block stays <= ~24 MiB; with the
    # 48 MiB scoped-VMEM limit below that leaves room for (double-buffered) weights and
    # the output on v5e/v6e (128 MiB physical) and v7x (64 MiB physical).
    # NOTE: img is read in whatever dtype the caller provides (accumulation is f32), so
    # passing a bf16 feature map halves HBM traffic on the dominant stream.
    # TODO(synk): for real Faster-RCNN maps (C in the hundreds) add a channel grid axis
    # marked "arbitrary" accumulating into VMEM scratch instead of loading full (C,H,W).
    per_item_bytes = C * H * W * img.dtype.itemsize
    bt = _pick_batch_tile(B, per_item_bytes, 24 * 1024 * 1024)
    grid = (B // bt,)

    const2 = lambda *_: (0, 0)
    padded = pl.pallas_call(
        _fused_kernel,
        out_shape=jax.ShapeDtypeStruct((B, ncpad), jnp.float32),
        grid=grid,
        in_specs=[
            pl.BlockSpec((bt, C, H, W), lambda b: (b, 0, 0, 0)),
            pl.BlockSpec(wh.shape, const2),
            pl.BlockSpec(wv.shape, const2),
            pl.BlockSpec(bv.shape, const2),
            pl.BlockSpec(w1.shape, const2),
            pl.BlockSpec(b1.shape, const2),
            pl.BlockSpec(ln_g.shape, const2),
            pl.BlockSpec(ln_b.shape, const2),
            pl.BlockSpec(w2p.shape, const2),
            pl.BlockSpec(b2p.shape, const2),
        ],
        out_specs=pl.BlockSpec((bt, ncpad), lambda b: (b, 0)),
        compiler_params=pltpu.CompilerParams(
            dimension_semantics=("parallel",),        # independent batch blocks -> v7x megacore
            vmem_limit_bytes=48 * 1024 * 1024,        # above 16/32 MiB defaults, < 64 MiB v7x physical
        ),
    )(img, wh, wv, bv, w1, b1, ln_g, ln_b, w2p, b2p)
    return padded[:, :nc]


# ---------------------------------------------------------------------------
# Pure-JAX reference (un-fused, mirrors the original op ordering) for sanity check
# ---------------------------------------------------------------------------
def _reference(img, params):
    B, C, H, W = img.shape
    ph = jnp.asarray(_adaptive_pool_matrix(H, NUM_REGIONS))      # (36, H)
    pw = jnp.asarray(_adaptive_pool_matrix(W, FEAT_DIM))         # (2048, W)
    pooled = jnp.einsum("oh,bchw->bcow", ph, img)                # AdaptiveAvgPool2d, H axis
    pooled = jnp.einsum("bcow,pw->bcop", pooled, pw)             # AdaptiveAvgPool2d, W axis
    pooled = jnp.mean(pooled, axis=1)                            # torch.mean(img, dim=1)
    vis = jnp.mean(pooled, axis=1)                               # encoder stand-in: region mean
    x = jnp.tanh(vis @ params["wv"] + params["bv"].reshape(1, -1))
    h = x @ params["w1"] + params["b1"].reshape(1, -1)
    h = _gelu(h)
    mu = jnp.mean(h, axis=-1, keepdims=True)
    var = jnp.mean(jnp.square(h - mu), axis=-1, keepdims=True)
    h = (h - mu) * jax.lax.rsqrt(var + 1e-12)
    h = h * params["ln_g"].reshape(1, -1) + params["ln_b"].reshape(1, -1)
    return h @ params["w2"] + params["b2"].reshape(1, -1)


if __name__ == "__main__":
    B, C, H = 2, 3, 72          # img: (B, C, 72, 2048) -> adaptive pool -> (B, C, 36, 2048)
    HID = 128                   # stand-in for lxrt_encoder.dim (768 in the real LXMERT)
    NUM_CLASSES = 2

    keys = jax.random.split(jax.random.PRNGKey(0), 4)
    img = jax.random.normal(keys[0], (B, C, H, FEAT_DIM), dtype=jnp.float32)

    # Deterministic BERT-style init (init_bert_weights): W ~ N(0, 0.02), b = 0,
    # LayerNorm gamma = 1, beta = 0.  Biases stored as (1, D) for TPU-friendly layout.
    params = {
        "wv": 0.02 * jax.random.normal(keys[1], (FEAT_DIM, HID), jnp.float32),
        "bv": jnp.zeros((1, HID), jnp.float32),
        "w1": 0.02 * jax.random.normal(keys[2], (HID, 2 * HID), jnp.float32),
        "b1": jnp.zeros((1, 2 * HID), jnp.float32),
        "ln_g": jnp.ones((1, 2 * HID), jnp.float32),
        "ln_b": jnp.zeros((1, 2 * HID), jnp.float32),
        "w2": 0.02 * jax.random.normal(keys[3], (2 * HID, NUM_CLASSES), jnp.float32),
        "b2": jnp.zeros((1, NUM_CLASSES), jnp.float32),
    }

    utterance = ["hello there", "how are you"]
    response = ["general kenobi", "fine thanks"]

    logits = vcsd_forward(utterance, response, img, params)
    logits = jax.block_until_ready(logits)

    ref = _reference(img, params)
    if not bool(jnp.allclose(logits, ref, rtol=5e-4, atol=1e-5)):
        raise AssertionError(f"kernel/reference mismatch:\n{logits}\nvs\n{ref}")

    print("KERNEL_OK")
</pallas_src>

<mosaic_0001>
module attributes {stable_mosaic.version = 11 : i64} {
  func.func @_fused_kernel(%arg0: i32, %arg1: memref<2x3x72x2048xf32, #tpu.memory_space<vmem>>, %arg2: memref<72x1xf32, #tpu.memory_space<vmem>>, %arg3: memref<2048x128xf32, #tpu.memory_space<vmem>>, %arg4: memref<1x128xf32, #tpu.memory_space<vmem>>, %arg5: memref<128x256xf32, #tpu.memory_space<vmem>>, %arg6: memref<1x256xf32, #tpu.memory_space<vmem>>, %arg7: memref<1x256xf32, #tpu.memory_space<vmem>>, %arg8: memref<1x256xf32, #tpu.memory_space<vmem>>, %arg9: memref<256x128xf32, #tpu.memory_space<vmem>>, %arg10: memref<1x128xf32, #tpu.memory_space<vmem>>, %arg11: memref<2x128xf32, #tpu.memory_space<vmem>>) attributes {dimension_semantics = [#tpu.dimension_semantics<parallel>], iteration_bounds = array<i64: 1>, scalar_prefetch = 0 : i64, scratch_operands = 0 : i64, tpu.core_type = #tpu.core_type<tc>, window_params = [{transform_indices = @transform_0, window_bounds = array<i64: 2, 3, 72, 2048>}, {pipeline_mode = #tpu.pipeline_mode<synchronous>, transform_indices = @transform_1, window_bounds = array<i64: 72, 1>}, {pipeline_mode = #tpu.pipeline_mode<synchronous>, transform_indices = @transform_2, window_bounds = array<i64: 2048, 128>}, {pipeline_mode = #tpu.pipeline_mode<synchronous>, transform_indices = @transform_3, window_bounds = array<i64: 1, 128>}, {pipeline_mode = #tpu.pipeline_mode<synchronous>, transform_indices = @transform_4, window_bounds = array<i64: 128, 256>}, {pipeline_mode = #tpu.pipeline_mode<synchronous>, transform_indices = @transform_5, window_bounds = array<i64: 1, 256>}, {pipeline_mode = #tpu.pipeline_mode<synchronous>, transform_indices = @transform_6, window_bounds = array<i64: 1, 256>}, {pipeline_mode = #tpu.pipeline_mode<synchronous>, transform_indices = @transform_7, window_bounds = array<i64: 1, 256>}, {pipeline_mode = #tpu.pipeline_mode<synchronous>, transform_indices = @transform_8, window_bounds = array<i64: 256, 128>}, {pipeline_mode = #tpu.pipeline_mode<synchronous>, transform_indices = @transform_9, window_bounds = array<i64: 1, 128>}, {transform_indices = @transform_10, window_bounds = array<i64: 2, 128>}]} {
    %c0 = arith.constant 0 : index
    %c0_0 = arith.constant 0 : index
    %c0_1 = arith.constant 0 : index
    %c0_2 = arith.constant 0 : index
    %0 = vector.load %arg1[%c0, %c0_0, %c0_1, %c0_2] : memref<2x3x72x2048xf32, #tpu.memory_space<vmem>>, vector<2x3x72x2048xf32>
    %cst = arith.constant dense<0.000000e+00> : vector<2x72x2048xf32>
    %1 = vector.multi_reduction <add>, %0, %cst [1] : vector<2x3x72x2048xf32> to vector<2x72x2048xf32>
    %c0_3 = arith.constant 0 : index
    %c0_4 = arith.constant 0 : index
    %2 = vector.load %arg2[%c0_3, %c0_4] : memref<72x1xf32, #tpu.memory_space<vmem>>, vector<72x1xf32>
    %3 = vector.shape_cast %2 : vector<72x1xf32> to vector<1x72x1xf32>
    %4 = vector.broadcast %3 : vector<1x72x1xf32> to vector<2x72x2048xf32>
    %5 = arith.mulf %1, %4 : vector<2x72x2048xf32>
    %cst_5 = arith.constant dense<0.000000e+00> : vector<2x2048xf32>
    %6 = vector.multi_reduction <add>, %5, %cst_5 [1] : vector<2x72x2048xf32> to vector<2x2048xf32>
    %c0_6 = arith.constant 0 : index
    %c0_7 = arith.constant 0 : index
    %7 = vector.load %arg3[%c0_6, %c0_7] : memref<2048x128xf32, #tpu.memory_space<vmem>>, vector<2048x128xf32>
    %cst_8 = arith.constant dense<0.000000e+00> : vector<2x128xf32>
    %8 = tpu.matmul %6, %7, %cst_8 {dimension_numbers = #tpu.dot_dimension_numbers<[1], [0], [0], [1], [0, 0, 1, 1], [], []>} : vector<2x2048xf32>, vector<2048x128xf32>, vector<2x128xf32> -> vector<2x128xf32>
    %c0_9 = arith.constant 0 : index
    %c0_10 = arith.constant 0 : index
    %9 = vector.load %arg4[%c0_9, %c0_10] : memref<1x128xf32, #tpu.memory_space<vmem>>, vector<1x128xf32>
    %10 = vector.broadcast %9 : vector<1x128xf32> to vector<2x128xf32>
    %11 = arith.addf %8, %10 : vector<2x128xf32>
    %12 = math.tanh %11 : vector<2x128xf32>
    %c0_11 = arith.constant 0 : index
    %c0_12 = arith.constant 0 : index
    %13 = vector.load %arg5[%c0_11, %c0_12] : memref<128x256xf32, #tpu.memory_space<vmem>>, vector<128x256xf32>
    %cst_13 = arith.constant dense<0.000000e+00> : vector<2x256xf32>
    %14 = tpu.matmul %12, %13, %cst_13 {dimension_numbers = #tpu.dot_dimension_numbers<[1], [0], [0], [1], [0, 0, 1, 1], [], []>} : vector<2x128xf32>, vector<128x256xf32>, vector<2x256xf32> -> vector<2x256xf32>
    %c0_14 = arith.constant 0 : index
    %c0_15 = arith.constant 0 : index
    %15 = vector.load %arg6[%c0_14, %c0_15] : memref<1x256xf32, #tpu.memory_space<vmem>>, vector<1x256xf32>
    %16 = vector.broadcast %15 : vector<1x256xf32> to vector<2x256xf32>
    %17 = arith.addf %14, %16 : vector<2x256xf32>
    %cst_16 = arith.constant 5.000000e-01 : f32
    %18 = vector.broadcast %cst_16 : f32 to vector<2x256xf32>
    %19 = arith.mulf %18, %17 : vector<2x256xf32>
    %cst_17 = arith.constant 4.471500e-02 : f32
    %20 = vector.broadcast %cst_17 : f32 to vector<2x256xf32>
    %21 = arith.mulf %20, %17 : vector<2x256xf32>
    %22 = arith.mulf %21, %17 : vector<2x256xf32>
    %23 = arith.mulf %22, %17 : vector<2x256xf32>
    %24 = arith.addf %17, %23 : vector<2x256xf32>
    %cst_18 = arith.constant 0.797884583 : f32
    %25 = vector.broadcast %cst_18 : f32 to vector<2x256xf32>
    %26 = arith.mulf %25, %24 : vector<2x256xf32>
    %27 = math.tanh %26 : vector<2x256xf32>
    %cst_19 = arith.constant 1.000000e+00 : f32
    %28 = vector.broadcast %cst_19 : f32 to vector<2x256xf32>
    %29 = arith.addf %28, %27 : vector<2x256xf32>
    %30 = arith.mulf %19, %29 : vector<2x256xf32>
    %cst_20 = arith.constant dense<0.000000e+00> : vector<2xf32>
    %31 = vector.multi_reduction <add>, %30, %cst_20 [1] : vector<2x256xf32> to vector<2xf32>
    %32 = vector.shape_cast %31 : vector<2xf32> to vector<2x1xf32>
    %cst_21 = arith.constant 2.560000e+02 : f32
    %33 = vector.broadcast %cst_21 : f32 to vector<2x1xf32>
    %34 = arith.divf %32, %33 : vector<2x1xf32>
    %35 = vector.broadcast %34 : vector<2x1xf32> to vector<2x256xf32>
    %36 = arith.subf %30, %35 : vector<2x256xf32>
    %37 = arith.mulf %36, %36 : vector<2x256xf32>
    %cst_22 = arith.constant dense<0.000000e+00> : vector<2xf32>
    %38 = vector.multi_reduction <add>, %37, %cst_22 [1] : vector<2x256xf32> to vector<2xf32>
    %39 = vector.shape_cast %38 : vector<2xf32> to vector<2x1xf32>
    %cst_23 = arith.constant 2.560000e+02 : f32
    %40 = vector.broadcast %cst_23 : f32 to vector<2x1xf32>
    %41 = arith.divf %39, %40 : vector<2x1xf32>
    %42 = vector.broadcast %34 : vector<2x1xf32> to vector<2x256xf32>
    %43 = arith.subf %30, %42 : vector<2x256xf32>
    %cst_24 = arith.constant 9.99999996E-13 : f32
    %44 = vector.broadcast %cst_24 : f32 to vector<2x1xf32>
    %45 = arith.addf %41, %44 : vector<2x1xf32>
    %46 = math.rsqrt %45 : vector<2x1xf32>
    %47 = vector.broadcast %46 : vector<2x1xf32> to vector<2x256xf32>
    %48 = arith.mulf %43, %47 : vector<2x256xf32>
    %c0_25 = arith.constant 0 : index
    %c0_26 = arith.constant 0 : index
    %49 = vector.load %arg7[%c0_25, %c0_26] : memref<1x256xf32, #tpu.memory_space<vmem>>, vector<1x256xf32>
    %50 = vector.broadcast %49 : vector<1x256xf32> to vector<2x256xf32>
    %51 = arith.mulf %48, %50 : vector<2x256xf32>
    %c0_27 = arith.constant 0 : index
    %c0_28 = arith.constant 0 : index
    %52 = vector.load %arg8[%c0_27, %c0_28] : memref<1x256xf32, #tpu.memory_space<vmem>>, vector<1x256xf32>
    %53 = vector.broadcast %52 : vector<1x256xf32> to vector<2x256xf32>
    %54 = arith.addf %51, %53 : vector<2x256xf32>
    %c0_29 = arith.constant 0 : index
    %c0_30 = arith.constant 0 : index
    %55 = vector.load %arg9[%c0_29, %c0_30] : memref<256x128xf32, #tpu.memory_space<vmem>>, vector<256x128xf32>
    %cst_31 = arith.constant dense<0.000000e+00> : vector<2x128xf32>
    %56 = tpu.matmul %54, %55, %cst_31 {dimension_numbers = #tpu.dot_dimension_numbers<[1], [0], [0], [1], [0, 0, 1, 1], [], []>} : vector<2x256xf32>, vector<256x128xf32>, vector<2x128xf32> -> vector<2x128xf32>
    %c0_32 = arith.constant 0 : index
    %c0_33 = arith.constant 0 : index
    %57 = vector.load %arg10[%c0_32, %c0_33] : memref<1x128xf32, #tpu.memory_space<vmem>>, vector<1x128xf32>
    %58 = vector.broadcast %57 : vector<1x128xf32> to vector<2x128xf32>
    %59 = arith.addf %56, %58 : vector<2x128xf32>
    %c0_34 = arith.constant 0 : index
    %c0_35 = arith.constant 0 : index
    %60 = vector.load %arg11[%c0_34, %c0_35] : memref<2x128xf32, #tpu.memory_space<vmem>>, vector<2x128xf32>
    tpu.vector_store %arg11[%c0_34, %c0_35], %59 {strides = array<i32>} : memref<2x128xf32, #tpu.memory_space<vmem>>, vector<2x128xf32>,
    return
  }
  func.func @transform_0(%arg0: i32) -> (i32, i32, i32, i32) {
    %c0_i32 = arith.constant 0 : i32
    %c0_i32_0 = arith.constant 0 : i32
    %c0_i32_1 = arith.constant 0 : i32
    %c0_i32_2 = arith.constant 0 : i32
    return %arg0, %c0_i32, %c0_i32_0, %c0_i32_1 : i32, i32, i32, i32
  }
  func.func @transform_1(%arg0: i32) -> (i32, i32) {
    %c0_i32 = arith.constant 0 : i32
    %c0_i32_0 = arith.constant 0 : i32
    %c0_i32_1 = arith.constant 0 : i32
    return %c0_i32, %c0_i32_0 : i32, i32
  }
  func.func @transform_2(%arg0: i32) -> (i32, i32) {
    %c0_i32 = arith.constant 0 : i32
    %c0_i32_0 = arith.constant 0 : i32
    %c0_i32_1 = arith.constant 0 : i32
    return %c0_i32, %c0_i32_0 : i32, i32
  }
  func.func @transform_3(%arg0: i32) -> (i32, i32) {
    %c0_i32 = arith.constant 0 : i32
    %c0_i32_0 = arith.constant 0 : i32
    %c0_i32_1 = arith.constant 0 : i32
    return %c0_i32, %c0_i32_0 : i32, i32
  }
  func.func @transform_4(%arg0: i32) -> (i32, i32) {
    %c0_i32 = arith.constant 0 : i32
    %c0_i32_0 = arith.constant 0 : i32
    %c0_i32_1 = arith.constant 0 : i32
    return %c0_i32, %c0_i32_0 : i32, i32
  }
  func.func @transform_5(%arg0: i32) -> (i32, i32) {
    %c0_i32 = arith.constant 0 : i32
    %c0_i32_0 = arith.constant 0 : i32
    %c0_i32_1 = arith.constant 0 : i32
    return %c0_i32, %c0_i32_0 : i32, i32
  }
  func.func @transform_6(%arg0: i32) -> (i32, i32) {
    %c0_i32 = arith.constant 0 : i32
    %c0_i32_0 = arith.constant 0 : i32
    %c0_i32_1 = arith.constant 0 : i32
    return %c0_i32, %c0_i32_0 : i32, i32
  }
  func.func @transform_7(%arg0: i32) -> (i32, i32) {
    %c0_i32 = arith.constant 0 : i32
    %c0_i32_0 = arith.constant 0 : i32
    %c0_i32_1 = arith.constant 0 : i32
    return %c0_i32, %c0_i32_0 : i32, i32
  }
  func.func @transform_8(%arg0: i32) -> (i32, i32) {
    %c0_i32 = arith.constant 0 : i32
    %c0_i32_0 = arith.constant 0 : i32
    %c0_i32_1 = arith.constant 0 : i32
    return %c0_i32, %c0_i32_0 : i32, i32
  }
  func.func @transform_9(%arg0: i32) -> (i32, i32) {
    %c0_i32 = arith.constant 0 : i32
    %c0_i32_0 = arith.constant 0 : i32
    %c0_i32_1 = arith.constant 0 : i32
    return %c0_i32, %c0_i32_0 : i32, i32
  }
  func.func @transform_10(%arg0: i32) -> (i32, i32) {
    %c0_i32 = arith.constant 0 : i32
    %c0_i32_0 = arith.constant 0 : i32
    return %arg0, %c0_i32 : i32, i32
  }
}

</mosaic_0001>

<llo_original>
// kernel: tpu_custom_call.1
$region0: #{tpu_custom_call.1}
  #allocation0 [shape = 'u32[]', space=smem, size = 0x4, offset = 0x4, fixed_abs, tag = 'smem constant byte address 0x4 - core index']
  #allocation1 [shape = 'u32[144,128]{1,0:T(1,128)}', space=vmem, size = 0x12000, scoped, tag = 'internal scratch']
  %s0 = inlined_call_operand.hbm [shape: f32[2,3,72,2048], index: 0, kind: input, shape index: {}]
  %s1 = inlined_call_operand.vmem [shape: f32[72,1], index: 1, kind: input, shape index: {}]
  %s2 = inlined_call_operand.hbm [shape: f32[2048,128], index: 2, kind: input, shape index: {}]
  %s3 = inlined_call_operand.hbm [shape: f32[1,128], index: 3, kind: input, shape index: {}]
  %s4 = inlined_call_operand.hbm [shape: f32[128,256], index: 4, kind: input, shape index: {}]
  %s5 = inlined_call_operand.hbm [shape: f32[1,256], index: 5, kind: input, shape index: {}]
  %s6 = inlined_call_operand.hbm [shape: f32[1,256], index: 6, kind: input, shape index: {}]
  %s7 = inlined_call_operand.hbm [shape: f32[1,256], index: 7, kind: input, shape index: {}]
  %s8 = inlined_call_operand.hbm [shape: f32[256,128], index: 8, kind: input, shape index: {}]
  %s9 = inlined_call_operand.hbm [shape: f32[1,128], index: 9, kind: input, shape index: {}]
  %s10 = inlined_call_operand.hbm [shape: f32[2,128], index: 10, kind: output, shape index: {}]
  %s11 = sld [smem:[#allocation0]]
  $region86: #{tpu_custom_call.1} parent=0
    _
  %s13 = ssub.s32 1, %s11
  %s14 = scalar_select 0, %s13, %s11
  $region1: #{tpu_custom_call.1} parent=0
    #allocation2 [shape = 'u8[3538944]{0}', space=vmem, size = 0x360000, scoped, tag = 'input window, operand 0, single buffered']
    #allocation3 [shape = 's32[1]{0}', space=sflag, size = 0x4, scoped, tag = 'scoped memory for tpu_custom_call.1']
    #allocation4 [shape = 's32[1]{0}', space=sflag, size = 0x4, scoped, tag = 'scoped memory for tpu_custom_call.1']
    #allocation5 [shape = 'u8[1048576]{0}', space=vmem, size = 0x100000, scoped, tag = 'input window, operand 2, single buffered']
    #allocation6 [shape = 's32[1]{0}', space=sflag, size = 0x4, scoped, tag = 'scoped memory for tpu_custom_call.1']
    #allocation7 [shape = 'u8[512]{0}', space=vmem, size = 0x400, scoped, tag = 'input window, operand 3, single buffered']
    #allocation8 [shape = 'u8[131072]{0}', space=vmem, size = 0x20000, scoped, tag = 'input window, operand 4, single buffered']
    #allocation9 [shape = 's32[1]{0}', space=sflag, size = 0x4, scoped, tag = 'scoped memory for tpu_custom_call.1']
    #allocation10 [shape = 'u8[1024]{0}', space=vmem, size = 0x400, scoped, tag = 'input window, operand 5, single buffered']
    #allocation11 [shape = 'u8[1024]{0}', space=vmem, size = 0x400, scoped, tag = 'input window, operand 6, single buffered']
    #allocation12 [shape = 's32[1]{0}', space=sflag, size = 0x4, scoped, tag = 'scoped memory for tpu_custom_call.1']
    #allocation13 [shape = 'u8[1024]{0}', space=vmem, size = 0x400, scoped, tag = 'input window, operand 7, single buffered']
    #allocation14 [shape = 'u8[131072]{0}', space=vmem, size = 0x20000, scoped, tag = 'input window, operand 8, single buffered']
    #allocation15 [shape = 's32[1]{0}', space=sflag, size = 0x4, scoped, tag = 'scoped memory for tpu_custom_call.1']
    #allocation16 [shape = 'u8[512]{0}', space=vmem, size = 0x400, scoped, tag = 'input window, operand 9, single buffered']
    #allocation17 [shape = 'u8[1024]{0}', space=vmem, size = 0x400, scoped, tag = 'output window, operand 0, single buffered']
    %15 = vsyncpa [#allocation3], 0
    %16 = vsyncpa [#allocation6], 0
    %17 = vsyncpa [#allocation9], 0
    %18 = vsyncpa [#allocation12], 0
    %19 = vsyncpa [#allocation15], 0
    %20 = vsyncpa [#allocation4], 0
    // Predicated region
    $region2: #{tpu_custom_call.1} parent=1 // pred_check
      _
    $region3: #{tpu_custom_call.1} parent=1 // pred_check_branch
      %22 = sbr.rel (0) target = $region5
    $region4: #{tpu_custom_call.1} parent=1 // pred_region
      %s24 = ssub.s32 110592, 110592
      %25 = vsyncadd [#allocation3], %s24
      %s26 = sshll.u32 [#allocation2], 4
      %s27 = int_to_ptr.vmem [resolvable:$true] %s26
      %32 = dma.hbm_to_vmem [thread:$0]  %s0, 110592, %s27, [#allocation3], 2048, 2048, 128
    $region5: #{tpu_custom_call.1} parent=1 // pred_fallthru
      _
    // Predicated region
    $region6: #{tpu_custom_call.1} parent=1 // pred_check
      _
    $region7: #{tpu_custom_call.1} parent=1 // pred_check_branch
      %34 = sbr.rel (0) target = $region9
    $region8: #{tpu_custom_call.1} parent=1 // pred_region
      _
    $region9: #{tpu_custom_call.1} parent=1 // pred_fallthru
      _
    // Predicated region
    $region10: #{tpu_custom_call.1} parent=1 // pred_check
      _
    $region11: #{tpu_custom_call.1} parent=1 // pred_check_branch
      %36 = sbr.rel (0) target = $region13
    $region12: #{tpu_custom_call.1} parent=1 // pred_region
      %s38 = ssub.s32 32768, 32768
      %39 = vsyncadd [#allocation6], %s38
      %s40 = sshll.u32 [#allocation5], 4
      %s41 = int_to_ptr.vmem [resolvable:$true] %s40
      %46 = dma.hbm_to_vmem [thread:$0]  %s2, 32768, %s41, [#allocation6], 128, 128, 8
    $region13: #{tpu_custom_call.1} parent=1 // pred_fallthru
      _
    // Predicated region
    $region14: #{tpu_custom_call.1} parent=1 // pred_check
      _
    $region15: #{tpu_custom_call.1} parent=1 // pred_check_branch
      %48 = sbr.rel (0) target = $region17
    $region16: #{tpu_custom_call.1} parent=1 // pred_region
      %s50 = ssub.s32 16, 16
      %51 = vsyncadd [#allocation6], %s50
      %s53 = sshll.u32 [#allocation7], 4
      %s54 = int_to_ptr.vmem [resolvable:$true] %s53
      %56 = dma.hbm_to_vmem [thread:$0]  %s3, 16, %s54, [#allocation6]
    $region17: #{tpu_custom_call.1} parent=1 // pred_fallthru
      _
    // Predicated region
    $region18: #{tpu_custom_call.1} parent=1 // pred_check
      _
    $region19: #{tpu_custom_call.1} parent=1 // pred_check_branch
      %58 = sbr.rel (0) target = $region21
    $region20: #{tpu_custom_call.1} parent=1 // pred_region
      %s60 = ssub.s32 4096, 4096
      %61 = vsyncadd [#allocation9], %s60
      %s62 = sshll.u32 [#allocation8], 4
      %s63 = int_to_ptr.vmem [resolvable:$true] %s62
      %68 = dma.hbm_to_vmem [thread:$0]  %s4, 4096, %s63, [#allocation9], 256, 256, 16
    $region21: #{tpu_custom_call.1} parent=1 // pred_fallthru
      _
    // Predicated region
    $region22: #{tpu_custom_call.1} parent=1 // pred_check
      _
    $region23: #{tpu_custom_call.1} parent=1 // pred_check_branch
      %70 = sbr.rel (0) target = $region25
    $region24: #{tpu_custom_call.1} parent=1 // pred_region
      %s72 = ssub.s32 32, 32
      %73 = vsyncadd [#allocation9], %s72
      %s75 = sshll.u32 [#allocation10], 4
      %s76 = int_to_ptr.vmem [resolvable:$true] %s75
      %78 = dma.hbm_to_vmem [thread:$0]  %s5, 32, %s76, [#allocation9]
    $region25: #{tpu_custom_call.1} parent=1 // pred_fallthru
      _
    // Predicated region
    $region26: #{tpu_custom_call.1} parent=1 // pred_check
      _
    $region27: #{tpu_custom_call.1} parent=1 // pred_check_branch
      %80 = sbr.rel (0) target = $region29
    $region28: #{tpu_custom_call.1} parent=1 // pred_region
      %s82 = ssub.s32 32, 32
      %83 = vsyncadd [#allocation12], %s82
      %s85 = sshll.u32 [#allocation11], 4
      %s86 = int_to_ptr.vmem [resolvable:$true] %s85
      %88 = dma.hbm_to_vmem [thread:$0]  %s6, 32, %s86, [#allocation12]
    $region29: #{tpu_custom_call.1} parent=1 // pred_fallthru
      _
    // Predicated region
    $region30: #{tpu_custom_call.1} parent=1 // pred_check
      _
    $region31: #{tpu_custom_call.1} parent=1 // pred_check_branch
      %90 = sbr.rel (0) target = $region33
    $region32: #{tpu_custom_call.1} parent=1 // pred_region
      %s92 = ssub.s32 32, 32
      %93 = vsyncadd [#allocation12], %s92
      %s95 = sshll.u32 [#allocation13], 4
      %s96 = int_to_ptr.vmem [resolvable:$true] %s95
      %98 = dma.hbm_to_vmem [thread:$0]  %s7, 32, %s96, [#allocation12]
    $region33: #{tpu_custom_call.1} parent=1 // pred_fallthru
      _
    // Predicated region
    $region34: #{tpu_custom_call.1} parent=1 // pred_check
      _
    $region35: #{tpu_custom_call.1} parent=1 // pred_check_branch
      %100 = sbr.rel (0) target = $region37
    $region36: #{tpu_custom_call.1} parent=1 // pred_region
      %s102 = ssub.s32 4096, 4096
      %103 = vsyncadd [#allocation15], %s102
      %s104 = sshll.u32 [#allocation14], 4
      %s105 = int_to_ptr.vmem [resolvable:$true] %s104
      %110 = dma.hbm_to_vmem [thread:$0]  %s8, 4096, %s105, [#allocation15], 128, 128, 8
    $region37: #{tpu_custom_call.1} parent=1 // pred_fallthru
      _
    // Predicated region
    $region38: #{tpu_custom_call.1} parent=1 // pred_check
      _
    $region39: #{tpu_custom_call.1} parent=1 // pred_check_branch
      %112 = sbr.rel (0) target = $region41
    $region40: #{tpu_custom_call.1} parent=1 // pred_region
      %s114 = ssub.s32 16, 16
      %115 = vsyncadd [#allocation15], %s114
      %s117 = sshll.u32 [#allocation16], 4
      %s118 = int_to_ptr.vmem [resolvable:$true] %s117
      %120 = dma.hbm_to_vmem [thread:$0]  %s9, 16, %s118, [#allocation15]
    $region41: #{tpu_custom_call.1} parent=1 // pred_fallthru
      _
    // Predicated region
    $region42: #{tpu_custom_call.1} parent=1 // pred_check
      _
    $region43: #{tpu_custom_call.1} parent=1 // pred_check_branch
      %122 = sbr.rel (0) target = $region45
    $region44: #{tpu_custom_call.1} parent=1 // pred_region
      %123 = dma.done [#allocation3], 110592
    $region45: #{tpu_custom_call.1} parent=1 // pred_fallthru
      _
    // Predicated region
    $region46: #{tpu_custom_call.1} parent=1 // pred_check
      _
    $region47: #{tpu_custom_call.1} parent=1 // pred_check_branch
      %125 = sbr.rel (0) target = $region49
    $region48: #{tpu_custom_call.1} parent=1 // pred_region
      %126 = dma.done [#allocation6], 32768
    $region49: #{tpu_custom_call.1} parent=1 // pred_fallthru
      _
    // Predicated region
    $region50: #{tpu_custom_call.1} parent=1 // pred_check
      _
    $region51: #{tpu_custom_call.1} parent=1 // pred_check_branch
      %128 = sbr.rel (0) target = $region53
    $region52: #{tpu_custom_call.1} parent=1 // pred_region
      %129 = dma.done [#allocation6], 16
    $region53: #{tpu_custom_call.1} parent=1 // pred_fallthru
      _
    // Predicated region
    $region54: #{tpu_custom_call.1} parent=1 // pred_check
      _
    $region55: #{tpu_custom_call.1} parent=1 // pred_check_branch
      %131 = sbr.rel (0) target = $region57
    $region56: #{tpu_custom_call.1} parent=1 // pred_region
      %132 = dma.done [#allocation9], 4096
    $region57: #{tpu_custom_call.1} parent=1 // pred_fallthru
      _
    // Predicated region
    $region58: #{tpu_custom_call.1} parent=1 // pred_check
      _
    $region59: #{tpu_custom_call.1} parent=1 // pred_check_branch
      %134 = sbr.rel (0) target = $region61
    $region60: #{tpu_custom_call.1} parent=1 // pred_region
      %135 = dma.done [#allocation9], 32
    $region61: #{tpu_custom_call.1} parent=1 // pred_fallthru
      _
    // Predicated region
    $region62: #{tpu_custom_call.1} parent=1 // pred_check
      _
    $region63: #{tpu_custom_call.1} parent=1 // pred_check_branch
      %137 = sbr.rel (0) target = $region65
    $region64: #{tpu_custom_call.1} parent=1 // pred_region
      %138 = dma.done [#allocation12], 32
    $region65: #{tpu_custom_call.1} parent=1 // pred_fallthru
      _
    // Predicated region
    $region66: #{tpu_custom_call.1} parent=1 // pred_check
      _
    $region67: #{tpu_custom_call.1} parent=1 // pred_check_branch
      %140 = sbr.rel (0) target = $region69
    $region68: #{tpu_custom_call.1} parent=1 // pred_region
      %141 = dma.done [#allocation12], 32
    $region69: #{tpu_custom_call.1} parent=1 // pred_fallthru
      _
    // Predicated region
    $region70: #{tpu_custom_call.1} parent=1 // pred_check
      _
    $region71: #{tpu_custom_call.1} parent=1 // pred_check_branch
      %143 = sbr.rel (0) target = $region73
    $region72: #{tpu_custom_call.1} parent=1 // pred_region
      %144 = dma.done [#allocation15], 4096
    $region73: #{tpu_custom_call.1} parent=1 // pred_fallthru
      _
    // Predicated region
    $region74: #{tpu_custom_call.1} parent=1 // pred_check
      _
    $region75: #{tpu_custom_call.1} parent=1 // pred_check_branch
      %146 = sbr.rel (0) target = $region77
    $region76: #{tpu_custom_call.1} parent=1 // pred_region
      %147 = dma.done [#allocation15], 16
    $region77: #{tpu_custom_call.1} parent=1 // pred_fallthru
      _
    %v148 = vld [vmem:[#allocation2] sm:$0xff]
    %v149 = vld [vmem:[#allocation2 + $0x8] sm:$0xff]
    %v150 = vld [vmem:[#allocation2 + $0x10] sm:$0xff]
    %v151 = vld [vmem:[#allocation2 + $0x18] sm:$0xff]
    %v152 = vld [vmem:[#allocation2 + $0x20] sm:$0xff]
    %v153 = vld [vmem:[#allocation2 + $0x28] sm:$0xff]
    %v154 = vld [vmem:[#allocation2 + $0x30] sm:$0xff]
    %v155 = vld [vmem:[#allocation2 + $0x38] sm:$0xff]
    %v156 = vld [vmem:[#allocation2 + $0x40] sm:$0xff]
    %v157 = vld [vmem:[#allocation2 + $0x48] sm:$0xff]
    %v158 = vld [vmem:[#allocation2 + $0x50] sm:$0xff]
    %v159 = vld [vmem:[#allocation2 + $0x58] sm:$0xff]
    %v160 = vld [vmem:[#allocation2 + $0x60] sm:$0xff]
    %v161 = vld [vmem:[#allocation2 + $0x68] sm:$0xff]
    %v162 = vld [vmem:[#allocation2 + $0x70] sm:$0xff]
    %v163 = vld [vmem:[#allocation2 + $0x78] sm:$0xff]
    %v164 = vld [vmem:[#allocation2 + $0x80] sm:$0xff]
    %v165 = vld [vmem:[#allocation2 + $0x88] sm:$0xff]
    %v166 = vld [vmem:[#allocation2 + $0x90] sm:$0xff]
    %v167 = vld [vmem:[#allocation2 + $0x98] sm:$0xff]
    %v168 = vld [vmem:[#allocation2 + $0xa0] sm:$0xff]
    %v169 = vld [vmem:[#allocation2 + $0xa8] sm:$0xff]
    %v170 = vld [vmem:[#allocation2 + $0xb0] sm:$0xff]
    %v171 = vld [vmem:[#allocation2 + $0xb8] sm:$0xff]
    %v172 = vld [vmem:[#allocation2 + $0xc0] sm:$0xff]
    %v173 = vld [vmem:[#allocation2 + $0xc8] sm:$0xff]
    %v174 = vld [vmem:[#allocation2 + $0xd0] sm:$0xff]
    %v175 = vld [vmem:[#allocation2 + $0xd8] sm:$0xff]
    %v176 = vld [vmem:[#allocation2 + $0xe0] sm:$0xff]
    %v177 = vld [vmem:[#allocation2 + $0xe8] sm:$0xff]
    %v178 = vld [vmem:[#allocation2 + $0xf0] sm:$0xff]
    %v179 = vld [vmem:[#allocation2 + $0xf8] sm:$0xff]
    %v180 = vld [vmem:[#allocation2 + $0x100] sm:$0xff]
    %v181 = vld [vmem:[#allocation2 + $0x108] sm:$0xff]
    %v182 = vld [vmem:[#allocation2 + $0x110] sm:$0xff]
    %v183 = vld [vmem:[#allocation2 + $0x118] sm:$0xff]
    %v184 = vld [vmem:[#allocation2 + $0x120] sm:$0xff]
    %v185 = vld [vmem:[#allocation2 + $0x128] sm:$0xff]
    %v186 = vld [vmem:[#allocation2 + $0x130] sm:$0xff]
    %v187 = vld [vmem:[#allocation2 + $0x138] sm:$0xff]
    %v188 = vld [vmem:[#allocation2 + $0x140] sm:$0xff]
    %v189 = vld [vmem:[#allocation2 + $0x148] sm:$0xff]
    %v190 = vld [vmem:[#allocation2 + $0x150] sm:$0xff]
    %v191 = vld [vmem:[#allocation2 + $0x158] sm:$0xff]
    %v192 = vld [vmem:[#allocation2 + $0x160] sm:$0xff]
    %v193 = vld [vmem:[#allocation2 + $0x168] sm:$0xff]
    %v194 = vld [vmem:[#allocation2 + $0x170] sm:$0xff]
    %v195 = vld [vmem:[#allocation2 + $0x178] sm:$0xff]
    %v196 = vld [vmem:[#allocation2 + $0x180] sm:$0xff]
    %v197 = vld [vmem:[#allocation2 + $0x188] sm:$0xff]
    %v198 = vld [vmem:[#allocation2 + $0x190] sm:$0xff]
    %v199 = vld [vmem:[#allocation2 + $0x198] sm:$0xff]
    %v200 = vld [vmem:[#allocation2 + $0x1a0] sm:$0xff]
    %v201 = vld [vmem:[#allocation2 + $0x1a8] sm:$0xff]
    %v202 = vld [vmem:[#allocation2 + $0x1b0] sm:$0xff]
    %v203 = vld [vmem:[#allocation2 + $0x1b8] sm:$0xff]
    %v204 = vld [vmem:[#allocation2 + $0x1c0] sm:$0xff]
    %v205 = vld [vmem:[#allocation2 + $0x1c8] sm:$0xff]
    %v206 = vld [vmem:[#allocation2 + $0x1d0] sm:$0xff]
    %v207 = vld [vmem:[#allocation2 + $0x1d8] sm:$0xff]
    %v208 = vld [vmem:[#allocation2 + $0x1e0] sm:$0xff]
    %v209 = vld [vmem:[#allocation2 + $0x1e8] sm:$0xff]
    %v210 = vld [vmem:[#allocation2 + $0x1f0] sm:$0xff]
    %v211 = vld [vmem:[#allocation2 + $0x1f8] sm:$0xff]
    %v212 = vld [vmem:[#allocation2 + $0x200] sm:$0xff]
    %v213 = vld [vmem:[#allocation2 + $0x208] sm:$0xff]
    %v214 = vld [vmem:[#allocation2 + $0x210] sm:$0xff]
    %v215 = vld [vmem:[#allocation2 + $0x218] sm:$0xff]
    %v216 = vld [vmem:[#allocation2 + $0x220] sm:$0xff]
    %v217 = vld [vmem:[#allocation2 + $0x228] sm:$0xff]
    %v218 = vld [vmem:[#allocation2 + $0x230] sm:$0xff]
    %v219 = vld [vmem:[#allocation2 + $0x238] sm:$0xff]
    %v220 = vld [vmem:[#allocation2 + $0x240] sm:$0xff]
    %v221 = vld [vmem:[#allocation2 + $0x248] sm:$0xff]
    %v222 = vld [vmem:[#allocation2 + $0x250] sm:$0xff]
    %v223 = vld [vmem:[#allocation2 + $0x258] sm:$0xff]
    %v224 = vld [vmem:[#allocation2 + $0x260] sm:$0xff]
    %v225 = vld [vmem:[#allocation2 + $0x268] sm:$0xff]
    %v226 = vld [vmem:[#allocation2 + $0x270] sm:$0xff]
    %v227 = vld [vmem:[#allocation2 + $0x278] sm:$0xff]
    %v228 = vld [vmem:[#allocation2 + $0x280] sm:$0xff]
    %v229 = vld [vmem:[#allocation2 + $0x288] sm:$0xff]
    %v230 = vld [vmem:[#allocation2 + $0x290] sm:$0xff]
    %v231 = vld [vmem:[#allocation2 + $0x298] sm:$0xff]
    %v232 = vld [vmem:[#allocation2 + $0x2a0] sm:$0xff]
    %v233 = vld [vmem:[#allocation2 + $0x2a8] sm:$0xff]
    %v234 = vld [vmem:[#allocation2 + $0x2b0] sm:$0xff]
    %v235 = vld [vmem:[#allocation2 + $0x2b8] sm:$0xff]
    %v236 = vld [vmem:[#allocation2 + $0x2c0] sm:$0xff]
    %v237 = vld [vmem:[#allocation2 + $0x2c8] sm:$0xff]
    %v238 = vld [vmem:[#allocation2 + $0x2d0] sm:$0xff]
    %v239 = vld [vmem:[#allocation2 + $0x2d8] sm:$0xff]
    %v240 = vld [vmem:[#allocation2 + $0x2e0] sm:$0xff]
    %v241 = vld [vmem:[#allocation2 + $0x2e8] sm:$0xff]
    %v242 = vld [vmem:[#allocation2 + $0x2f0] sm:$0xff]
    %v243 = vld [vmem:[#allocation2 + $0x2f8] sm:$0xff]
    %v244 = vld [vmem:[#allocation2 + $0x300] sm:$0xff]
    %v245 = vld [vmem:[#allocation2 + $0x308] sm:$0xff]
    %v246 = vld [vmem:[#allocation2 + $0x310] sm:$0xff]
    %v247 = vld [vmem:[#allocation2 + $0x318] sm:$0xff]
    %v248 = vld [vmem:[#allocation2 + $0x320] sm:$0xff]
    %v249 = vld [vmem:[#allocation2 + $0x328] sm:$0xff]
    %v250 = vld [vmem:[#allocation2 + $0x330] sm:$0xff]
    %v251 = vld [vmem:[#allocation2 + $0x338] sm:$0xff]
    %v252 = vld [vmem:[#allocation2 + $0x340] sm:$0xff]
    %v253 = vld [vmem:[#allocation2 + $0x348] sm:$0xff]
    %v254 = vld [vmem:[#allocation2 + $0x350] sm:$0xff]
    %v255 = vld [vmem:[#allocation2 + $0x358] sm:$0xff]
    %v256 = vld [vmem:[#allocation2 + $0x360] sm:$0xff]
    %v257 = vld [vmem:[#allocation2 + $0x368] sm:$0xff]
    %v258 = vld [vmem:[#allocation2 + $0x370] sm:$0xff]
    %v259 = vld [vmem:[#allocation2 + $0x378] sm:$0xff]
    %v260 = vld [vmem:[#allocation2 + $0x380] sm:$0xff]
    %v261 = vld [vmem:[#allocation2 + $0x388] sm:$0xff]
    %v262 = vld [vmem:[#allocation2 + $0x390] sm:$0xff]
    %v263 = vld [vmem:[#allocation2 + $0x398] sm:$0xff]
    %v264 = vld [vmem:[#allocation2 + $0x3a0] sm:$0xff]
    %v265 = vld [vmem:[#allocation2 + $0x3a8] sm:$0xff]
    %v266 = vld [vmem:[#allocation2 + $0x3b0] sm:$0xff]
    %v267 = vld [vmem:[#allocation2 + $0x3b8] sm:$0xff]
    %v268 = vld [vmem:[#allocation2 + $0x3c0] sm:$0xff]
    %v269 = vld [vmem:[#allocation2 + $0x3c8] sm:$0xff]
    %v270 = vld [vmem:[#allocation2 + $0x3d0] sm:$0xff]
    %v271 = vld [vmem:[#allocation2 + $0x3d8] sm:$0xff]
    %v272 = vld [vmem:[#allocation2 + $0x3e0] sm:$0xff]
    %v273 = vld [vmem:[#allocation2 + $0x3e8] sm:$0xff]
    %v274 = vld [vmem:[#allocation2 + $0x3f0] sm:$0xff]
    %v275 = vld [vmem:[#allocation2 + $0x3f8] sm:$0xff]
    %v276 = vld [vmem:[#allocation2 + $0x400] sm:$0xff]
    %v277 = vld [vmem:[#allocation2 + $0x408] sm:$0xff]
    %v278 = vld [vmem:[#allocation2 + $0x410] sm:$0xff]
    %v279 = vld [vmem:[#allocation2 + $0x418] sm:$0xff]
    %v280 = vld [vmem:[#allocation2 + $0x420] sm:$0xff]
    %v281 = vld [vmem:[#allocation2 + $0x428] sm:$0xff]
    %v282 = vld [vmem:[#allocation2 + $0x430] sm:$0xff]
    %v283 = vld [vmem:[#allocation2 + $0x438] sm:$0xff]
    %v284 = vld [vmem:[#allocation2 + $0x440] sm:$0xff]
    %v285 = vld [vmem:[#allocation2 + $0x448] sm:$0xff]
    %v286 = vld [vmem:[#allocation2 + $0x450] sm:$0xff]
    %v287 = vld [vmem:[#allocation2 + $0x458] sm:$0xff]
    %v288 = vld [vmem:[#allocation2 + $0x460] sm:$0xff]
    %v289 = vld [vmem:[#allocation2 + $0x468] sm:$0xff]
    %v290 = vld [vmem:[#allocation2 + $0x470] sm:$0xff]
    %v291 = vld [vmem:[#allocation2 + $0x478] sm:$0xff]
    %v292 = vld [vmem:[#allocation2 + $0x480] sm:$0xff]
    %v293 = vld [vmem:[#allocation2 + $0x488] sm:$0xff]
    %v294 = vld [vmem:[#allocation2 + $0x490] sm:$0xff]
    %v295 = vld [vmem:[#allocation2 + $0x498] sm:$0xff]
    %v296 = vld [vmem:[#allocation2 + $0x4a0] sm:$0xff]
    %v297 = vld [vmem:[#allocation2 + $0x4a8] sm:$0xff]
    %v298 = vld [vmem:[#allocation2 + $0x4b0] sm:$0xff]
    %v299 = vld [vmem:[#allocation2 + $0x4b8] sm:$0xff]
    %v300 = vld [vmem:[#allocation2 + $0x4c0] sm:$0xff]
    %v301 = vld [vmem:[#allocation2 + $0x4c8] sm:$0xff]
    %v302 = vld [vmem:[#allocation2 + $0x4d0] sm:$0xff]
    %v303 = vld [vmem:[#allocation2 + $0x4d8] sm:$0xff]
    %v304 = vld [vmem:[#allocation2 + $0x4e0] sm:$0xff]
    %v305 = vld [vmem:[#allocation2 + $0x4e8] sm:$0xff]
    %v306 = vld [vmem:[#allocation2 + $0x4f0] sm:$0xff]
    %v307 = vld [vmem:[#allocation2 + $0x4f8] sm:$0xff]
    %v308 = vld [vmem:[#allocation2 + $0x500] sm:$0xff]
    %v309 = vld [vmem:[#allocation2 + $0x508] sm:$0xff]
    %v310 = vld [vmem:[#allocation2 + $0x510] sm:$0xff]
    %v311 = vld [vmem:[#allocation2 + $0x518] sm:$0xff]
    %v312 = vld [vmem:[#allocation2 + $0x520] sm:$0xff]
    %v313 = vld [vmem:[#allocation2 + $0x528] sm:$0xff]
    %v314 = vld [vmem:[#allocation2 + $0x530] sm:$0xff]
    %v315 = vld [vmem:[#allocation2 + $0x538] sm:$0xff]
    %v316 = vld [vmem:[#allocation2 + $0x540] sm:$0xff]
    %v317 = vld [vmem:[#allocation2 + $0x548] sm:$0xff]
    %v318 = vld [vmem:[#allocation2 + $0x550] sm:$0xff]
    %v319 = vld [vmem:[#allocation2 + $0x558] sm:$0xff]
    %v320 = vld [vmem:[#allocation2 + $0x560] sm:$0xff]
    %v321 = vld [vmem:[#allocation2 + $0x568] sm:$0xff]
    %v322 = vld [vmem:[#allocation2 + $0x570] sm:$0xff]
    %v323 = vld [vmem:[#allocation2 + $0x578] sm:$0xff]
    %v324 = vld [vmem:[#allocation2 + $0x580] sm:$0xff]
    %v325 = vld [vmem:[#allocation2 + $0x588] sm:$0xff]
    %v326 = vld [vmem:[#allocation2 + $0x590] sm:$0xff]
    %v327 = vld [vmem:[#allocation2 + $0x598] sm:$0xff]
    %v328 = vld [vmem:[#allocation2 + $0x5a0] sm:$0xff]
    %v329 = vld [vmem:[#allocation2 + $0x5a8] sm:$0xff]
    %v330 = vld [vmem:[#allocation2 + $0x5b0] sm:$0xff]
    %v331 = vld [vmem:[#allocation2 + $0x5b8] sm:$0xff]
    %v332 = vld [vmem:[#allocation2 + $0x5c0] sm:$0xff]
    %v333 = vld [vmem:[#allocation2 + $0x5c8] sm:$0xff]
    %v334 = vld [vmem:[#allocation2 + $0x5d0] sm:$0xff]
    %v335 = vld [vmem:[#allocation2 + $0x5d8] sm:$0xff]
    %v336 = vld [vmem:[#allocation2 + $0x5e0] sm:$0xff]
    %v337 = vld [vmem:[#allocation2 + $0x5e8] sm:$0xff]
    %v338 = vld [vmem:[#allocation2 + $0x5f0] sm:$0xff]
    %v339 = vld [vmem:[#allocation2 + $0x5f8] sm:$0xff]
    %v340 = vld [vmem:[#allocation2 + $0x600] sm:$0xff]
    %v341 = vld [vmem:[#allocation2 + $0x608] sm:$0xff]
    %v342 = vld [vmem:[#allocation2 + $0x610] sm:$0xff]
    %v343 = vld [vmem:[#allocation2 + $0x618] sm:$0xff]
    %v344 = vld [vmem:[#allocation2 + $0x620] sm:$0xff]
    %v345 = vld [vmem:[#allocation2 + $0x628] sm:$0xff]
    %v346 = vld [vmem:[#allocation2 + $0x630] sm:$0xff]
    %v347 = vld [vmem:[#allocation2 + $0x638] sm:$0xff]
    %v348 = vld [vmem:[#allocation2 + $0x640] sm:$0xff]
    %v349 = vld [vmem:[#allocation2 + $0x648] sm:$0xff]
    %v350 = vld [vmem:[#allocation2 + $0x650] sm:$0xff]
    %v351 = vld [vmem:[#allocation2 + $0x658] sm:$0xff]
    %v352 = vld [vmem:[#allocation2 + $0x660] sm:$0xff]
    %v353 = vld [vmem:[#allocation2 + $0x668] sm:$0xff]
    %v354 = vld [vmem:[#allocation2 + $0x670] sm:$0xff]
    %v355 = vld [vmem:[#allocation2 + $0x678] sm:$0xff]
    %v356 = vld [vmem:[#allocation2 + $0x680] sm:$0xff]
    %v357 = vld [vmem:[#allocation2 + $0x688] sm:$0xff]
    %v358 = vld [vmem:[#allocation2 + $0x690] sm:$0xff]
    %v359 = vld [vmem:[#allocation2 + $0x698] sm:$0xff]
    %v360 = vld [vmem:[#allocation2 + $0x6a0] sm:$0xff]
    %v361 = vld [vmem:[#allocation2 + $0x6a8] sm:$0xff]
    %v362 = vld [vmem:[#allocation2 + $0x6b0] sm:$0xff]
    %v363 = vld [vmem:[#allocation2 + $0x6b8] sm:$0xff]
    %v364 = vld [vmem:[#allocation2 + $0x6c0] sm:$0xff]
    %v365 = vld [vmem:[#allocation2 + $0x6c8] sm:$0xff]
    %v366 = vld [vmem:[#allocation2 + $0x6d0] sm:$0xff]
    %v367 = vld [vmem:[#allocation2 + $0x6d8] sm:$0xff]
    %v368 = vld [vmem:[#allocation2 + $0x6e0] sm:$0xff]
    %v369 = vld [vmem:[#allocation2 + $0x6e8] sm:$0xff]
    %v370 = vld [vmem:[#allocation2 + $0x6f0] sm:$0xff]
    %v371 = vld [vmem:[#allocation2 + $0x6f8] sm:$0xff]
    %v372 = vld [vmem:[#allocation2 + $0x700] sm:$0xff]
    %v373 = vld [vmem:[#allocation2 + $0x708] sm:$0xff]
    %v374 = vld [vmem:[#allocation2 + $0x710] sm:$0xff]
    %v375 = vld [vmem:[#allocation2 + $0x718] sm:$0xff]
    %v376 = vld [vmem:[#allocation2 + $0x720] sm:$0xff]
    %v377 = vld [vmem:[#allocation2 + $0x728] sm:$0xff]
    %v378 = vld [vmem:[#allocation2 + $0x730] sm:$0xff]
    %v379 = vld [vmem:[#allocation2 + $0x738] sm:$0xff]
    %v380 = vld [vmem:[#allocation2 + $0x740] sm:$0xff]
    %v381 = vld [vmem:[#allocation2 + $0x748] sm:$0xff]
    %v382 = vld [vmem:[#allocation2 + $0x750] sm:$0xff]
    %v383 = vld [vmem:[#allocation2 + $0x758] sm:$0xff]
    %v384 = vld [vmem:[#allocation2 + $0x760] sm:$0xff]
    %v385 = vld [vmem:[#allocation2 + $0x768] sm:$0xff]
    %v386 = vld [vmem:[#allocation2 + $0x770] sm:$0xff]
    %v387 = vld [vmem:[#allocation2 + $0x778] sm:$0xff]
    %v388 = vld [vmem:[#allocation2 + $0x780] sm:$0xff]
    %v389 = vld [vmem:[#allocation2 + $0x788] sm:$0xff]
    %v390 = vld [vmem:[#allocation2 + $0x790] sm:$0xff]
    %v391 = vld [vmem:[#allocation2 + $0x798] sm:$0xff]
    %v392 = vld [vmem:[#allocation2 + $0x7a0] sm:$0xff]
    %v393 = vld [vmem:[#allocation2 + $0x7a8] sm:$0xff]
    %v394 = vld [vmem:[#allocation2 + $0x7b0] sm:$0xff]
    %v395 = vld [vmem:[#allocation2 + $0x7b8] sm:$0xff]
    %v396 = vld [vmem:[#allocation2 + $0x7c0] sm:$0xff]
    %v397 = vld [vmem:[#allocation2 + $0x7c8] sm:$0xff]
    %v398 = vld [vmem:[#allocation2 + $0x7d0] sm:$0xff]
    %v399 = vld [vmem:[#allocation2 + $0x7d8] sm:$0xff]
    %v400 = vld [vmem:[#allocation2 + $0x7e0] sm:$0xff]
    %v401 = vld [vmem:[#allocation2 + $0x7e8] sm:$0xff]
    %v402 = vld [vmem:[#allocation2 + $0x7f0] sm:$0xff]
    %v403 = vld [vmem:[#allocation2 + $0x7f8] sm:$0xff]
    %v404 = vld [vmem:[#allocation2 + $0x800] sm:$0xff]
    %v405 = vld [vmem:[#allocation2 + $0x808] sm:$0xff]
    %v406 = vld [vmem:[#allocation2 + $0x810] sm:$0xff]
    %v407 = vld [vmem:[#allocation2 + $0x818] sm:$0xff]
    %v408 = vld [vmem:[#allocation2 + $0x820] sm:$0xff]
    %v409 = vld [vmem:[#allocation2 + $0x828] sm:$0xff]
    %v410 = vld [vmem:[#allocation2 + $0x830] sm:$0xff]
    %v411 = vld [vmem:[#allocation2 + $0x838] sm:$0xff]
    %v412 = vld [vmem:[#allocation2 + $0x840] sm:$0xff]
    %v413 = vld [vmem:[#allocation2 + $0x848] sm:$0xff]
    %v414 = vld [vmem:[#allocation2 + $0x850] sm:$0xff]
    %v415 = vld [vmem:[#allocation2 + $0x858] sm:$0xff]
    %v416 = vld [vmem:[#allocation2 + $0x860] sm:$0xff]
    %v417 = vld [vmem:[#allocation2 + $0x868] sm:$0xff]
    %v418 = vld [vmem:[#allocation2 + $0x870] sm:$0xff]
    %v419 = vld [vmem:[#allocation2 + $0x878] sm:$0xff]
    %v420 = vld [vmem:[#allocation2 + $0x880] sm:$0xff]
    %v421 = vld [vmem:[#allocation2 + $0x888] sm:$0xff]
    %v422 = vld [vmem:[#allocation2 + $0x890] sm:$0xff]
    %v423 = vld [vmem:[#allocation2 + $0x898] sm:$0xff]
    %v424 = vld [vmem:[#allocation2 + $0x8a0] sm:$0xff]
    %v425 = vld [vmem:[#allocation2 + $0x8a8] sm:$0xff]
    %v426 = vld [vmem:[#allocation2 + $0x8b0] sm:$0xff]
    %v427 = vld [vmem:[#allocation2 + $0x8b8] sm:$0xff]
    %v428 = vld [vmem:[#allocation2 + $0x8c0] sm:$0xff]
    %v429 = vld [vmem:[#allocation2 + $0x8c8] sm:$0xff]
    %v430 = vld [vmem:[#allocation2 + $0x8d0] sm:$0xff]
    %v431 = vld [vmem:[#allocation2 + $0x8d8] sm:$0xff]
    %v432 = vld [vmem:[#allocation2 + $0x8e0] sm:$0xff]
    %v433 = vld [vmem:[#allocation2 + $0x8e8] sm:$0xff]
    %v434 = vld [vmem:[#allocation2 + $0x8f0] sm:$0xff]
    %v435 = vld [vmem:[#allocation2 + $0x8f8] sm:$0xff]
    %v436 = vld [vmem:[#allocation2 + $0x900] sm:$0xff]
    %v437 = vld [vmem:[#allocation2 + $0x908] sm:$0xff]
    %v438 = vld [vmem:[#allocation2 + $0x910] sm:$0xff]
    %v439 = vld [vmem:[#allocation2 + $0x918] sm:$0xff]
    %v440 = vld [vmem:[#allocation2 + $0x920] sm:$0xff]
    %v441 = vld [vmem:[#allocation2 + $0x928] sm:$0xff]
    %v442 = vld [vmem:[#allocation2 + $0x930] sm:$0xff]
    %v443 = vld [vmem:[#allocation2 + $0x938] sm:$0xff]
    %v444 = vld [vmem:[#allocation2 + $0x940] sm:$0xff]
    %v445 = vld [vmem:[#allocation2 + $0x948] sm:$0xff]
    %v446 = vld [vmem:[#allocation2 + $0x950] sm:$0xff]
    %v447 = vld [vmem:[#allocation2 + $0x958] sm:$0xff]
    %v448 = vld [vmem:[#allocation2 + $0x960] sm:$0xff]
    %v449 = vld [vmem:[#allocation2 + $0x968] sm:$0xff]
    %v450 = vld [vmem:[#allocation2 + $0x970] sm:$0xff]
    %v451 = vld [vmem:[#allocation2 + $0x978] sm:$0xff]
    %v452 = vld [vmem:[#allocation2 + $0x980] sm:$0xff]
    %v453 = vld [vmem:[#allocation2 + $0x988] sm:$0xff]
    %v454 = vld [vmem:[#allocation2 + $0x990] sm:$0xff]
    %v455 = vld [vmem:[#allocation2 + $0x998] sm:$0xff]
    %v456 = vld [vmem:[#allocation2 + $0x9a0] sm:$0xff]
    %v457 = vld [vmem:[#allocation2 + $0x9a8] sm:$0xff]
    %v458 = vld [vmem:[#allocation2 + $0x9b0] sm:$0xff]
    %v459 = vld [vmem:[#allocation2 + $0x9b8] sm:$0xff]
    %v460 = vld [vmem:[#allocation2 + $0x9c0] sm:$0xff]
    %v461 = vld [vmem:[#allocation2 + $0x9c8] sm:$0xff]
    %v462 = vld [vmem:[#allocation2 + $0x9d0] sm:$0xff]
    %v463 = vld [vmem:[#allocation2 + $0x9d8] sm:$0xff]
    %v464 = vld [vmem:[#allocation2 + $0x9e0] sm:$0xff]
    %v465 = vld [vmem:[#allocation2 + $0x9e8] sm:$0xff]
    %v466 = vld [vmem:[#allocation2 + $0x9f0] sm:$0xff]
    %v467 = vld [vmem:[#allocation2 + $0x9f8] sm:$0xff]
    %v468 = vld [vmem:[#allocation2 + $0xa00] sm:$0xff]
    %v469 = vld [vmem:[#allocation2 + $0xa08] sm:$0xff]
    %v470 = vld [vmem:[#allocation2 + $0xa10] sm:$0xff]
    %v471 = vld [vmem:[#allocation2 + $0xa18] sm:$0xff]
    %v472 = vld [vmem:[#allocation2 + $0xa20] sm:$0xff]
    %v473 = vld [vmem:[#allocation2 + $0xa28] sm:$0xff]
    %v474 = vld [vmem:[#allocation2 + $0xa30] sm:$0xff]
    %v475 = vld [vmem:[#allocation2 + $0xa38] sm:$0xff]
    %v476 = vld [vmem:[#allocation2 + $0xa40] sm:$0xff]
    %v477 = vld [vmem:[#allocation2 + $0xa48] sm:$0xff]
    %v478 = vld [vmem:[#allocation2 + $0xa50] sm:$0xff]
    %v479 = vld [vmem:[#allocation2 + $0xa58] sm:$0xff]
    %v480 = vld [vmem:[#allocation2 + $0xa60] sm:$0xff]
    %v481 = vld [vmem:[#allocation2 + $0xa68] sm:$0xff]
    %v482 = vld [vmem:[#allocation2 + $0xa70] sm:$0xff]
    %v483 = vld [vmem:[#allocation2 + $0xa78] sm:$0xff]
    %v484 = vld [vmem:[#allocation2 + $0xa80] sm:$0xff]
    %v485 = vld [vmem:[#allocation2 + $0xa88] sm:$0xff]
    %v486 = vld [vmem:[#allocation2 + $0xa90] sm:$0xff]
    %v487 = vld [vmem:[#allocation2 + $0xa98] sm:$0xff]
    %v488 = vld [vmem:[#allocation2 + $0xaa0] sm:$0xff]
    %v489 = vld [vmem:[#allocation2 + $0xaa8] sm:$0xff]
    %v490 = vld [vmem:[#allocation2 + $0xab0] sm:$0xff]
    %v491 = vld [vmem:[#allocation2 + $0xab8] sm:$0xff]
    %v492 = vld [vmem:[#allocation2 + $0xac0] sm:$0xff]
    %v493 = vld [vmem:[#allocation2 + $0xac8] sm:$0xff]
    %v494 = vld [vmem:[#allocation2 + $0xad0] sm:$0xff]
    %v495 = vld [vmem:[#allocation2 + $0xad8] sm:$0xff]
    %v496 = vld [vmem:[#allocation2 + $0xae0] sm:$0xff]
    %v497 = vld [vmem:[#allocation2 + $0xae8] sm:$0xff]
    %v498 = vld [vmem:[#allocation2 + $0xaf0] sm:$0xff]
    %v499 = vld [vmem:[#allocation2 + $0xaf8] sm:$0xff]
    %v500 = vld [vmem:[#allocation2 + $0xb00] sm:$0xff]
    %v501 = vld [vmem:[#allocation2 + $0xb08] sm:$0xff]
    %v502 = vld [vmem:[#allocation2 + $0xb10] sm:$0xff]
    %v503 = vld [vmem:[#allocation2 + $0xb18] sm:$0xff]
    %v504 = vld [vmem:[#allocation2 + $0xb20] sm:$0xff]
    %v505 = vld [vmem:[#allocation2 + $0xb28] sm:$0xff]
    %v506 = vld [vmem:[#allocation2 + $0xb30] sm:$0xff]
    %v507 = vld [vmem:[#allocation2 + $0xb38] sm:$0xff]
    %v508 = vld [vmem:[#allocation2 + $0xb40] sm:$0xff]
    %v509 = vld [vmem:[#allocation2 + $0xb48] sm:$0xff]
    %v510 = vld [vmem:[#allocation2 + $0xb50] sm:$0xff]
    %v511 = vld [vmem:[#allocation2 + $0xb58] sm:$0xff]
    %v512 = vld [vmem:[#allocation2 + $0xb60] sm:$0xff]
    %v513 = vld [vmem:[#allocation2 + $0xb68] sm:$0xff]
    %v514 = vld [vmem:[#allocation2 + $0xb70] sm:$0xff]
    %v515 = vld [vmem:[#allocation2 + $0xb78] sm:$0xff]
    %v516 = vld [vmem:[#allocation2 + $0xb80] sm:$0xff]
    %v517 = vld [vmem:[#allocation2 + $0xb88] sm:$0xff]
    %v518 = vld [vmem:[#allocation2 + $0xb90] sm:$0xff]
    %v519 = vld [vmem:[#allocation2 + $0xb98] sm:$0xff]
    %v520 = vld [vmem:[#allocation2 + $0xba0] sm:$0xff]
    %v521 = vld [vmem:[#allocation2 + $0xba8] sm:$0xff]
    %v522 = vld [vmem:[#allocation2 + $0xbb0] sm:$0xff]
    %v523 = vld [vmem:[#allocation2 + $0xbb8] sm:$0xff]
    %v524 = vld [vmem:[#allocation2 + $0xbc0] sm:$0xff]
    %v525 = vld [vmem:[#allocation2 + $0xbc8] sm:$0xff]
    %v526 = vld [vmem:[#allocation2 + $0xbd0] sm:$0xff]
    %v527 = vld [vmem:[#allocation2 + $0xbd8] sm:$0xff]
    %v528 = vld [vmem:[#allocation2 + $0xbe0] sm:$0xff]
    %v529 = vld [vmem:[#allocation2 + $0xbe8] sm:$0xff]
    %v530 = vld [vmem:[#allocation2 + $0xbf0] sm:$0xff]
    %v531 = vld [vmem:[#allocation2 + $0xbf8] sm:$0xff]
    %v532 = vld [vmem:[#allocation2 + $0xc00] sm:$0xff]
    %v533 = vld [vmem:[#allocation2 + $0xc08] sm:$0xff]
    %v534 = vld [vmem:[#allocation2 + $0xc10] sm:$0xff]
    %v535 = vld [vmem:[#allocation2 + $0xc18] sm:$0xff]
    %v536 = vld [vmem:[#allocation2 + $0xc20] sm:$0xff]
    %v537 = vld [vmem:[#allocation2 + $0xc28] sm:$0xff]
    %v538 = vld [vmem:[#allocation2 + $0xc30] sm:$0xff]
    %v539 = vld [vmem:[#allocation2 + $0xc38] sm:$0xff]
    %v540 = vld [vmem:[#allocation2 + $0xc40] sm:$0xff]
    %v541 = vld [vmem:[#allocation2 + $0xc48] sm:$0xff]
    %v542 = vld [vmem:[#allocation2 + $0xc50] sm:$0xff]
    %v543 = vld [vmem:[#allocation2 + $0xc58] sm:$0xff]
    %v544 = vld [vmem:[#allocation2 + $0xc60] sm:$0xff]
    %v545 = vld [vmem:[#allocation2 + $0xc68] sm:$0xff]
    %v546 = vld [vmem:[#allocation2 + $0xc70] sm:$0xff]
    %v547 = vld [vmem:[#allocation2 + $0xc78] sm:$0xff]
    %v548 = vld [vmem:[#allocation2 + $0xc80] sm:$0xff]
    %v549 = vld [vmem:[#allocation2 + $0xc88] sm:$0xff]
    %v550 = vld [vmem:[#allocation2 + $0xc90] sm:$0xff]
    %v551 = vld [vmem:[#allocation2 + $0xc98] sm:$0xff]
    %v552 = vld [vmem:[#allocation2 + $0xca0] sm:$0xff]
    %v553 = vld [vmem:[#allocation2 + $0xca8] sm:$0xff]
    %v554 = vld [vmem:[#allocation2 + $0xcb0] sm:$0xff]
    %v555 = vld [vmem:[#allocation2 + $0xcb8] sm:$0xff]
    %v556 = vld [vmem:[#allocation2 + $0xcc0] sm:$0xff]
    %v557 = vld [vmem:[#allocation2 + $0xcc8] sm:$0xff]
    %v558 = vld [vmem:[#allocation2 + $0xcd0] sm:$0xff]
    %v559 = vld [vmem:[#allocation2 + $0xcd8] sm:$0xff]
    %v560 = vld [vmem:[#allocation2 + $0xce0] sm:$0xff]
    %v561 = vld [vmem:[#allocation2 + $0xce8] sm:$0xff]
    %v562 = vld [vmem:[#allocation2 + $0xcf0] sm:$0xff]
    %v563 = vld [vmem:[#allocation2 + $0xcf8] sm:$0xff]
    %v564 = vld [vmem:[#allocation2 + $0xd00] sm:$0xff]
    %v565 = vld [vmem:[#allocation2 + $0xd08] sm:$0xff]
    %v566 = vld [vmem:[#allocation2 + $0xd10] sm:$0xff]
    %v567 = vld [vmem:[#allocation2 + $0xd18] sm:$0xff]
    %v568 = vld [vmem:[#allocation2 + $0xd20] sm:$0xff]
    %v569 = vld [vmem:[#allocation2 + $0xd28] sm:$0xff]
    %v570 = vld [vmem:[#allocation2 + $0xd30] sm:$0xff]
    %v571 = vld [vmem:[#allocation2 + $0xd38] sm:$0xff]
    %v572 = vld [vmem:[#allocation2 + $0xd40] sm:$0xff]
    %v573 = vld [vmem:[#allocation2 + $0xd48] sm:$0xff]
    %v574 = vld [vmem:[#allocation2 + $0xd50] sm:$0xff]
    %v575 = vld [vmem:[#allocation2 + $0xd58] sm:$0xff]
    %v576 = vld [vmem:[#allocation2 + $0xd60] sm:$0xff]
    %v577 = vld [vmem:[#allocation2 + $0xd68] sm:$0xff]
    %v578 = vld [vmem:[#allocation2 + $0xd70] sm:$0xff]
    %v579 = vld [vmem:[#allocation2 + $0xd78] sm:$0xff]
    %v580 = vld [vmem:[#allocation2 + $0xd80] sm:$0xff]
    %v581 = vld [vmem:[#allocation2 + $0xd88] sm:$0xff]
    %v582 = vld [vmem:[#allocation2 + $0xd90] sm:$0xff]
    %v583 = vld [vmem:[#allocation2 + $0xd98] sm:$0xff]
    %v584 = vld [vmem:[#allocation2 + $0xda0] sm:$0xff]
    %v585 = vld [vmem:[#allocation2 + $0xda8] sm:$0xff]
    %v586 = vld [vmem:[#allocation2 + $0xdb0] sm:$0xff]
    %v587 = vld [vmem:[#allocation2 + $0xdb8] sm:$0xff]
    %v588 = vld [vmem:[#allocation2 + $0xdc0] sm:$0xff]
    %v589 = vld [vmem:[#allocation2 + $0xdc8] sm:$0xff]
    %v590 = vld [vmem:[#allocation2 + $0xdd0] sm:$0xff]
    %v591 = vld [vmem:[#allocation2 + $0xdd8] sm:$0xff]
    %v592 = vld [vmem:[#allocation2 + $0xde0] sm:$0xff]
    %v593 = vld [vmem:[#allocation2 + $0xde8] sm:$0xff]
    %v594 = vld [vmem:[#allocation2 + $0xdf0] sm:$0xff]
    %v595 = vld [vmem:[#allocation2 + $0xdf8] sm:$0xff]
    %v596 = vld [vmem:[#allocation2 + $0xe00] sm:$0xff]
    %v597 = vld [vmem:[#allocation2 + $0xe08] sm:$0xff]
    %v598 = vld [vmem:[#allocation2 + $0xe10] sm:$0xff]
    %v599 = vld [vmem:[#allocation2 + $0xe18] sm:$0xff]
    %v600 = vld [vmem:[#allocation2 + $0xe20] sm:$0xff]
    %v601 = vld [vmem:[#allocation2 + $0xe28] sm:$0xff]
    %v602 = vld [vmem:[#allocation2 + $0xe30] sm:$0xff]
    %v603 = vld [vmem:[#allocation2 + $0xe38] sm:$0xff]
    %v604 = vld [vmem:[#allocation2 + $0xe40] sm:$0xff]
    %v605 = vld [vmem:[#allocation2 + $0xe48] sm:$0xff]
    %v606 = vld [vmem:[#allocation2 + $0xe50] sm:$0xff]
    %v607 = vld [vmem:[#allocation2 + $0xe58] sm:$0xff]
    %v608 = vld [vmem:[#allocation2 + $0xe60] sm:$0xff]
    %v609 = vld [vmem:[#allocation2 + $0xe68] sm:$0xff]
    %v610 = vld [vmem:[#allocation2 + $0xe70] sm:$0xff]
    %v611 = vld [vmem:[#allocation2 + $0xe78] sm:$0xff]
    %v612 = vld [vmem:[#allocation2 + $0xe80] sm:$0xff]
    %v613 = vld [vmem:[#allocation2 + $0xe88] sm:$0xff]
    %v614 = vld [vmem:[#allocation2 + $0xe90] sm:$0xff]
    %v615 = vld [vmem:[#allocation2 + $0xe98] sm:$0xff]
    %v616 = vld [vmem:[#allocation2 + $0xea0] sm:$0xff]
    %v617 = vld [vmem:[#allocation2 + $0xea8] sm:$0xff]
    %v618 = vld [vmem:[#allocation2 + $0xeb0] sm:$0xff]
    %v619 = vld [vmem:[#allocation2 + $0xeb8] sm:$0xff]
    %v620 = vld [vmem:[#allocation2 + $0xec0] sm:$0xff]
    %v621 = vld [vmem:[#allocation2 + $0xec8] sm:$0xff]
    %v622 = vld [vmem:[#allocation2 + $0xed0] sm:$0xff]
    %v623 = vld [vmem:[#allocation2 + $0xed8] sm:$0xff]
    %v624 = vld [vmem:[#allocation2 + $0xee0] sm:$0xff]
    %v625 = vld [vmem:[#allocation2 + $0xee8] sm:$0xff]
    %v626 = vld [vmem:[#allocation2 + $0xef0] sm:$0xff]
    %v627 = vld [vmem:[#allocation2 + $0xef8] sm:$0xff]
    %v628 = vld [vmem:[#allocation2 + $0xf00] sm:$0xff]
    %v629 = vld [vmem:[#allocation2 + $0xf08] sm:$0xff]
    %v630 = vld [vmem:[#allocation2 + $0xf10] sm:$0xff]
    %v631 = vld [vmem:[#allocation2 + $0xf18] sm:$0xff]
    %v632 = vld [vmem:[#allocation2 + $0xf20] sm:$0xff]
    %v633 = vld [vmem:[#allocation2 + $0xf28] sm:$0xff]
    %v634 = vld [vmem:[#allocation2 + $0xf30] sm:$0xff]
    %v635 = vld [vmem:[#allocation2 + $0xf38] sm:$0xff]
    %v636 = vld [vmem:[#allocation2 + $0xf40] sm:$0xff]
    %v637 = vld [vmem:[#allocation2 + $0xf48] sm:$0xff]
    %v638 = vld [vmem:[#allocation2 + $0xf50] sm:$0xff]
    %v639 = vld [vmem:[#allocation2 + $0xf58] sm:$0xff]
    %v640 = vld [vmem:[#allocation2 + $0xf60] sm:$0xff]
    %v641 = vld [vmem:[#allocation2 + $0xf68] sm:$0xff]
    %v642 = vld [vmem:[#allocation2 + $0xf70] sm:$0xff]
    %v643 = vld [vmem:[#allocation2 + $0xf78] sm:$0xff]
    %v644 = vld [vmem:[#allocation2 + $0xf80] sm:$0xff]
    %v645 = vld [vmem:[#allocation2 + $0xf88] sm:$0xff]
    %v646 = vld [vmem:[#allocation2 + $0xf90] sm:$0xff]
    %v647 = vld [vmem:[#allocation2 + $0xf98] sm:$0xff]
    %v648 = vld [vmem:[#allocation2 + $0xfa0] sm:$0xff]
    %v649 = vld [vmem:[#allocation2 + $0xfa8] sm:$0xff]
    %v650 = vld [vmem:[#allocation2 + $0xfb0] sm:$0xff]
    %v651 = vld [vmem:[#allocation2 + $0xfb8] sm:$0xff]
    %v652 = vld [vmem:[#allocation2 + $0xfc0] sm:$0xff]
    %v653 = vld [vmem:[#allocation2 + $0xfc8] sm:$0xff]
    %v654 = vld [vmem:[#allocation2 + $0xfd0] sm:$0xff]
    %v655 = vld [vmem:[#allocation2 + $0xfd8] sm:$0xff]
    %v656 = vld [vmem:[#allocation2 + $0xfe0] sm:$0xff]
    %v657 = vld [vmem:[#allocation2 + $0xfe8] sm:$0xff]
    %v658 = vld [vmem:[#allocation2 + $0xff0] sm:$0xff]
    %v659 = vld [vmem:[#allocation2 + $0xff8] sm:$0xff]
    %v660 = vld [vmem:[#allocation2 + $0x1000] sm:$0xff]
    %v661 = vld [vmem:[#allocation2 + $0x1008] sm:$0xff]
    %v662 = vld [vmem:[#allocation2 + $0x1010] sm:$0xff]
    %v663 = vld [vmem:[#allocation2 + $0x1018] sm:$0xff]
    %v664 = vld [vmem:[#allocation2 + $0x1020] sm:$0xff]
    %v665 = vld [vmem:[#allocation2 + $0x1028] sm:$0xff]
    %v666 = vld [vmem:[#allocation2 + $0x1030] sm:$0xff]
    %v667 = vld [vmem:[#allocation2 + $0x1038] sm:$0xff]
    %v668 = vld [vmem:[#allocation2 + $0x1040] sm:$0xff]
    %v669 = vld [vmem:[#allocation2 + $0x1048] sm:$0xff]
    %v670 = vld [vmem:[#allocation2 + $0x1050] sm:$0xff]
    %v671 = vld [vmem:[#allocation2 + $0x1058] sm:$0xff]
    %v672 = vld [vmem:[#allocation2 + $0x1060] sm:$0xff]
    %v673 = vld [vmem:[#allocation2 + $0x1068] sm:$0xff]
    %v674 = vld [vmem:[#allocation2 + $0x1070] sm:$0xff]
    %v675 = vld [vmem:[#allocation2 + $0x1078] sm:$0xff]
    %v676 = vld [vmem:[#allocation2 + $0x1080] sm:$0xff]
    %v677 = vld [vmem:[#allocation2 + $0x1088] sm:$0xff]
    %v678 = vld [vmem:[#allocation2 + $0x1090] sm:$0xff]
    %v679 = vld [vmem:[#allocation2 + $0x1098] sm:$0xff]
    %v680 = vld [vmem:[#allocation2 + $0x10a0] sm:$0xff]
    %v681 = vld [vmem:[#allocation2 + $0x10a8] sm:$0xff]
    %v682 = vld [vmem:[#allocation2 + $0x10b0] sm:$0xff]
    %v683 = vld [vmem:[#allocation2 + $0x10b8] sm:$0xff]
    %v684 = vld [vmem:[#allocation2 + $0x10c0] sm:$0xff]
    %v685 = vld [vmem:[#allocation2 + $0x10c8] sm:$0xff]
    %v686 = vld [vmem:[#allocation2 + $0x10d0] sm:$0xff]
    %v687 = vld [vmem:[#allocation2 + $0x10d8] sm:$0xff]
    %v688 = vld [vmem:[#allocation2 + $0x10e0] sm:$0xff]
    %v689 = vld [vmem:[#allocation2 + $0x10e8] sm:$0xff]
    %v690 = vld [vmem:[#allocation2 + $0x10f0] sm:$0xff]
    %v691 = vld [vmem:[#allocation2 + $0x10f8] sm:$0xff]
    %v692 = vld [vmem:[#allocation2 + $0x1100] sm:$0xff]
    %v693 = vld [vmem:[#allocation2 + $0x1108] sm:$0xff]
    %v694 = vld [vmem:[#allocation2 + $0x1110] sm:$0xff]
    %v695 = vld [vmem:[#allocation2 + $0x1118] sm:$0xff]
    %v696 = vld [vmem:[#allocation2 + $0x1120] sm:$0xff]
    %v697 = vld [vmem:[#allocation2 + $0x1128] sm:$0xff]
    %v698 = vld [vmem:[#allocation2 + $0x1130] sm:$0xff]
    %v699 = vld [vmem:[#allocation2 + $0x1138] sm:$0xff]
    %v700 = vld [vmem:[#allocation2 + $0x1140] sm:$0xff]
    %v701 = vld [vmem:[#allocation2 + $0x1148] sm:$0xff]
    %v702 = vld [vmem:[#allocation2 + $0x1150] sm:$0xff]
    %v703 = vld [vmem:[#allocation2 + $0x1158] sm:$0xff]
    %v704 = vld [vmem:[#allocation2 + $0x1160] sm:$0xff]
    %v705 = vld [vmem:[#allocation2 + $0x1168] sm:$0xff]
    %v706 = vld [vmem:[#allocation2 + $0x1170] sm:$0xff]
    %v707 = vld [vmem:[#allocation2 + $0x1178] sm:$0xff]
    %v708 = vld [vmem:[#allocation2 + $0x1180] sm:$0xff]
    %v709 = vld [vmem:[#allocation2 + $0x1188] sm:$0xff]
    %v710 = vld [vmem:[#allocation2 + $0x1190] sm:$0xff]
    %v711 = vld [vmem:[#allocation2 + $0x1198] sm:$0xff]
    %v712 = vld [vmem:[#allocation2 + $0x11a0] sm:$0xff]
    %v713 = vld [vmem:[#allocation2 + $0x11a8] sm:$0xff]
    %v714 = vld [vmem:[#allocation2 + $0x11b0] sm:$0xff]
    %v715 = vld [vmem:[#allocation2 + $0x11b8] sm:$0xff]
    %v716 = vld [vmem:[#allocation2 + $0x11c0] sm:$0xff]
    %v717 = vld [vmem:[#allocation2 + $0x11c8] sm:$0xff]
    %v718 = vld [vmem:[#allocation2 + $0x11d0] sm:$0xff]
    %v719 = vld [vmem:[#allocation2 + $0x11d8] sm:$0xff]
    %v720 = vld [vmem:[#allocation2 + $0x11e0] sm:$0xff]
    %v721 = vld [vmem:[#allocation2 + $0x11e8] sm:$0xff]
    %v722 = vld [vmem:[#allocation2 + $0x11f0] sm:$0xff]
    %v723 = vld [vmem:[#allocation2 + $0x11f8] sm:$0xff]
    %v724 = vld [vmem:[#allocation2 + $0x1200] sm:$0xff]
    %v725 = vld [vmem:[#allocation2 + $0x1208] sm:$0xff]
    %v726 = vld [vmem:[#allocation2 + $0x1210] sm:$0xff]
    %v727 = vld [vmem:[#allocation2 + $0x1218] sm:$0xff]
    %v728 = vld [vmem:[#allocation2 + $0x1220] sm:$0xff]
    %v729 = vld [vmem:[#allocation2 + $0x1228] sm:$0xff]
    %v730 = vld [vmem:[#allocation2 + $0x1230] sm:$0xff]
    %v731 = vld [vmem:[#allocation2 + $0x1238] sm:$0xff]
    %v732 = vld [vmem:[#allocation2 + $0x1240] sm:$0xff]
    %v733 = vld [vmem:[#allocation2 + $0x1248] sm:$0xff]
    %v734 = vld [vmem:[#allocation2 + $0x1250] sm:$0xff]
    %v735 = vld [vmem:[#allocation2 + $0x1258] sm:$0xff]
    %v736 = vld [vmem:[#allocation2 + $0x1260] sm:$0xff]
    %v737 = vld [vmem:[#allocation2 + $0x1268] sm:$0xff]
    %v738 = vld [vmem:[#allocation2 + $0x1270] sm:$0xff]
    %v739 = vld [vmem:[#allocation2 + $0x1278] sm:$0xff]
    %v740 = vld [vmem:[#allocation2 + $0x1280] sm:$0xff]
    %v741 = vld [vmem:[#allocation2 + $0x1288] sm:$0xff]
    %v742 = vld [vmem:[#allocation2 + $0x1290] sm:$0xff]
    %v743 = vld [vmem:[#allocation2 + $0x1298] sm:$0xff]
    %v744 = vld [vmem:[#allocation2 + $0x12a0] sm:$0xff]
    %v745 = vld [vmem:[#allocation2 + $0x12a8] sm:$0xff]
    %v746 = vld [vmem:[#allocation2 + $0x12b0] sm:$0xff]
    %v747 = vld [vmem:[#allocation2 + $0x12b8] sm:$0xff]
    %v748 = vld [vmem:[#allocation2 + $0x12c0] sm:$0xff]
    %v749 = vld [vmem:[#allocation2 + $0x12c8] sm:$0xff]
    %v750 = vld [vmem:[#allocation2 + $0x12d0] sm:$0xff]
    %v751 = vld [vmem:[#allocation2 + $0x12d8] sm:$0xff]
    %v752 = vld [vmem:[#allocation2 + $0x12e0] sm:$0xff]
    %v753 = vld [vmem:[#allocation2 + $0x12e8] sm:$0xff]
    %v754 = vld [vmem:[#allocation2 + $0x12f0] sm:$0xff]
    %v755 = vld [vmem:[#allocation2 + $0x12f8] sm:$0xff]
    %v756 = vld [vmem:[#allocation2 + $0x1300] sm:$0xff]
    %v757 = vld [vmem:[#allocation2 + $0x1308] sm:$0xff]
    %v758 = vld [vmem:[#allocation2 + $0x1310] sm:$0xff]
    %v759 = vld [vmem:[#allocation2 + $0x1318] sm:$0xff]
    %v760 = vld [vmem:[#allocation2 + $0x1320] sm:$0xff]
    %v761 = vld [vmem:[#allocation2 + $0x1328] sm:$0xff]
    %v762 = vld [vmem:[#allocation2 + $0x1330] sm:$0xff]
    %v763 = vld [vmem:[#allocation2 + $0x1338] sm:$0xff]
    %v764 = vld [vmem:[#allocation2 + $0x1340] sm:$0xff]
    %v765 = vld [vmem:[#allocation2 + $0x1348] sm:$0xff]
    %v766 = vld [vmem:[#allocation2 + $0x1350] sm:$0xff]
    %v767 = vld [vmem:[#allocation2 + $0x1358] sm:$0xff]
    %v768 = vld [vmem:[#allocation2 + $0x1360] sm:$0xff]
    %v769 = vld [vmem:[#allocation2 + $0x1368] sm:$0xff]
    %v770 = vld [vmem:[#allocation2 + $0x1370] sm:$0xff]
    %v771 = vld [vmem:[#allocation2 + $0x1378] sm:$0xff]
    %v772 = vld [vmem:[#allocation2 + $0x1380] sm:$0xff]
    %v773 = vld [vmem:[#allocation2 + $0x1388] sm:$0xff]
    %v774 = vld [vmem:[#allocation2 + $0x1390] sm:$0xff]
    %v775 = vld [vmem:[#allocation2 + $0x1398] sm:$0xff]
    %v776 = vld [vmem:[#allocation2 + $0x13a0] sm:$0xff]
    %v777 = vld [vmem:[#allocation2 + $0x13a8] sm:$0xff]
    %v778 = vld [vmem:[#allocation2 + $0x13b0] sm:$0xff]
    %v779 = vld [vmem:[#allocation2 + $0x13b8] sm:$0xff]
    %v780 = vld [vmem:[#allocation2 + $0x13c0] sm:$0xff]
    %v781 = vld [vmem:[#allocation2 + $0x13c8] sm:$0xff]
    %v782 = vld [vmem:[#allocation2 + $0x13d0] sm:$0xff]
    %v783 = vld [vmem:[#allocation2 + $0x13d8] sm:$0xff]
    %v784 = vld [vmem:[#allocation2 + $0x13e0] sm:$0xff]
    %v785 = vld [vmem:[#allocation2 + $0x13e8] sm:$0xff]
    %v786 = vld [vmem:[#allocation2 + $0x13f0] sm:$0xff]
    %v787 = vld [vmem:[#allocation2 + $0x13f8] sm:$0xff]
    %v788 = vld [vmem:[#allocation2 + $0x1400] sm:$0xff]
    %v789 = vld [vmem:[#allocation2 + $0x1408] sm:$0xff]
    %v790 = vld [vmem:[#allocation2 + $0x1410] sm:$0xff]
    %v791 = vld [vmem:[#allocation2 + $0x1418] sm:$0xff]
    %v792 = vld [vmem:[#allocation2 + $0x1420] sm:$0xff]
    %v793 = vld [vmem:[#allocation2 + $0x1428] sm:$0xff]
    %v794 = vld [vmem:[#allocation2 + $0x1430] sm:$0xff]
    %v795 = vld [vmem:[#allocation2 + $0x1438] sm:$0xff]
    %v796 = vld [vmem:[#allocation2 + $0x1440] sm:$0xff]
    %v797 = vld [vmem:[#allocation2 + $0x1448] sm:$0xff]
    %v798 = vld [vmem:[#allocation2 + $0x1450] sm:$0xff]
    %v799 = vld [vmem:[#allocation2 + $0x1458] sm:$0xff]
    %v800 = vld [vmem:[#allocation2 + $0x1460] sm:$0xff]
    %v801 = vld [vmem:[#allocation2 + $0x1468] sm:$0xff]
    %v802 = vld [vmem:[#allocation2 + $0x1470] sm:$0xff]
    %v803 = vld [vmem:[#allocation2 + $0x1478] sm:$0xff]
    %v804 = vld [vmem:[#allocation2 + $0x1480] sm:$0xff]
    %v805 = vld [vmem:[#allocation2 + $0x1488] sm:$0xff]
    %v806 = vld [vmem:[#allocation2 + $0x1490] sm:$0xff]
    %v807 = vld [vmem:[#allocation2 + $0x1498] sm:$0xff]
    %v808 = vld [vmem:[#allocation2 + $0x14a0] sm:$0xff]
    %v809 = vld [vmem:[#allocation2 + $0x14a8] sm:$0xff]
    %v810 = vld [vmem:[#allocation2 + $0x14b0] sm:$0xff]
    %v811 = vld [vmem:[#allocation2 + $0x14b8] sm:$0xff]
    %v812 = vld [vmem:[#allocation2 + $0x14c0] sm:$0xff]
    %v813 = vld [vmem:[#allocation2 + $0x14c8] sm:$0xff]
    %v814 = vld [vmem:[#allocation2 + $0x14d0] sm:$0xff]
    %v815 = vld [vmem:[#allocation2 + $0x14d8] sm:$0xff]
    %v816 = vld [vmem:[#allocation2 + $0x14e0] sm:$0xff]
    %v817 = vld [vmem:[#allocation2 + $0x14e8] sm:$0xff]
    %v818 = vld [vmem:[#allocation2 + $0x14f0] sm:$0xff]
    %v819 = vld [vmem:[#allocation2 + $0x14f8] sm:$0xff]
    %v820 = vld [vmem:[#allocation2 + $0x1500] sm:$0xff]
    %v821 = vld [vmem:[#allocation2 + $0x1508] sm:$0xff]
    %v822 = vld [vmem:[#allocation2 + $0x1510] sm:$0xff]
    %v823 = vld [vmem:[#allocation2 + $0x1518] sm:$0xff]
    %v824 = vld [vmem:[#allocation2 + $0x1520] sm:$0xff]
    %v825 = vld [vmem:[#allocation2 + $0x1528] sm:$0xff]
    %v826 = vld [vmem:[#allocation2 + $0x1530] sm:$0xff]
    %v827 = vld [vmem:[#allocation2 + $0x1538] sm:$0xff]
    %v828 = vld [vmem:[#allocation2 + $0x1540] sm:$0xff]
    %v829 = vld [vmem:[#allocation2 + $0x1548] sm:$0xff]
    %v830 = vld [vmem:[#allocation2 + $0x1550] sm:$0xff]
    %v831 = vld [vmem:[#allocation2 + $0x1558] sm:$0xff]
    %v832 = vld [vmem:[#allocation2 + $0x1560] sm:$0xff]
    %v833 = vld [vmem:[#allocation2 + $0x1568] sm:$0xff]
    %v834 = vld [vmem:[#allocation2 + $0x1570] sm:$0xff]
    %v835 = vld [vmem:[#allocation2 + $0x1578] sm:$0xff]
    %v836 = vld [vmem:[#allocation2 + $0x1580] sm:$0xff]
    %v837 = vld [vmem:[#allocation2 + $0x1588] sm:$0xff]
    %v838 = vld [vmem:[#allocation2 + $0x1590] sm:$0xff]
    %v839 = vld [vmem:[#allocation2 + $0x1598] sm:$0xff]
    %v840 = vld [vmem:[#allocation2 + $0x15a0] sm:$0xff]
    %v841 = vld [vmem:[#allocation2 + $0x15a8] sm:$0xff]
    %v842 = vld [vmem:[#allocation2 + $0x15b0] sm:$0xff]
    %v843 = vld [vmem:[#allocation2 + $0x15b8] sm:$0xff]
    %v844 = vld [vmem:[#allocation2 + $0x15c0] sm:$0xff]
    %v845 = vld [vmem:[#allocation2 + $0x15c8] sm:$0xff]
    %v846 = vld [vmem:[#allocation2 + $0x15d0] sm:$0xff]
    %v847 = vld [vmem:[#allocation2 + $0x15d8] sm:$0xff]
    %v848 = vld [vmem:[#allocation2 + $0x15e0] sm:$0xff]
    %v849 = vld [vmem:[#allocation2 + $0x15e8] sm:$0xff]
    %v850 = vld [vmem:[#allocation2 + $0x15f0] sm:$0xff]
    %v851 = vld [vmem:[#allocation2 + $0x15f8] sm:$0xff]
    %v852 = vld [vmem:[#allocation2 + $0x1600] sm:$0xff]
    %v853 = vld [vmem:[#allocation2 + $0x1608] sm:$0xff]
    %v854 = vld [vmem:[#allocation2 + $0x1610] sm:$0xff]
    %v855 = vld [vmem:[#allocation2 + $0x1618] sm:$0xff]
    %v856 = vld [vmem:[#allocation2 + $0x1620] sm:$0xff]
    %v857 = vld [vmem:[#allocation2 + $0x1628] sm:$0xff]
    %v858 = vld [vmem:[#allocation2 + $0x1630] sm:$0xff]
    %v859 = vld [vmem:[#allocation2 + $0x1638] sm:$0xff]
    %v860 = vld [vmem:[#allocation2 + $0x1640] sm:$0xff]
    %v861 = vld [vmem:[#allocation2 + $0x1648] sm:$0xff]
    %v862 = vld [vmem:[#allocation2 + $0x1650] sm:$0xff]
    %v863 = vld [vmem:[#allocation2 + $0x1658] sm:$0xff]
    %v864 = vld [vmem:[#allocation2 + $0x1660] sm:$0xff]
    %v865 = vld [vmem:[#allocation2 + $0x1668] sm:$0xff]
    %v866 = vld [vmem:[#allocation2 + $0x1670] sm:$0xff]
    %v867 = vld [vmem:[#allocation2 + $0x1678] sm:$0xff]
    %v868 = vld [vmem:[#allocation2 + $0x1680] sm:$0xff]
    %v869 = vld [vmem:[#allocation2 + $0x1688] sm:$0xff]
    %v870 = vld [vmem:[#allocation2 + $0x1690] sm:$0xff]
    %v871 = vld [vmem:[#allocation2 + $0x1698] sm:$0xff]
    %v872 = vld [vmem:[#allocation2 + $0x16a0] sm:$0xff]
    %v873 = vld [vmem:[#allocation2 + $0x16a8] sm:$0xff]
    %v874 = vld [vmem:[#allocation2 + $0x16b0] sm:$0xff]
    %v875 = vld [vmem:[#allocation2 + $0x16b8] sm:$0xff]
    %v876 = vld [vmem:[#allocation2 + $0x16c0] sm:$0xff]
    %v877 = vld [vmem:[#allocation2 + $0x16c8] sm:$0xff]
    %v878 = vld [vmem:[#allocation2 + $0x16d0] sm:$0xff]
    %v879 = vld [vmem:[#allocation2 + $0x16d8] sm:$0xff]
    %v880 = vld [vmem:[#allocation2 + $0x16e0] sm:$0xff]
    %v881 = vld [vmem:[#allocation2 + $0x16e8] sm:$0xff]
    %v882 = vld [vmem:[#allocation2 + $0x16f0] sm:$0xff]
    %v883 = vld [vmem:[#allocation2 + $0x16f8] sm:$0xff]
    %v884 = vld [vmem:[#allocation2 + $0x1700] sm:$0xff]
    %v885 = vld [vmem:[#allocation2 + $0x1708] sm:$0xff]
    %v886 = vld [vmem:[#allocation2 + $0x1710] sm:$0xff]
    %v887 = vld [vmem:[#allocation2 + $0x1718] sm:$0xff]
    %v888 = vld [vmem:[#allocation2 + $0x1720] sm:$0xff]
    %v889 = vld [vmem:[#allocation2 + $0x1728] sm:$0xff]
    %v890 = vld [vmem:[#allocation2 + $0x1730] sm:$0xff]
    %v891 = vld [vmem:[#allocation2 + $0x1738] sm:$0xff]
    %v892 = vld [vmem:[#allocation2 + $0x1740] sm:$0xff]
    %v893 = vld [vmem:[#allocation2 + $0x1748] sm:$0xff]
    %v894 = vld [vmem:[#allocation2 + $0x1750] sm:$0xff]
    %v895 = vld [vmem:[#allocation2 + $0x1758] sm:$0xff]
    %v896 = vld [vmem:[#allocation2 + $0x1760] sm:$0xff]
    %v897 = vld [vmem:[#allocation2 + $0x1768] sm:$0xff]
    %v898 = vld [vmem:[#allocation2 + $0x1770] sm:$0xff]
    %v899 = vld [vmem:[#allocation2 + $0x1778] sm:$0xff]
    %v900 = vld [vmem:[#allocation2 + $0x1780] sm:$0xff]
    %v901 = vld [vmem:[#allocation2 + $0x1788] sm:$0xff]
    %v902 = vld [vmem:[#allocation2 + $0x1790] sm:$0xff]
    %v903 = vld [vmem:[#allocation2 + $0x1798] sm:$0xff]
    %v904 = vld [vmem:[#allocation2 + $0x17a0] sm:$0xff]
    %v905 = vld [vmem:[#allocation2 + $0x17a8] sm:$0xff]
    %v906 = vld [vmem:[#allocation2 + $0x17b0] sm:$0xff]
    %v907 = vld [vmem:[#allocation2 + $0x17b8] sm:$0xff]
    %v908 = vld [vmem:[#allocation2 + $0x17c0] sm:$0xff]
    %v909 = vld [vmem:[#allocation2 + $0x17c8] sm:$0xff]
    %v910 = vld [vmem:[#allocation2 + $0x17d0] sm:$0xff]
    %v911 = vld [vmem:[#allocation2 + $0x17d8] sm:$0xff]
    %v912 = vld [vmem:[#allocation2 + $0x17e0] sm:$0xff]
    %v913 = vld [vmem:[#allocation2 + $0x17e8] sm:$0xff]
    %v914 = vld [vmem:[#allocation2 + $0x17f0] sm:$0xff]
    %v915 = vld [vmem:[#allocation2 + $0x17f8] sm:$0xff]
    %v916 = vld [vmem:[#allocation2 + $0x1800] sm:$0xff]
    %v917 = vld [vmem:[#allocation2 + $0x1808] sm:$0xff]
    %v918 = vld [vmem:[#allocation2 + $0x1810] sm:$0xff]
    %v919 = vld [vmem:[#allocation2 + $0x1818] sm:$0xff]
    %v920 = vld [vmem:[#allocation2 + $0x1820] sm:$0xff]
    %v921 = vld [vmem:[#allocation2 + $0x1828] sm:$0xff]
    %v922 = vld [vmem:[#allocation2 + $0x1830] sm:$0xff]
    %v923 = vld [vmem:[#allocation2 + $0x1838] sm:$0xff]
    %v924 = vld [vmem:[#allocation2 + $0x1840] sm:$0xff]
    %v925 = vld [vmem:[#allocation2 + $0x1848] sm:$0xff]
    %v926 = vld [vmem:[#allocation2 + $0x1850] sm:$0xff]
    %v927 = vld [vmem:[#allocation2 + $0x1858] sm:$0xff]
    %v928 = vld [vmem:[#allocation2 + $0x1860] sm:$0xff]
    %v929 = vld [vmem:[#allocation2 + $0x1868] sm:$0xff]
    %v930 = vld [vmem:[#allocation2 + $0x1870] sm:$0xff]
    %v931 = vld [vmem:[#allocation2 + $0x1878] sm:$0xff]
    %v932 = vld [vmem:[#allocation2 + $0x1880] sm:$0xff]
    %v933 = vld [vmem:[#allocation2 + $0x1888] sm:$0xff]
    %v934 = vld [vmem:[#allocation2 + $0x1890] sm:$0xff]
    %v935 = vld [vmem:[#allocation2 + $0x1898] sm:$0xff]
    %v936 = vld [vmem:[#allocation2 + $0x18a0] sm:$0xff]
    %v937 = vld [vmem:[#allocation2 + $0x18a8] sm:$0xff]
    %v938 = vld [vmem:[#allocation2 + $0x18b0] sm:$0xff]
    %v939 = vld [vmem:[#allocation2 + $0x18b8] sm:$0xff]
    %v940 = vld [vmem:[#allocation2 + $0x18c0] sm:$0xff]
    %v941 = vld [vmem:[#allocation2 + $0x18c8] sm:$0xff]
    %v942 = vld [vmem:[#allocation2 + $0x18d0] sm:$0xff]
    %v943 = vld [vmem:[#allocation2 + $0x18d8] sm:$0xff]
    %v944 = vld [vmem:[#allocation2 + $0x18e0] sm:$0xff]
    %v945 = vld [vmem:[#allocation2 + $0x18e8] sm:$0xff]
    %v946 = vld [vmem:[#allocation2 + $0x18f0] sm:$0xff]
    %v947 = vld [vmem:[#allocation2 + $0x18f8] sm:$0xff]
    %v948 = vld [vmem:[#allocation2 + $0x1900] sm:$0xff]
    %v949 = vld [vmem:[#allocation2 + $0x1908] sm:$0xff]
    %v950 = vld [vmem:[#allocation2 + $0x1910] sm:$0xff]
    %v951 = vld [vmem:[#allocation2 + $0x1918] sm:$0xff]
    %v952 = vld [vmem:[#allocation2 + $0x1920] sm:$0xff]
    %v953 = vld [vmem:[#allocation2 + $0x1928] sm:$0xff]
    %v954 = vld [vmem:[#allocation2 + $0x1930] sm:$0xff]
    %v955 = vld [vmem:[#allocation2 + $0x1938] sm:$0xff]
    %v956 = vld [vmem:[#allocation2 + $0x1940] sm:$0xff]
    %v957 = vld [vmem:[#allocation2 + $0x1948] sm:$0xff]
    %v958 = vld [vmem:[#allocation2 + $0x1950] sm:$0xff]
    %v959 = vld [vmem:[#allocation2 + $0x1958] sm:$0xff]
    %v960 = vld [vmem:[#allocation2 + $0x1960] sm:$0xff]
    %v961 = vld [vmem:[#allocation2 + $0x1968] sm:$0xff]
    %v962 = vld [vmem:[#allocation2 + $0x1970] sm:$0xff]
    %v963 = vld [vmem:[#allocation2 + $0x1978] sm:$0xff]
    %v964 = vld [vmem:[#allocation2 + $0x1980] sm:$0xff]
    %v965 = vld [vmem:[#allocation2 + $0x1988] sm:$0xff]
    %v966 = vld [vmem:[#allocation2 + $0x1990] sm:$0xff]
    %v967 = vld [vmem:[#allocation2 + $0x1998] sm:$0xff]
    %v968 = vld [vmem:[#allocation2 + $0x19a0] sm:$0xff]
    %v969 = vld [vmem:[#allocation2 + $0x19a8] sm:$0xff]
    %v970 = vld [vmem:[#allocation2 + $0x19b0] sm:$0xff]
    %v971 = vld [vmem:[#allocation2 + $0x19b8] sm:$0xff]
    %v972 = vld [vmem:[#allocation2 + $0x19c0] sm:$0xff]
    %v973 = vld [vmem:[#allocation2 + $0x19c8] sm:$0xff]
    %v974 = vld [vmem:[#allocation2 + $0x19d0] sm:$0xff]
    %v975 = vld [vmem:[#allocation2 + $0x19d8] sm:$0xff]
    %v976 = vld [vmem:[#allocation2 + $0x19e0] sm:$0xff]
    %v977 = vld [vmem:[#allocation2 + $0x19e8] sm:$0xff]
    %v978 = vld [vmem:[#allocation2 + $0x19f0] sm:$0xff]
    %v979 = vld [vmem:[#allocation2 + $0x19f8] sm:$0xff]
    %v980 = vld [vmem:[#allocation2 + $0x1a00] sm:$0xff]
    %v981 = vld [vmem:[#allocation2 + $0x1a08] sm:$0xff]
    %v982 = vld [vmem:[#allocation2 + $0x1a10] sm:$0xff]
    %v983 = vld [vmem:[#allocation2 + $0x1a18] sm:$0xff]
    %v984 = vld [vmem:[#allocation2 + $0x1a20] sm:$0xff]
    %v985 = vld [vmem:[#allocation2 + $0x1a28] sm:$0xff]
    %v986 = vld [vmem:[#allocation2 + $0x1a30] sm:$0xff]
    %v987 = vld [vmem:[#allocation2 + $0x1a38] sm:$0xff]
    %v988 = vld [vmem:[#allocation2 + $0x1a40] sm:$0xff]
    %v989 = vld [vmem:[#allocation2 + $0x1a48] sm:$0xff]
    %v990 = vld [vmem:[#allocation2 + $0x1a50] sm:$0xff]
    %v991 = vld [vmem:[#allocation2 + $0x1a58] sm:$0xff]
    %v992 = vld [vmem:[#allocation2 + $0x1a60] sm:$0xff]
    %v993 = vld [vmem:[#allocation2 + $0x1a68] sm:$0xff]
    %v994 = vld [vmem:[#allocation2 + $0x1a70] sm:$0xff]
    %v995 = vld [vmem:[#allocation2 + $0x1a78] sm:$0xff]
    %v996 = vld [vmem:[#allocation2 + $0x1a80] sm:$0xff]
    %v997 = vld [vmem:[#allocation2 + $0x1a88] sm:$0xff]
    %v998 = vld [vmem:[#allocation2 + $0x1a90] sm:$0xff]
    %v999 = vld [vmem:[#allocation2 + $0x1a98] sm:$0xff]
    %v1000 = vld [vmem:[#allocation2 + $0x1aa0] sm:$0xff]
    %v1001 = vld [vmem:[#allocation2 + $0x1aa8] sm:$0xff]
    %v1002 = vld [vmem:[#allocation2 + $0x1ab0] sm:$0xff]
    %v1003 = vld [vmem:[#allocation2 + $0x1ab8] sm:$0xff]
    %v1004 = vld [vmem:[#allocation2 + $0x1ac0] sm:$0xff]
    %v1005 = vld [vmem:[#allocation2 + $0x1ac8] sm:$0xff]
    %v1006 = vld [vmem:[#allocation2 + $0x1ad0] sm:$0xff]
    %v1007 = vld [vmem:[#allocation2 + $0x1ad8] sm:$0xff]
    %v1008 = vld [vmem:[#allocation2 + $0x1ae0] sm:$0xff]
    %v1009 = vld [vmem:[#allocation2 + $0x1ae8] sm:$0xff]
    %v1010 = vld [vmem:[#allocation2 + $0x1af0] sm:$0xff]
    %v1011 = vld [vmem:[#allocation2 + $0x1af8] sm:$0xff]
    %v1012 = vadd.f32 %v148, %v292
    %v1013 = vadd.f32 %v1012, %v436
    %v1014 = vadd.f32 %v149, %v293
    %v1015 = vadd.f32 %v1014, %v437
    %v1016 = vadd.f32 %v150, %v294
    %v1017 = vadd.f32 %v1016, %v438
    %v1018 = vadd.f32 %v151, %v295
    %v1019 = vadd.f32 %v1018, %v439
    %v1020 = vadd.f32 %v152, %v296
    %v1021 = vadd.f32 %v1020, %v440
    %v1022 = vadd.f32 %v153, %v297
    %v1023 = vadd.f32 %v1022, %v441
    %v1024 = vadd.f32 %v154, %v298
    %v1025 = vadd.f32 %v1024, %v442
    %v1026 = vadd.f32 %v155, %v299
    %v1027 = vadd.f32 %v1026, %v443
    %v1028 = vadd.f32 %v156, %v300
    %v1029 = vadd.f32 %v1028, %v444
    %v1030 = vadd.f32 %v157, %v301
    %v1031 = vadd.f32 %v1030, %v445
    %v1032 = vadd.f32 %v158, %v302
    %v1033 = vadd.f32 %v1032, %v446
    %v1034 = vadd.f32 %v159, %v303
    %v1035 = vadd.f32 %v1034, %v447
    %v1036 = vadd.f32 %v160, %v304
    %v1037 = vadd.f32 %v1036, %v448
    %v1038 = vadd.f32 %v161, %v305
    %v1039 = vadd.f32 %v1038, %v449
    %v1040 = vadd.f32 %v162, %v306
    %v1041 = vadd.f32 %v1040, %v450
    %v1042 = vadd.f32 %v163, %v307
    %v1043 = vadd.f32 %v1042, %v451
    %v1044 = vadd.f32 %v164, %v308
    %v1045 = vadd.f32 %v1044, %v452
    %v1046 = vadd.f32 %v165, %v309
    %v1047 = vadd.f32 %v1046, %v453
    %v1048 = vadd.f32 %v166, %v310
    %v1049 = vadd.f32 %v1048, %v454
    %v1050 = vadd.f32 %v167, %v311
    %v1051 = vadd.f32 %v1050, %v455
    %v1052 = vadd.f32 %v168, %v312
    %v1053 = vadd.f32 %v1052, %v456
    %v1054 = vadd.f32 %v169, %v313
    %v1055 = vadd.f32 %v1054, %v457
    %v1056 = vadd.f32 %v170, %v314
    %v1057 = vadd.f32 %v1056, %v458
    %v1058 = vadd.f32 %v171, %v315
    %v1059 = vadd.f32 %v1058, %v459
    %v1060 = vadd.f32 %v172, %v316
    %v1061 = vadd.f32 %v1060, %v460
    %v1062 = vadd.f32 %v173, %v317
    %v1063 = vadd.f32 %v1062, %v461
    %v1064 = vadd.f32 %v174, %v318
    %v1065 = vadd.f32 %v1064, %v462
    %v1066 = vadd.f32 %v175, %v319
    %v1067 = vadd.f32 %v1066, %v463
    %v1068 = vadd.f32 %v176, %v320
    %v1069 = vadd.f32 %v1068, %v464
    %v1070 = vadd.f32 %v177, %v321
    %v1071 = vadd.f32 %v1070, %v465
    %v1072 = vadd.f32 %v178, %v322
    %v1073 = vadd.f32 %v1072, %v466
    %v1074 = vadd.f32 %v179, %v323
    %v1075 = vadd.f32 %v1074, %v467
    %v1076 = vadd.f32 %v180, %v324
    %v1077 = vadd.f32 %v1076, %v468
    %v1078 = vadd.f32 %v181, %v325
    %v1079 = vadd.f32 %v1078, %v469
    %v1080 = vadd.f32 %v182, %v326
    %v1081 = vadd.f32 %v1080, %v470
    %v1082 = vadd.f32 %v183, %v327
    %v1083 = vadd.f32 %v1082, %v471
    %v1084 = vadd.f32 %v184, %v328
    %v1085 = vadd.f32 %v1084, %v472
    %v1086 = vadd.f32 %v185, %v329
    %v1087 = vadd.f32 %v1086, %v473
    %v1088 = vadd.f32 %v186, %v330
    %v1089 = vadd.f32 %v1088, %v474
    %v1090 = vadd.f32 %v187, %v331
    %v1091 = vadd.f32 %v1090, %v475
    %v1092 = vadd.f32 %v188, %v332
    %v1093 = vadd.f32 %v1092, %v476
    %v1094 = vadd.f32 %v189, %v333
    %v1095 = vadd.f32 %v1094, %v477
    %v1096 = vadd.f32 %v190, %v334
    %v1097 = vadd.f32 %v1096, %v478
    %v1098 = vadd.f32 %v191, %v335
    %v1099 = vadd.f32 %v1098, %v479
    %v1100 = vadd.f32 %v192, %v336
    %v1101 = vadd.f32 %v1100, %v480
    %v1102 = vadd.f32 %v193, %v337
    %v1103 = vadd.f32 %v1102, %v481
    %v1104 = vadd.f32 %v194, %v338
    %v1105 = vadd.f32 %v1104, %v482
    %v1106 = vadd.f32 %v195, %v339
    %v1107 = vadd.f32 %v1106, %v483
    %v1108 = vadd.f32 %v196, %v340
    %v1109 = vadd.f32 %v1108, %v484
    %v1110 = vadd.f32 %v197, %v341
    %v1111 = vadd.f32 %v1110, %v485
    %v1112 = vadd.f32 %v198, %v342
    %v1113 = vadd.f32 %v1112, %v486
    %v1114 = vadd.f32 %v199, %v343
    %v1115 = vadd.f32 %v1114, %v487
    %v1116 = vadd.f32 %v200, %v344
    %v1117 = vadd.f32 %v1116, %v488
    %v1118 = vadd.f32 %v201, %v345
    %v1119 = vadd.f32 %v1118, %v489
    %v1120 = vadd.f32 %v202, %v346
    %v1121 = vadd.f32 %v1120, %v490
    %v1122 = vadd.f32 %v203, %v347
    %v1123 = vadd.f32 %v1122, %v491
    %v1124 = vadd.f32 %v204, %v348
    %v1125 = vadd.f32 %v1124, %v492
    %v1126 = vadd.f32 %v205, %v349
    %v1127 = vadd.f32 %v1126, %v493
    %v1128 = vadd.f32 %v206, %v350
    %v1129 = vadd.f32 %v1128, %v494
    %v1130 = vadd.f32 %v207, %v351
    %v1131 = vadd.f32 %v1130, %v495
    %v1132 = vadd.f32 %v208, %v352
    %v1133 = vadd.f32 %v1132, %v496
    %v1134 = vadd.f32 %v209, %v353
    %v1135 = vadd.f32 %v1134, %v497
    %v1136 = vadd.f32 %v210, %v354
    %v1137 = vadd.f32 %v1136, %v498
    %v1138 = vadd.f32 %v211, %v355
    %v1139 = vadd.f32 %v1138, %v499
    %v1140 = vadd.f32 %v212, %v356
    %v1141 = vadd.f32 %v1140, %v500
    %v1142 = vadd.f32 %v213, %v357
    %v1143 = vadd.f32 %v1142, %v501
    %v1144 = vadd.f32 %v214, %v358
    %v1145 = vadd.f32 %v1144, %v502
    %v1146 = vadd.f32 %v215, %v359
    %v1147 = vadd.f32 %v1146, %v503
    %v1148 = vadd.f32 %v216, %v360
    %v1149 = vadd.f32 %v1148, %v504
    %v1150 = vadd.f32 %v217, %v361
    %v1151 = vadd.f32 %v1150, %v505
    %v1152 = vadd.f32 %v218, %v362
    %v1153 = vadd.f32 %v1152, %v506
    %v1154 = vadd.f32 %v219, %v363
    %v1155 = vadd.f32 %v1154, %v507
    %v1156 = vadd.f32 %v220, %v364
    %v1157 = vadd.f32 %v1156, %v508
    %v1158 = vadd.f32 %v221, %v365
    %v1159 = vadd.f32 %v1158, %v509
    %v1160 = vadd.f32 %v222, %v366
    %v1161 = vadd.f32 %v1160, %v510
    %v1162 = vadd.f32 %v223, %v367
    %v1163 = vadd.f32 %v1162, %v511
    %v1164 = vadd.f32 %v224, %v368
    %v1165 = vadd.f32 %v1164, %v512
    %v1166 = vadd.f32 %v225, %v369
    %v1167 = vadd.f32 %v1166, %v513
    %v1168 = vadd.f32 %v226, %v370
    %v1169 = vadd.f32 %v1168, %v514
    %v1170 = vadd.f32 %v227, %v371
    %v1171 = vadd.f32 %v1170, %v515
    %v1172 = vadd.f32 %v228, %v372
    %v1173 = vadd.f32 %v1172, %v516
    %v1174 = vadd.f32 %v229, %v373
    %v1175 = vadd.f32 %v1174, %v517
    %v1176 = vadd.f32 %v230, %v374
    %v1177 = vadd.f32 %v1176, %v518
    %v1178 = vadd.f32 %v231, %v375
    %v1179 = vadd.f32 %v1178, %v519
    %v1180 = vadd.f32 %v232, %v376
    %v1181 = vadd.f32 %v1180, %v520
    %v1182 = vadd.f32 %v233, %v377
    %v1183 = vadd.f32 %v1182, %v521
    %v1184 = vadd.f32 %v234, %v378
    %v1185 = vadd.f32 %v1184, %v522
    %v1186 = vadd.f32 %v235, %v379
    %v1187 = vadd.f32 %v1186, %v523
    %v1188 = vadd.f32 %v236, %v380
    %v1189 = vadd.f32 %v1188, %v524
    %v1190 = vadd.f32 %v237, %v381
    %v1191 = vadd.f32 %v1190, %v525
    %v1192 = vadd.f32 %v238, %v382
    %v1193 = vadd.f32 %v1192, %v526
    %v1194 = vadd.f32 %v239, %v383
    %v1195 = vadd.f32 %v1194, %v527
    %v1196 = vadd.f32 %v240, %v384
    %v1197 = vadd.f32 %v1196, %v528
    %v1198 = vadd.f32 %v241, %v385
    %v1199 = vadd.f32 %v1198, %v529
    %v1200 = vadd.f32 %v242, %v386
    %v1201 = vadd.f32 %v1200, %v530
    %v1202 = vadd.f32 %v243, %v387
    %v1203 = vadd.f32 %v1202, %v531
    %v1204 = vadd.f32 %v244, %v388
    %v1205 = vadd.f32 %v1204, %v532
    %v1206 = vadd.f32 %v245, %v389
    %v1207 = vadd.f32 %v1206, %v533
    %v1208 = vadd.f32 %v246, %v390
    %v1209 = vadd.f32 %v1208, %v534
    %v1210 = vadd.f32 %v247, %v391
    %v1211 = vadd.f32 %v1210, %v535
    %v1212 = vadd.f32 %v248, %v392
    %v1213 = vadd.f32 %v1212, %v536
    %v1214 = vadd.f32 %v249, %v393
    %v1215 = vadd.f32 %v1214, %v537
    %v1216 = vadd.f32 %v250, %v394
    %v1217 = vadd.f32 %v1216, %v538
    %v1218 = vadd.f32 %v251, %v395
    %v1219 = vadd.f32 %v1218, %v539
    %v1220 = vadd.f32 %v252, %v396
    %v1221 = vadd.f32 %v1220, %v540
    %v1222 = vadd.f32 %v253, %v397
    %v1223 = vadd.f32 %v1222, %v541
    %v1224 = vadd.f32 %v254, %v398
    %v1225 = vadd.f32 %v1224, %v542
    %v1226 = vadd.f32 %v255, %v399
    %v1227 = vadd.f32 %v1226, %v543
    %v1228 = vadd.f32 %v256, %v400
    %v1229 = vadd.f32 %v1228, %v544
    %v1230 = vadd.f32 %v257, %v401
    %v1231 = vadd.f32 %v1230, %v545
    %v1232 = vadd.f32 %v258, %v402
    %v1233 = vadd.f32 %v1232, %v546
    %v1234 = vadd.f32 %v259, %v403
    %v1235 = vadd.f32 %v1234, %v547
    %v1236 = vadd.f32 %v260, %v404
    %v1237 = vadd.f32 %v1236, %v548
    %v1238 = vadd.f32 %v261, %v405
    %v1239 = vadd.f32 %v1238, %v549
    %v1240 = vadd.f32 %v262, %v406
    %v1241 = vadd.f32 %v1240, %v550
    %v1242 = vadd.f32 %v263, %v407
    %v1243 = vadd.f32 %v1242, %v551
    %v1244 = vadd.f32 %v264, %v408
    %v1245 = vadd.f32 %v1244, %v552
    %v1246 = vadd.f32 %v265, %v409
    %v1247 = vadd.f32 %v1246, %v553
    %v1248 = vadd.f32 %v266, %v410
    %v1249 = vadd.f32 %v1248, %v554
    %v1250 = vadd.f32 %v267, %v411
    %v1251 = vadd.f32 %v1250, %v555
    %v1252 = vadd.f32 %v268, %v412
    %v1253 = vadd.f32 %v1252, %v556
    %v1254 = vadd.f32 %v269, %v413
    %v1255 = vadd.f32 %v1254, %v557
    %v1256 = vadd.f32 %v270, %v414
    %v1257 = vadd.f32 %v1256, %v558
    %v1258 = vadd.f32 %v271, %v415
    %v1259 = vadd.f32 %v1258, %v559
    %v1260 = vadd.f32 %v272, %v416
    %v1261 = vadd.f32 %v1260, %v560
    %v1262 = vadd.f32 %v273, %v417
    %v1263 = vadd.f32 %v1262, %v561
    %v1264 = vadd.f32 %v274, %v418
    %v1265 = vadd.f32 %v1264, %v562
    %v1266 = vadd.f32 %v275, %v419
    %v1267 = vadd.f32 %v1266, %v563
    %v1268 = vadd.f32 %v276, %v420
    %v1269 = vadd.f32 %v1268, %v564
    %v1270 = vadd.f32 %v277, %v421
    %v1271 = vadd.f32 %v1270, %v565
    %v1272 = vadd.f32 %v278, %v422
    %v1273 = vadd.f32 %v1272, %v566
    %v1274 = vadd.f32 %v279, %v423
    %v1275 = vadd.f32 %v1274, %v567
    %v1276 = vadd.f32 %v280, %v424
    %v1277 = vadd.f32 %v1276, %v568
    %v1278 = vadd.f32 %v281, %v425
    %v1279 = vadd.f32 %v1278, %v569
    %v1280 = vadd.f32 %v282, %v426
    %v1281 = vadd.f32 %v1280, %v570
    %v1282 = vadd.f32 %v283, %v427
    %v1283 = vadd.f32 %v1282, %v571
    %v1284 = vadd.f32 %v284, %v428
    %v1285 = vadd.f32 %v1284, %v572
    %v1286 = vadd.f32 %v285, %v429
    %v1287 = vadd.f32 %v1286, %v573
    %v1288 = vadd.f32 %v286, %v430
    %v1289 = vadd.f32 %v1288, %v574
    %v1290 = vadd.f32 %v287, %v431
    %v1291 = vadd.f32 %v1290, %v575
    %v1292 = vadd.f32 %v288, %v432
    %v1293 = vadd.f32 %v1292, %v576
    %v1294 = vadd.f32 %v289, %v433
    %v1295 = vadd.f32 %v1294, %v577
    %v1296 = vadd.f32 %v290, %v434
    %v1297 = vadd.f32 %v1296, %v578
    %v1298 = vadd.f32 %v291, %v435
    %v1299 = vadd.f32 %v1298, %v579
    %v1300 = vadd.f32 %v580, %v724
    %v1301 = vadd.f32 %v1300, %v868
    %v1302 = vadd.f32 %v581, %v725
    %v1303 = vadd.f32 %v1302, %v869
    %v1304 = vadd.f32 %v582, %v726
    %v1305 = vadd.f32 %v1304, %v870
    %v1306 = vadd.f32 %v583, %v727
    %v1307 = vadd.f32 %v1306, %v871
    %v1308 = vadd.f32 %v584, %v728
    %v1309 = vadd.f32 %v1308, %v872
    %v1310 = vadd.f32 %v585, %v729
    %v1311 = vadd.f32 %v1310, %v873
    %v1312 = vadd.f32 %v586, %v730
    %v1313 = vadd.f32 %v1312, %v874
    %v1314 = vadd.f32 %v587, %v731
    %v1315 = vadd.f32 %v1314, %v875
    %v1316 = vadd.f32 %v588, %v732
    %v1317 = vadd.f32 %v1316, %v876
    %v1318 = vadd.f32 %v589, %v733
    %v1319 = vadd.f32 %v1318, %v877
    %v1320 = vadd.f32 %v590, %v734
    %v1321 = vadd.f32 %v1320, %v878
    %v1322 = vadd.f32 %v591, %v735
    %v1323 = vadd.f32 %v1322, %v879
    %v1324 = vadd.f32 %v592, %v736
    %v1325 = vadd.f32 %v1324, %v880
    %v1326 = vadd.f32 %v593, %v737
    %v1327 = vadd.f32 %v1326, %v881
    %v1328 = vadd.f32 %v594, %v738
    %v1329 = vadd.f32 %v1328, %v882
    %v1330 = vadd.f32 %v595, %v739
    %v1331 = vadd.f32 %v1330, %v883
    %v1332 = vadd.f32 %v596, %v740
    %v1333 = vadd.f32 %v1332, %v884
    %v1334 = vadd.f32 %v597, %v741
    %v1335 = vadd.f32 %v1334, %v885
    %v1336 = vadd.f32 %v598, %v742
    %v1337 = vadd.f32 %v1336, %v886
    %v1338 = vadd.f32 %v599, %v743
    %v1339 = vadd.f32 %v1338, %v887
    %v1340 = vadd.f32 %v600, %v744
    %v1341 = vadd.f32 %v1340, %v888
    %v1342 = vadd.f32 %v601, %v745
    %v1343 = vadd.f32 %v1342, %v889
    %v1344 = vadd.f32 %v602, %v746
    %v1345 = vadd.f32 %v1344, %v890
    %v1346 = vadd.f32 %v603, %v747
    %v1347 = vadd.f32 %v1346, %v891
    %v1348 = vadd.f32 %v604, %v748
    %v1349 = vadd.f32 %v1348, %v892
    %v1350 = vadd.f32 %v605, %v749
    %v1351 = vadd.f32 %v1350, %v893
    %v1352 = vadd.f32 %v606, %v750
    %v1353 = vadd.f32 %v1352, %v894
    %v1354 = vadd.f32 %v607, %v751
    %v1355 = vadd.f32 %v1354, %v895
    %v1356 = vadd.f32 %v608, %v752
    %v1357 = vadd.f32 %v1356, %v896
    %v1358 = vadd.f32 %v609, %v753
    %v1359 = vadd.f32 %v1358, %v897
    %v1360 = vadd.f32 %v610, %v754
    %v1361 = vadd.f32 %v1360, %v898
    %v1362 = vadd.f32 %v611, %v755
    %v1363 = vadd.f32 %v1362, %v899
    %v1364 = vadd.f32 %v612, %v756
    %v1365 = vadd.f32 %v1364, %v900
    %v1366 = vadd.f32 %v613, %v757
    %v1367 = vadd.f32 %v1366, %v901
    %v1368 = vadd.f32 %v614, %v758
    %v1369 = vadd.f32 %v1368, %v902
    %v1370 = vadd.f32 %v615, %v759
    %v1371 = vadd.f32 %v1370, %v903
    %v1372 = vadd.f32 %v616, %v760
    %v1373 = vadd.f32 %v1372, %v904
    %v1374 = vadd.f32 %v617, %v761
    %v1375 = vadd.f32 %v1374, %v905
    %v1376 = vadd.f32 %v618, %v762
    %v1377 = vadd.f32 %v1376, %v906
    %v1378 = vadd.f32 %v619, %v763
    %v1379 = vadd.f32 %v1378, %v907
    %v1380 = vadd.f32 %v620, %v764
    %v1381 = vadd.f32 %v1380, %v908
    %v1382 = vadd.f32 %v621, %v765
    %v1383 = vadd.f32 %v1382, %v909
    %v1384 = vadd.f32 %v622, %v766
    %v1385 = vadd.f32 %v1384, %v910
    %v1386 = vadd.f32 %v623, %v767
    %v1387 = vadd.f32 %v1386, %v911
    %v1388 = vadd.f32 %v624, %v768
    %v1389 = vadd.f32 %v1388, %v912
    %v1390 = vadd.f32 %v625, %v769
    %v1391 = vadd.f32 %v1390, %v913
    %v1392 = vadd.f32 %v626, %v770
    %v1393 = vadd.f32 %v1392, %v914
    %v1394 = vadd.f32 %v627, %v771
    %v1395 = vadd.f32 %v1394, %v915
    %v1396 = vadd.f32 %v628, %v772
    %v1397 = vadd.f32 %v1396, %v916
    %v1398 = vadd.f32 %v629, %v773
    %v1399 = vadd.f32 %v1398, %v917
    %v1400 = vadd.f32 %v630, %v774
    %v1401 = vadd.f32 %v1400, %v918
    %v1402 = vadd.f32 %v631, %v775
    %v1403 = vadd.f32 %v1402, %v919
    %v1404 = vadd.f32 %v632, %v776
    %v1405 = vadd.f32 %v1404, %v920
    %v1406 = vadd.f32 %v633, %v777
    %v1407 = vadd.f32 %v1406, %v921
    %v1408 = vadd.f32 %v634, %v778
    %v1409 = vadd.f32 %v1408, %v922
    %v1410 = vadd.f32 %v635, %v779
    %v1411 = vadd.f32 %v1410, %v923
    %v1412 = vadd.f32 %v636, %v780
    %v1413 = vadd.f32 %v1412, %v924
    %v1414 = vadd.f32 %v637, %v781
    %v1415 = vadd.f32 %v1414, %v925
    %v1416 = vadd.f32 %v638, %v782
    %v1417 = vadd.f32 %v1416, %v926
    %v1418 = vadd.f32 %v639, %v783
    %v1419 = vadd.f32 %v1418, %v927
    %v1420 = vadd.f32 %v640, %v784
    %v1421 = vadd.f32 %v1420, %v928
    %v1422 = vadd.f32 %v641, %v785
    %v1423 = vadd.f32 %v1422, %v929
    %v1424 = vadd.f32 %v642, %v786
    %v1425 = vadd.f32 %v1424, %v930
    %v1426 = vadd.f32 %v643, %v787
    %v1427 = vadd.f32 %v1426, %v931
    %v1428 = vadd.f32 %v644, %v788
    %v1429 = vadd.f32 %v1428, %v932
    %v1430 = vadd.f32 %v645, %v789
    %v1431 = vadd.f32 %v1430, %v933
    %v1432 = vadd.f32 %v646, %v790
    %v1433 = vadd.f32 %v1432, %v934
    %v1434 = vadd.f32 %v647, %v791
    %v1435 = vadd.f32 %v1434, %v935
    %v1436 = vadd.f32 %v648, %v792
    %v1437 = vadd.f32 %v1436, %v936
    %v1438 = vadd.f32 %v649, %v793
    %v1439 = vadd.f32 %v1438, %v937
    %v1440 = vadd.f32 %v650, %v794
    %v1441 = vadd.f32 %v1440, %v938
    %v1442 = vadd.f32 %v651, %v795
    %v1443 = vadd.f32 %v1442, %v939
    %v1444 = vadd.f32 %v652, %v796
    %v1445 = vadd.f32 %v1444, %v940
    %v1446 = vadd.f32 %v653, %v797
    %v1447 = vadd.f32 %v1446, %v941
    %v1448 = vadd.f32 %v654, %v798
    %v1449 = vadd.f32 %v1448, %v942
    %v1450 = vadd.f32 %v655, %v799
    %v1451 = vadd.f32 %v1450, %v943
    %v1452 = vadd.f32 %v656, %v800
    %v1453 = vadd.f32 %v1452, %v944
    %v1454 = vadd.f32 %v657, %v801
    %v1455 = vadd.f32 %v1454, %v945
    %v1456 = vadd.f32 %v658, %v802
    %v1457 = vadd.f32 %v1456, %v946
    %v1458 = vadd.f32 %v659, %v803
    %v1459 = vadd.f32 %v1458, %v947
    %v1460 = vadd.f32 %v660, %v804
    %v1461 = vadd.f32 %v1460, %v948
    %v1462 = vadd.f32 %v661, %v805
    %v1463 = vadd.f32 %v1462, %v949
    %v1464 = vadd.f32 %v662, %v806
    %v1465 = vadd.f32 %v1464, %v950
    %v1466 = vadd.f32 %v663, %v807
    %v1467 = vadd.f32 %v1466, %v951
    %v1468 = vadd.f32 %v664, %v808
    %v1469 = vadd.f32 %v1468, %v952
    %v1470 = vadd.f32 %v665, %v809
    %v1471 = vadd.f32 %v1470, %v953
    %v1472 = vadd.f32 %v666, %v810
    %v1473 = vadd.f32 %v1472, %v954
    %v1474 = vadd.f32 %v667, %v811
    %v1475 = vadd.f32 %v1474, %v955
    %v1476 = vadd.f32 %v668, %v812
    %v1477 = vadd.f32 %v1476, %v956
    %v1478 = vadd.f32 %v669, %v813
    %v1479 = vadd.f32 %v1478, %v957
    %v1480 = vadd.f32 %v670, %v814
    %v1481 = vadd.f32 %v1480, %v958
    %v1482 = vadd.f32 %v671, %v815
    %v1483 = vadd.f32 %v1482, %v959
    %v1484 = vadd.f32 %v672, %v816
    %v1485 = vadd.f32 %v1484, %v960
    %v1486 = vadd.f32 %v673, %v817
    %v1487 = vadd.f32 %v1486, %v961
    %v1488 = vadd.f32 %v674, %v818
    %v1489 = vadd.f32 %v1488, %v962
    %v1490 = vadd.f32 %v675, %v819
    %v1491 = vadd.f32 %v1490, %v963
    %v1492 = vadd.f32 %v676, %v820
    %v1493 = vadd.f32 %v1492, %v964
    %v1494 = vadd.f32 %v677, %v821
    %v1495 = vadd.f32 %v1494, %v965
    %v1496 = vadd.f32 %v678, %v822
    %v1497 = vadd.f32 %v1496, %v966
    %v1498 = vadd.f32 %v679, %v823
    %v1499 = vadd.f32 %v1498, %v967
    %v1500 = vadd.f32 %v680, %v824
    %v1501 = vadd.f32 %v1500, %v968
    %v1502 = vadd.f32 %v681, %v825
    %v1503 = vadd.f32 %v1502, %v969
    %v1504 = vadd.f32 %v682, %v826
    %v1505 = vadd.f32 %v1504, %v970
    %v1506 = vadd.f32 %v683, %v827
    %v1507 = vadd.f32 %v1506, %v971
    %v1508 = vadd.f32 %v684, %v828
    %v1509 = vadd.f32 %v1508, %v972
    %v1510 = vadd.f32 %v685, %v829
    %v1511 = vadd.f32 %v1510, %v973
    %v1512 = vadd.f32 %v686, %v830
    %v1513 = vadd.f32 %v1512, %v974
    %v1514 = vadd.f32 %v687, %v831
    %v1515 = vadd.f32 %v1514, %v975
    %v1516 = vadd.f32 %v688, %v832
    %v1517 = vadd.f32 %v1516, %v976
    %v1518 = vadd.f32 %v689, %v833
    %v1519 = vadd.f32 %v1518, %v977
    %v1520 = vadd.f32 %v690, %v834
    %v1521 = vadd.f32 %v1520, %v978
    %v1522 = vadd.f32 %v691, %v835
    %v1523 = vadd.f32 %v1522, %v979
    %v1524 = vadd.f32 %v692, %v836
    %v1525 = vadd.f32 %v1524, %v980
    %v1526 = vadd.f32 %v693, %v837
    %v1527 = vadd.f32 %v1526, %v981
    %v1528 = vadd.f32 %v694, %v838
    %v1529 = vadd.f32 %v1528, %v982
    %v1530 = vadd.f32 %v695, %v839
    %v1531 = vadd.f32 %v1530, %v983
    %v1532 = vadd.f32 %v696, %v840
    %v1533 = vadd.f32 %v1532, %v984
    %v1534 = vadd.f32 %v697, %v841
    %v1535 = vadd.f32 %v1534, %v985
    %v1536 = vadd.f32 %v698, %v842
    %v1537 = vadd.f32 %v1536, %v986
    %v1538 = vadd.f32 %v699, %v843
    %v1539 = vadd.f32 %v1538, %v987
    %v1540 = vadd.f32 %v700, %v844
    %v1541 = vadd.f32 %v1540, %v988
    %v1542 = vadd.f32 %v701, %v845
    %v1543 = vadd.f32 %v1542, %v989
    %v1544 = vadd.f32 %v702, %v846
    %v1545 = vadd.f32 %v1544, %v990
    %v1546 = vadd.f32 %v703, %v847
    %v1547 = vadd.f32 %v1546, %v991
    %v1548 = vadd.f32 %v704, %v848
    %v1549 = vadd.f32 %v1548, %v992
    %v1550 = vadd.f32 %v705, %v849
    %v1551 = vadd.f32 %v1550, %v993
    %v1552 = vadd.f32 %v706, %v850
    %v1553 = vadd.f32 %v1552, %v994
    %v1554 = vadd.f32 %v707, %v851
    %v1555 = vadd.f32 %v1554, %v995
    %v1556 = vadd.f32 %v708, %v852
    %v1557 = vadd.f32 %v1556, %v996
    %v1558 = vadd.f32 %v709, %v853
    %v1559 = vadd.f32 %v1558, %v997
    %v1560 = vadd.f32 %v710, %v854
    %v1561 = vadd.f32 %v1560, %v998
    %v1562 = vadd.f32 %v711, %v855
    %v1563 = vadd.f32 %v1562, %v999
    %v1564 = vadd.f32 %v712, %v856
    %v1565 = vadd.f32 %v1564, %v1000
    %v1566 = vadd.f32 %v713, %v857
    %v1567 = vadd.f32 %v1566, %v1001
    %v1568 = vadd.f32 %v714, %v858
    %v1569 = vadd.f32 %v1568, %v1002
    %v1570 = vadd.f32 %v715, %v859
    %v1571 = vadd.f32 %v1570, %v1003
    %v1572 = vadd.f32 %v716, %v860
    %v1573 = vadd.f32 %v1572, %v1004
    %v1574 = vadd.f32 %v717, %v861
    %v1575 = vadd.f32 %v1574, %v1005
    %v1576 = vadd.f32 %v718, %v862
    %v1577 = vadd.f32 %v1576, %v1006
    %v1578 = vadd.f32 %v719, %v863
    %v1579 = vadd.f32 %v1578, %v1007
    %v1580 = vadd.f32 %v720, %v864
    %v1581 = vadd.f32 %v1580, %v1008
    %v1582 = vadd.f32 %v721, %v865
    %v1583 = vadd.f32 %v1582, %v1009
    %v1584 = vadd.f32 %v722, %v866
    %v1585 = vadd.f32 %v1584, %v1010
    %v1586 = vadd.f32 %v723, %v867
    %v1587 = vadd.f32 %v1586, %v1011
    %v1588 = vld [vmem:[%s1] sm:$0xff]
    %v1589 = vld [vmem:[%s1 + $0x8] sm:$0xff]
    %v1590 = vld [vmem:[%s1 + $0x10] sm:$0xff]
    %v1591 = vld [vmem:[%s1 + $0x18] sm:$0xff]
    %v1592 = vld [vmem:[%s1 + $0x20] sm:$0xff]
    %v1593 = vld [vmem:[%s1 + $0x28] sm:$0xff]
    %v1594 = vld [vmem:[%s1 + $0x30] sm:$0xff]
    %v1595 = vld [vmem:[%s1 + $0x38] sm:$0xff]
    %v1596 = vld [vmem:[%s1 + $0x40] sm:$0xff]
    %1598 = vset.pattern.permute.xlu0 0
    %1599 = vperm.xlu0 %1598, %v1588
    %v1600 = vpop.permute.xlu0 %1599
    %1603 = vset.pattern.permute.xlu0 0
    %1604 = vperm.xlu0 %1603, %v1589
    %v1605 = vpop.permute.xlu0 %1604
    %1608 = vset.pattern.permute.xlu0 0
    %1609 = vperm.xlu0 %1608, %v1590
    %v1610 = vpop.permute.xlu0 %1609
    %1613 = vset.pattern.permute.xlu0 0
    %1614 = vperm.xlu0 %1613, %v1591
    %v1615 = vpop.permute.xlu0 %1614
    %1618 = vset.pattern.permute.xlu0 0
    %1619 = vperm.xlu0 %1618, %v1592
    %v1620 = vpop.permute.xlu0 %1619
    %1623 = vset.pattern.permute.xlu0 0
    %1624 = vperm.xlu0 %1623, %v1593
    %v1625 = vpop.permute.xlu0 %1624
    %1628 = vset.pattern.permute.xlu0 0
    %1629 = vperm.xlu0 %1628, %v1594
    %v1630 = vpop.permute.xlu0 %1629
    %1633 = vset.pattern.permute.xlu0 0
    %1634 = vperm.xlu0 %1633, %v1595
    %v1635 = vpop.permute.xlu0 %1634
    %1638 = vset.pattern.permute.xlu0 0
    %1639 = vperm.xlu0 %1638, %v1596
    %v1640 = vpop.permute.xlu0 %1639
    %v1642 = vmul.f32 %v1013, %v1600
    %v1643 = vmul.f32 %v1015, %v1600
    %v1644 = vmul.f32 %v1017, %v1600
    %v1645 = vmul.f32 %v1019, %v1600
    %v1646 = vmul.f32 %v1021, %v1600
    %v1647 = vmul.f32 %v1023, %v1600
    %v1648 = vmul.f32 %v1025, %v1600
    %v1649 = vmul.f32 %v1027, %v1600
    %v1650 = vmul.f32 %v1029, %v1600
    %v1651 = vmul.f32 %v1031, %v1600
    %v1652 = vmul.f32 %v1033, %v1600
    %v1653 = vmul.f32 %v1035, %v1600
    %v1654 = vmul.f32 %v1037, %v1600
    %v1655 = vmul.f32 %v1039, %v1600
    %v1656 = vmul.f32 %v1041, %v1600
    %v1657 = vmul.f32 %v1043, %v1600
    %v1658 = vmul.f32 %v1045, %v1605
    %v1659 = vmul.f32 %v1047, %v1605
    %v1660 = vmul.f32 %v1049, %v1605
    %v1661 = vmul.f32 %v1051, %v1605
    %v1662 = vmul.f32 %v1053, %v1605
    %v1663 = vmul.f32 %v1055, %v1605
    %v1664 = vmul.f32 %v1057, %v1605
    %v1665 = vmul.f32 %v1059, %v1605
    %v1666 = vmul.f32 %v1061, %v1605
    %v1667 = vmul.f32 %v1063, %v1605
    %v1668 = vmul.f32 %v1065, %v1605
    %v1669 = vmul.f32 %v1067, %v1605
    %v1670 = vmul.f32 %v1069, %v1605
    %v1671 = vmul.f32 %v1071, %v1605
    %v1672 = vmul.f32 %v1073, %v1605
    %v1673 = vmul.f32 %v1075, %v1605
    %v1674 = vmul.f32 %v1077, %v1610
    %v1675 = vmul.f32 %v1079, %v1610
    %v1676 = vmul.f32 %v1081, %v1610
    %v1677 = vmul.f32 %v1083, %v1610
    %v1678 = vmul.f32 %v1085, %v1610
    %v1679 = vmul.f32 %v1087, %v1610
    %v1680 = vmul.f32 %v1089, %v1610
    %v1681 = vmul.f32 %v1091, %v1610
    %v1682 = vmul.f32 %v1093, %v1610
    %v1683 = vmul.f32 %v1095, %v1610
    %v1684 = vmul.f32 %v1097, %v1610
    %v1685 = vmul.f32 %v1099, %v1610
    %v1686 = vmul.f32 %v1101, %v1610
    %v1687 = vmul.f32 %v1103, %v1610
    %v1688 = vmul.f32 %v1105, %v1610
    %v1689 = vmul.f32 %v1107, %v1610
    %v1690 = vmul.f32 %v1109, %v1615
    %v1691 = vmul.f32 %v1111, %v1615
    %v1692 = vmul.f32 %v1113, %v1615
    %v1693 = vmul.f32 %v1115, %v1615
    %v1694 = vmul.f32 %v1117, %v1615
    %v1695 = vmul.f32 %v1119, %v1615
    %v1696 = vmul.f32 %v1121, %v1615
    %v1697 = vmul.f32 %v1123, %v1615
    %v1698 = vmul.f32 %v1125, %v1615
    %v1699 = vmul.f32 %v1127, %v1615
    %v1700 = vmul.f32 %v1129, %v1615
    %v1701 = vmul.f32 %v1131, %v1615
    %v1702 = vmul.f32 %v1133, %v1615
    %v1703 = vmul.f32 %v1135, %v1615
    %v1704 = vmul.f32 %v1137, %v1615
    %v1705 = vmul.f32 %v1139, %v1615
    %v1706 = vmul.f32 %v1141, %v1620
    %v1707 = vmul.f32 %v1143, %v1620
    %v1708 = vmul.f32 %v1145, %v1620
    %v1709 = vmul.f32 %v1147, %v1620
    %v1710 = vmul.f32 %v1149, %v1620
    %v1711 = vmul.f32 %v1151, %v1620
    %v1712 = vmul.f32 %v1153, %v1620
    %v1713 = vmul.f32 %v1155, %v1620
    %v1714 = vmul.f32 %v1157, %v1620
    %v1715 = vmul.f32 %v1159, %v1620
    %v1716 = vmul.f32 %v1161, %v1620
    %v1717 = vmul.f32 %v1163, %v1620
    %v1718 = vmul.f32 %v1165, %v1620
    %v1719 = vmul.f32 %v1167, %v1620
    %v1720 = vmul.f32 %v1169, %v1620
    %v1721 = vmul.f32 %v1171, %v1620
    %v1722 = vmul.f32 %v1173, %v1625
    %v1723 = vmul.f32 %v1175, %v1625
    %v1724 = vmul.f32 %v1177, %v1625
    %v1725 = vmul.f32 %v1179, %v1625
    %v1726 = vmul.f32 %v1181, %v1625
    %v1727 = vmul.f32 %v1183, %v1625
    %v1728 = vmul.f32 %v1185, %v1625
    %v1729 = vmul.f32 %v1187, %v1625
    %v1730 = vmul.f32 %v1189, %v1625
    %v1731 = vmul.f32 %v1191, %v1625
    %v1732 = vmul.f32 %v1193, %v1625
    %v1733 = vmul.f32 %v1195, %v1625
    %v1734 = vmul.f32 %v1197, %v1625
    %v1735 = vmul.f32 %v1199, %v1625
    %v1736 = vmul.f32 %v1201, %v1625
    %v1737 = vmul.f32 %v1203, %v1625
    %v1738 = vmul.f32 %v1205, %v1630
    %v1739 = vmul.f32 %v1207, %v1630
    %v1740 = vmul.f32 %v1209, %v1630
    %v1741 = vmul.f32 %v1211, %v1630
    %v1742 = vmul.f32 %v1213, %v1630
    %v1743 = vmul.f32 %v1215, %v1630
    %v1744 = vmul.f32 %v1217, %v1630
    %v1745 = vmul.f32 %v1219, %v1630
    %v1746 = vmul.f32 %v1221, %v1630
    %v1747 = vmul.f32 %v1223, %v1630
    %v1748 = vmul.f32 %v1225, %v1630
    %v1749 = vmul.f32 %v1227, %v1630
    %v1750 = vmul.f32 %v1229, %v1630
    %v1751 = vmul.f32 %v1231, %v1630
    %v1752 = vmul.f32 %v1233, %v1630
    %v1753 = vmul.f32 %v1235, %v1630
    %v1754 = vmul.f32 %v1237, %v1635
    %v1755 = vmul.f32 %v1239, %v1635
    %v1756 = vmul.f32 %v1241, %v1635
    %v1757 = vmul.f32 %v1243, %v1635
    %v1758 = vmul.f32 %v1245, %v1635
    %v1759 = vmul.f32 %v1247, %v1635
    %v1760 = vmul.f32 %v1249, %v1635
    %v1761 = vmul.f32 %v1251, %v1635
    %v1762 = vmul.f32 %v1253, %v1635
    %v1763 = vmul.f32 %v1255, %v1635
    %v1764 = vmul.f32 %v1257, %v1635
    %v1765 = vmul.f32 %v1259, %v1635
    %v1766 = vmul.f32 %v1261, %v1635
    %v1767 = vmul.f32 %v1263, %v1635
    %v1768 = vmul.f32 %v1265, %v1635
    %v1769 = vmul.f32 %v1267, %v1635
    %v1770 = vmul.f32 %v1269, %v1640
    %v1771 = vmul.f32 %v1271, %v1640
    %v1772 = vmul.f32 %v1273, %v1640
    %v1773 = vmul.f32 %v1275, %v1640
    %v1774 = vmul.f32 %v1277, %v1640
    %v1775 = vmul.f32 %v1279, %v1640
    %v1776 = vmul.f32 %v1281, %v1640
    %v1777 = vmul.f32 %v1283, %v1640
    %v1778 = vmul.f32 %v1285, %v1640
    %v1779 = vmul.f32 %v1287, %v1640
    %v1780 = vmul.f32 %v1289, %v1640
    %v1781 = vmul.f32 %v1291, %v1640
    %v1782 = vmul.f32 %v1293, %v1640
    %v1783 = vmul.f32 %v1295, %v1640
    %v1784 = vmul.f32 %v1297, %v1640
    %v1785 = vmul.f32 %v1299, %v1640
    %v1786 = vmul.f32 %v1301, %v1600
    %v1787 = vmul.f32 %v1303, %v1600
    %v1788 = vmul.f32 %v1305, %v1600
    %v1789 = vmul.f32 %v1307, %v1600
    %v1790 = vmul.f32 %v1309, %v1600
    %v1791 = vmul.f32 %v1311, %v1600
    %v1792 = vmul.f32 %v1313, %v1600
    %v1793 = vmul.f32 %v1315, %v1600
    %v1794 = vmul.f32 %v1317, %v1600
    %v1795 = vmul.f32 %v1319, %v1600
    %v1796 = vmul.f32 %v1321, %v1600
    %v1797 = vmul.f32 %v1323, %v1600
    %v1798 = vmul.f32 %v1325, %v1600
    %v1799 = vmul.f32 %v1327, %v1600
    %v1800 = vmul.f32 %v1329, %v1600
    %v1801 = vmul.f32 %v1331, %v1600
    %v1802 = vmul.f32 %v1333, %v1605
    %v1803 = vmul.f32 %v1335, %v1605
    %v1804 = vmul.f32 %v1337, %v1605
    %v1805 = vmul.f32 %v1339, %v1605
    %v1806 = vmul.f32 %v1341, %v1605
    %v1807 = vmul.f32 %v1343, %v1605
    %v1808 = vmul.f32 %v1345, %v1605
    %v1809 = vmul.f32 %v1347, %v1605
    %v1810 = vmul.f32 %v1349, %v1605
    %v1811 = vmul.f32 %v1351, %v1605
    %v1812 = vmul.f32 %v1353, %v1605
    %v1813 = vmul.f32 %v1355, %v1605
    %v1814 = vmul.f32 %v1357, %v1605
    %v1815 = vmul.f32 %v1359, %v1605
    %v1816 = vmul.f32 %v1361, %v1605
    %v1817 = vmul.f32 %v1363, %v1605
    %v1818 = vmul.f32 %v1365, %v1610
    %v1819 = vmul.f32 %v1367, %v1610
    %v1820 = vmul.f32 %v1369, %v1610
    %v1821 = vmul.f32 %v1371, %v1610
    %v1822 = vmul.f32 %v1373, %v1610
    %v1823 = vmul.f32 %v1375, %v1610
    %v1824 = vmul.f32 %v1377, %v1610
    %v1825 = vmul.f32 %v1379, %v1610
    %v1826 = vmul.f32 %v1381, %v1610
    %v1827 = vmul.f32 %v1383, %v1610
    %v1828 = vmul.f32 %v1385, %v1610
    %v1829 = vmul.f32 %v1387, %v1610
    %v1830 = vmul.f32 %v1389, %v1610
    %v1831 = vmul.f32 %v1391, %v1610
    %v1832 = vmul.f32 %v1393, %v1610
    %v1833 = vmul.f32 %v1395, %v1610
    %v1834 = vmul.f32 %v1397, %v1615
    %v1835 = vmul.f32 %v1399, %v1615
    %v1836 = vmul.f32 %v1401, %v1615
    %v1837 = vmul.f32 %v1403, %v1615
    %v1838 = vmul.f32 %v1405, %v1615
    %v1839 = vmul.f32 %v1407, %v1615
    %v1840 = vmul.f32 %v1409, %v1615
    %v1841 = vmul.f32 %v1411, %v1615
    %v1842 = vmul.f32 %v1413, %v1615
    %v1843 = vmul.f32 %v1415, %v1615
    %v1844 = vmul.f32 %v1417, %v1615
    %v1845 = vmul.f32 %v1419, %v1615
    %v1846 = vmul.f32 %v1421, %v1615
    %v1847 = vmul.f32 %v1423, %v1615
    %v1848 = vmul.f32 %v1425, %v1615
    %v1849 = vmul.f32 %v1427, %v1615
    %v1850 = vmul.f32 %v1429, %v1620
    %v1851 = vmul.f32 %v1431, %v1620
    %v1852 = vmul.f32 %v1433, %v1620
    %v1853 = vmul.f32 %v1435, %v1620
    %v1854 = vmul.f32 %v1437, %v1620
    %v1855 = vmul.f32 %v1439, %v1620
    %v1856 = vmul.f32 %v1441, %v1620
    %v1857 = vmul.f32 %v1443, %v1620
    %v1858 = vmul.f32 %v1445, %v1620
    %v1859 = vmul.f32 %v1447, %v1620
    %v1860 = vmul.f32 %v1449, %v1620
    %v1861 = vmul.f32 %v1451, %v1620
    %v1862 = vmul.f32 %v1453, %v1620
    %v1863 = vmul.f32 %v1455, %v1620
    %v1864 = vmul.f32 %v1457, %v1620
    %v1865 = vmul.f32 %v1459, %v1620
    %v1866 = vmul.f32 %v1461, %v1625
    %v1867 = vmul.f32 %v1463, %v1625
    %v1868 = vmul.f32 %v1465, %v1625
    %v1869 = vmul.f32 %v1467, %v1625
    %v1870 = vmul.f32 %v1469, %v1625
    %v1871 = vmul.f32 %v1471, %v1625
    %v1872 = vmul.f32 %v1473, %v1625
    %v1873 = vmul.f32 %v1475, %v1625
    %v1874 = vmul.f32 %v1477, %v1625
    %v1875 = vmul.f32 %v1479, %v1625
    %v1876 = vmul.f32 %v1481, %v1625
    %v1877 = vmul.f32 %v1483, %v1625
    %v1878 = vmul.f32 %v1485, %v1625
    %v1879 = vmul.f32 %v1487, %v1625
    %v1880 = vmul.f32 %v1489, %v1625
    %v1881 = vmul.f32 %v1491, %v1625
    %v1882 = vmul.f32 %v1493, %v1630
    %v1883 = vmul.f32 %v1495, %v1630
    %v1884 = vmul.f32 %v1497, %v1630
    %v1885 = vmul.f32 %v1499, %v1630
    %v1886 = vmul.f32 %v1501, %v1630
    %v1887 = vmul.f32 %v1503, %v1630
    %v1888 = vmul.f32 %v1505, %v1630
    %v1889 = vmul.f32 %v1507, %v1630
    %v1890 = vmul.f32 %v1509, %v1630
    %v1891 = vmul.f32 %v1511, %v1630
    %v1892 = vmul.f32 %v1513, %v1630
    %v1893 = vmul.f32 %v1515, %v1630
    %v1894 = vmul.f32 %v1517, %v1630
    %v1895 = vmul.f32 %v1519, %v1630
    %v1896 = vmul.f32 %v1521, %v1630
    %v1897 = vmul.f32 %v1523, %v1630
    %v1898 = vmul.f32 %v1525, %v1635
    %v1899 = vmul.f32 %v1527, %v1635
    %v1900 = vmul.f32 %v1529, %v1635
    %v1901 = vmul.f32 %v1531, %v1635
    %v1902 = vmul.f32 %v1533, %v1635
    %v1903 = vmul.f32 %v1535, %v1635
    %v1904 = vmul.f32 %v1537, %v1635
    %v1905 = vmul.f32 %v1539, %v1635
    %v1906 = vmul.f32 %v1541, %v1635
    %v1907 = vmul.f32 %v1543, %v1635
    %v1908 = vmul.f32 %v1545, %v1635
    %v1909 = vmul.f32 %v1547, %v1635
    %v1910 = vmul.f32 %v1549, %v1635
    %v1911 = vmul.f32 %v1551, %v1635
    %v1912 = vmul.f32 %v1553, %v1635
    %v1913 = vmul.f32 %v1555, %v1635
    %v1914 = vmul.f32 %v1557, %v1640
    %v1915 = vmul.f32 %v1559, %v1640
    %v1916 = vmul.f32 %v1561, %v1640
    %v1917 = vmul.f32 %v1563, %v1640
    %v1918 = vmul.f32 %v1565, %v1640
    %v1919 = vmul.f32 %v1567, %v1640
    %v1920 = vmul.f32 %v1569, %v1640
    %v1921 = vmul.f32 %v1571, %v1640
    %v1922 = vmul.f32 %v1573, %v1640
    %v1923 = vmul.f32 %v1575, %v1640
    %v1924 = vmul.f32 %v1577, %v1640
    %v1925 = vmul.f32 %v1579, %v1640
    %v1926 = vmul.f32 %v1581, %v1640
    %v1927 = vmul.f32 %v1583, %v1640
    %v1928 = vmul.f32 %v1585, %v1640
    %v1929 = vmul.f32 %v1587, %v1640
    %v1930 = vadd.f32 %v1642, %v1658
    %v1931 = vadd.f32 %v1930, %v1674
    %v1932 = vadd.f32 %v1931, %v1690
    %v1933 = vadd.f32 %v1932, %v1706
    %v1934 = vadd.f32 %v1933, %v1722
    %v1935 = vadd.f32 %v1934, %v1738
    %v1936 = vadd.f32 %v1935, %v1754
    %v1937 = vadd.f32 %v1936, %v1770
    %v1938 = vrot.slane %v1937, 4
    %v1939 = vadd.f32 %v1937, %v1938
    %v1940 = vrot.slane %v1939, 2
    %v1941 = vadd.f32 %v1939, %v1940
    %v1942 = vrot.slane %v1941, 1
    %v1943 = vadd.f32 %v1941, %v1942
    %v1944 = vadd.f32 %v1643, %v1659
    %v1945 = vadd.f32 %v1944, %v1675
    %v1946 = vadd.f32 %v1945, %v1691
    %v1947 = vadd.f32 %v1946, %v1707
    %v1948 = vadd.f32 %v1947, %v1723
    %v1949 = vadd.f32 %v1948, %v1739
    %v1950 = vadd.f32 %v1949, %v1755
    %v1951 = vadd.f32 %v1950, %v1771
    %v1952 = vrot.slane %v1951, 4
    %v1953 = vadd.f32 %v1951, %v1952
    %v1954 = vrot.slane %v1953, 2
    %v1955 = vadd.f32 %v1953, %v1954
    %v1956 = vrot.slane %v1955, 1
    %v1957 = vadd.f32 %v1955, %v1956
    %v1958 = vadd.f32 %v1644, %v1660
    %v1959 = vadd.f32 %v1958, %v1676
    %v1960 = vadd.f32 %v1959, %v1692
    %v1961 = vadd.f32 %v1960, %v1708
    %v1962 = vadd.f32 %v1961, %v1724
    %v1963 = vadd.f32 %v1962, %v1740
    %v1964 = vadd.f32 %v1963, %v1756
    %v1965 = vadd.f32 %v1964, %v1772
    %v1966 = vrot.slane %v1965, 4
    %v1967 = vadd.f32 %v1965, %v1966
    %v1968 = vrot.slane %v1967, 2
    %v1969 = vadd.f32 %v1967, %v1968
    %v1970 = vrot.slane %v1969, 1
    %v1971 = vadd.f32 %v1969, %v1970
    %v1972 = vadd.f32 %v1645, %v1661
    %v1973 = vadd.f32 %v1972, %v1677
    %v1974 = vadd.f32 %v1973, %v1693
    %v1975 = vadd.f32 %v1974, %v1709
    %v1976 = vadd.f32 %v1975, %v1725
    %v1977 = vadd.f32 %v1976, %v1741
    %v1978 = vadd.f32 %v1977, %v1757
    %v1979 = vadd.f32 %v1978, %v1773
    %v1980 = vrot.slane %v1979, 4
    %v1981 = vadd.f32 %v1979, %v1980
    %v1982 = vrot.slane %v1981, 2
    %v1983 = vadd.f32 %v1981, %v1982
    %v1984 = vrot.slane %v1983, 1
    %v1985 = vadd.f32 %v1983, %v1984
    %v1986 = vadd.f32 %v1646, %v1662
    %v1987 = vadd.f32 %v1986, %v1678
    %v1988 = vadd.f32 %v1987, %v1694
    %v1989 = vadd.f32 %v1988, %v1710
    %v1990 = vadd.f32 %v1989, %v1726
    %v1991 = vadd.f32 %v1990, %v1742
    %v1992 = vadd.f32 %v1991, %v1758
    %v1993 = vadd.f32 %v1992, %v1774
    %v1994 = vrot.slane %v1993, 4
    %v1995 = vadd.f32 %v1993, %v1994
    %v1996 = vrot.slane %v1995, 2
    %v1997 = vadd.f32 %v1995, %v1996
    %v1998 = vrot.slane %v1997, 1
    %v1999 = vadd.f32 %v1997, %v1998
    %v2000 = vadd.f32 %v1647, %v1663
    %v2001 = vadd.f32 %v2000, %v1679
    %v2002 = vadd.f32 %v2001, %v1695
    %v2003 = vadd.f32 %v2002, %v1711
    %v2004 = vadd.f32 %v2003, %v1727
    %v2005 = vadd.f32 %v2004, %v1743
    %v2006 = vadd.f32 %v2005, %v1759
    %v2007 = vadd.f32 %v2006, %v1775
    %v2008 = vrot.slane %v2007, 4
    %v2009 = vadd.f32 %v2007, %v2008
    %v2010 = vrot.slane %v2009, 2
    %v2011 = vadd.f32 %v2009, %v2010
    %v2012 = vrot.slane %v2011, 1
    %v2013 = vadd.f32 %v2011, %v2012
    %v2014 = vadd.f32 %v1648, %v1664
    %v2015 = vadd.f32 %v2014, %v1680
    %v2016 = vadd.f32 %v2015, %v1696
    %v2017 = vadd.f32 %v2016, %v1712
    %v2018 = vadd.f32 %v2017, %v1728
    %v2019 = vadd.f32 %v2018, %v1744
    %v2020 = vadd.f32 %v2019, %v1760
    %v2021 = vadd.f32 %v2020, %v1776
    %v2022 = vrot.slane %v2021, 4
    %v2023 = vadd.f32 %v2021, %v2022
    %v2024 = vrot.slane %v2023, 2
    %v2025 = vadd.f32 %v2023, %v2024
    %v2026 = vrot.slane %v2025, 1
    %v2027 = vadd.f32 %v2025, %v2026
    %v2028 = vadd.f32 %v1649, %v1665
    %v2029 = vadd.f32 %v2028, %v1681
    %v2030 = vadd.f32 %v2029, %v1697
    %v2031 = vadd.f32 %v2030, %v1713
    %v2032 = vadd.f32 %v2031, %v1729
    %v2033 = vadd.f32 %v2032, %v1745
    %v2034 = vadd.f32 %v2033, %v1761
    %v2035 = vadd.f32 %v2034, %v1777
    %v2036 = vrot.slane %v2035, 4
    %v2037 = vadd.f32 %v2035, %v2036
    %v2038 = vrot.slane %v2037, 2
    %v2039 = vadd.f32 %v2037, %v2038
    %v2040 = vrot.slane %v2039, 1
    %v2041 = vadd.f32 %v2039, %v2040
    %v2042 = vadd.f32 %v1650, %v1666
    %v2043 = vadd.f32 %v2042, %v1682
    %v2044 = vadd.f32 %v2043, %v1698
    %v2045 = vadd.f32 %v2044, %v1714
    %v2046 = vadd.f32 %v2045, %v1730
    %v2047 = vadd.f32 %v2046, %v1746
    %v2048 = vadd.f32 %v2047, %v1762
    %v2049 = vadd.f32 %v2048, %v1778
    %v2050 = vrot.slane %v2049, 4
    %v2051 = vadd.f32 %v2049, %v2050
    %v2052 = vrot.slane %v2051, 2
    %v2053 = vadd.f32 %v2051, %v2052
    %v2054 = vrot.slane %v2053, 1
    %v2055 = vadd.f32 %v2053, %v2054
    %v2056 = vadd.f32 %v1651, %v1667
    %v2057 = vadd.f32 %v2056, %v1683
    %v2058 = vadd.f32 %v2057, %v1699
    %v2059 = vadd.f32 %v2058, %v1715
    %v2060 = vadd.f32 %v2059, %v1731
    %v2061 = vadd.f32 %v2060, %v1747
    %v2062 = vadd.f32 %v2061, %v1763
    %v2063 = vadd.f32 %v2062, %v1779
    %v2064 = vrot.slane %v2063, 4
    %v2065 = vadd.f32 %v2063, %v2064
    %v2066 = vrot.slane %v2065, 2
    %v2067 = vadd.f32 %v2065, %v2066
    %v2068 = vrot.slane %v2067, 1
    %v2069 = vadd.f32 %v2067, %v2068
    %v2070 = vadd.f32 %v1652, %v1668
    %v2071 = vadd.f32 %v2070, %v1684
    %v2072 = vadd.f32 %v2071, %v1700
    %v2073 = vadd.f32 %v2072, %v1716
    %v2074 = vadd.f32 %v2073, %v1732
    %v2075 = vadd.f32 %v2074, %v1748
    %v2076 = vadd.f32 %v2075, %v1764
    %v2077 = vadd.f32 %v2076, %v1780
    %v2078 = vrot.slane %v2077, 4
    %v2079 = vadd.f32 %v2077, %v2078
    %v2080 = vrot.slane %v2079, 2
    %v2081 = vadd.f32 %v2079, %v2080
    %v2082 = vrot.slane %v2081, 1
    %v2083 = vadd.f32 %v2081, %v2082
    %v2084 = vadd.f32 %v1653, %v1669
    %v2085 = vadd.f32 %v2084, %v1685
    %v2086 = vadd.f32 %v2085, %v1701
    %v2087 = vadd.f32 %v2086, %v1717
    %v2088 = vadd.f32 %v2087, %v1733
    %v2089 = vadd.f32 %v2088, %v1749
    %v2090 = vadd.f32 %v2089, %v1765
    %v2091 = vadd.f32 %v2090, %v1781
    %v2092 = vrot.slane %v2091, 4
    %v2093 = vadd.f32 %v2091, %v2092
    %v2094 = vrot.slane %v2093, 2
    %v2095 = vadd.f32 %v2093, %v2094
    %v2096 = vrot.slane %v2095, 1
    %v2097 = vadd.f32 %v2095, %v2096
    %v2098 = vadd.f32 %v1654, %v1670
    %v2099 = vadd.f32 %v2098, %v1686
    %v2100 = vadd.f32 %v2099, %v1702
    %v2101 = vadd.f32 %v2100, %v1718
    %v2102 = vadd.f32 %v2101, %v1734
    %v2103 = vadd.f32 %v2102, %v1750
    %v2104 = vadd.f32 %v2103, %v1766
    %v2105 = vadd.f32 %v2104, %v1782
    %v2106 = vrot.slane %v2105, 4
    %v2107 = vadd.f32 %v2105, %v2106
    %v2108 = vrot.slane %v2107, 2
    %v2109 = vadd.f32 %v2107, %v2108
    %v2110 = vrot.slane %v2109, 1
    %v2111 = vadd.f32 %v2109, %v2110
    %v2112 = vadd.f32 %v1655, %v1671
    %v2113 = vadd.f32 %v2112, %v1687
    %v2114 = vadd.f32 %v2113, %v1703
    %v2115 = vadd.f32 %v2114, %v1719
    %v2116 = vadd.f32 %v2115, %v1735
    %v2117 = vadd.f32 %v2116, %v1751
    %v2118 = vadd.f32 %v2117, %v1767
    %v2119 = vadd.f32 %v2118, %v1783
    %v2120 = vrot.slane %v2119, 4
    %v2121 = vadd.f32 %v2119, %v2120
    %v2122 = vrot.slane %v2121, 2
    %v2123 = vadd.f32 %v2121, %v2122
    %v2124 = vrot.slane %v2123, 1
    %v2125 = vadd.f32 %v2123, %v2124
    %v2126 = vadd.f32 %v1656, %v1672
    %v2127 = vadd.f32 %v2126, %v1688
    %v2128 = vadd.f32 %v2127, %v1704
    %v2129 = vadd.f32 %v2128, %v1720
    %v2130 = vadd.f32 %v2129, %v1736
    %v2131 = vadd.f32 %v2130, %v1752
    %v2132 = vadd.f32 %v2131, %v1768
    %v2133 = vadd.f32 %v2132, %v1784
    %v2134 = vrot.slane %v2133, 4
    %v2135 = vadd.f32 %v2133, %v2134
    %v2136 = vrot.slane %v2135, 2
    %v2137 = vadd.f32 %v2135, %v2136
    %v2138 = vrot.slane %v2137, 1
    %v2139 = vadd.f32 %v2137, %v2138
    %v2140 = vadd.f32 %v1657, %v1673
    %v2141 = vadd.f32 %v2140, %v1689
    %v2142 = vadd.f32 %v2141, %v1705
    %v2143 = vadd.f32 %v2142, %v1721
    %v2144 = vadd.f32 %v2143, %v1737
    %v2145 = vadd.f32 %v2144, %v1753
    %v2146 = vadd.f32 %v2145, %v1769
    %v2147 = vadd.f32 %v2146, %v1785
    %v2148 = vrot.slane %v2147, 4
    %v2149 = vadd.f32 %v2147, %v2148
    %v2150 = vrot.slane %v2149, 2
    %v2151 = vadd.f32 %v2149, %v2150
    %v2152 = vrot.slane %v2151, 1
    %v2153 = vadd.f32 %v2151, %v2152
    %v2154 = vadd.f32 %v1786, %v1802
    %v2155 = vadd.f32 %v2154, %v1818
    %v2156 = vadd.f32 %v2155, %v1834
    %v2157 = vadd.f32 %v2156, %v1850
    %v2158 = vadd.f32 %v2157, %v1866
    %v2159 = vadd.f32 %v2158, %v1882
    %v2160 = vadd.f32 %v2159, %v1898
    %v2161 = vadd.f32 %v2160, %v1914
    %v2162 = vrot.slane %v2161, 4
    %v2163 = vadd.f32 %v2161, %v2162
    %v2164 = vrot.slane %v2163, 2
    %v2165 = vadd.f32 %v2163, %v2164
    %v2166 = vrot.slane %v2165, 1
    %v2167 = vadd.f32 %v2165, %v2166
    %v2168 = vadd.f32 %v1787, %v1803
    %v2169 = vadd.f32 %v2168, %v1819
    %v2170 = vadd.f32 %v2169, %v1835
    %v2171 = vadd.f32 %v2170, %v1851
    %v2172 = vadd.f32 %v2171, %v1867
    %v2173 = vadd.f32 %v2172, %v1883
    %v2174 = vadd.f32 %v2173, %v1899
    %v2175 = vadd.f32 %v2174, %v1915
    %v2176 = vrot.slane %v2175, 4
    %v2177 = vadd.f32 %v2175, %v2176
    %v2178 = vrot.slane %v2177, 2
    %v2179 = vadd.f32 %v2177, %v2178
    %v2180 = vrot.slane %v2179, 1
    %v2181 = vadd.f32 %v2179, %v2180
    %v2182 = vadd.f32 %v1788, %v1804
    %v2183 = vadd.f32 %v2182, %v1820
    %v2184 = vadd.f32 %v2183, %v1836
    %v2185 = vadd.f32 %v2184, %v1852
    %v2186 = vadd.f32 %v2185, %v1868
    %v2187 = vadd.f32 %v2186, %v1884
    %v2188 = vadd.f32 %v2187, %v1900
    %v2189 = vadd.f32 %v2188, %v1916
    %v2190 = vrot.slane %v2189, 4
    %v2191 = vadd.f32 %v2189, %v2190
    %v2192 = vrot.slane %v2191, 2
    %v2193 = vadd.f32 %v2191, %v2192
    %v2194 = vrot.slane %v2193, 1
    %v2195 = vadd.f32 %v2193, %v2194
    %v2196 = vadd.f32 %v1789, %v1805
    %v2197 = vadd.f32 %v2196, %v1821
    %v2198 = vadd.f32 %v2197, %v1837
    %v2199 = vadd.f32 %v2198, %v1853
    %v2200 = vadd.f32 %v2199, %v1869
    %v2201 = vadd.f32 %v2200, %v1885
    %v2202 = vadd.f32 %v2201, %v1901
    %v2203 = vadd.f32 %v2202, %v1917
    %v2204 = vrot.slane %v2203, 4
    %v2205 = vadd.f32 %v2203, %v2204
    %v2206 = vrot.slane %v2205, 2
    %v2207 = vadd.f32 %v2205, %v2206
    %v2208 = vrot.slane %v2207, 1
    %v2209 = vadd.f32 %v2207, %v2208
    %v2210 = vadd.f32 %v1790, %v1806
    %v2211 = vadd.f32 %v2210, %v1822
    %v2212 = vadd.f32 %v2211, %v1838
    %v2213 = vadd.f32 %v2212, %v1854
    %v2214 = vadd.f32 %v2213, %v1870
    %v2215 = vadd.f32 %v2214, %v1886
    %v2216 = vadd.f32 %v2215, %v1902
    %v2217 = vadd.f32 %v2216, %v1918
    %v2218 = vrot.slane %v2217, 4
    %v2219 = vadd.f32 %v2217, %v2218
    %v2220 = vrot.slane %v2219, 2
    %v2221 = vadd.f32 %v2219, %v2220
    %v2222 = vrot.slane %v2221, 1
    %v2223 = vadd.f32 %v2221, %v2222
    %v2224 = vadd.f32 %v1791, %v1807
    %v2225 = vadd.f32 %v2224, %v1823
    %v2226 = vadd.f32 %v2225, %v1839
    %v2227 = vadd.f32 %v2226, %v1855
    %v2228 = vadd.f32 %v2227, %v1871
    %v2229 = vadd.f32 %v2228, %v1887
    %v2230 = vadd.f32 %v2229, %v1903
    %v2231 = vadd.f32 %v2230, %v1919
    %v2232 = vrot.slane %v2231, 4
    %v2233 = vadd.f32 %v2231, %v2232
    %v2234 = vrot.slane %v2233, 2
    %v2235 = vadd.f32 %v2233, %v2234
    %v2236 = vrot.slane %v2235, 1
    %v2237 = vadd.f32 %v2235, %v2236
    %v2238 = vadd.f32 %v1792, %v1808
    %v2239 = vadd.f32 %v2238, %v1824
    %v2240 = vadd.f32 %v2239, %v1840
    %v2241 = vadd.f32 %v2240, %v1856
    %v2242 = vadd.f32 %v2241, %v1872
    %v2243 = vadd.f32 %v2242, %v1888
    %v2244 = vadd.f32 %v2243, %v1904
    %v2245 = vadd.f32 %v2244, %v1920
    %v2246 = vrot.slane %v2245, 4
    %v2247 = vadd.f32 %v2245, %v2246
    %v2248 = vrot.slane %v2247, 2
    %v2249 = vadd.f32 %v2247, %v2248
    %v2250 = vrot.slane %v2249, 1
    %v2251 = vadd.f32 %v2249, %v2250
    %v2252 = vadd.f32 %v1793, %v1809
    %v2253 = vadd.f32 %v2252, %v1825
    %v2254 = vadd.f32 %v2253, %v1841
    %v2255 = vadd.f32 %v2254, %v1857
    %v2256 = vadd.f32 %v2255, %v1873
    %v2257 = vadd.f32 %v2256, %v1889
    %v2258 = vadd.f32 %v2257, %v1905
    %v2259 = vadd.f32 %v2258, %v1921
    %v2260 = vrot.slane %v2259, 4
    %v2261 = vadd.f32 %v2259, %v2260
    %v2262 = vrot.slane %v2261, 2
    %v2263 = vadd.f32 %v2261, %v2262
    %v2264 = vrot.slane %v2263, 1
    %v2265 = vadd.f32 %v2263, %v2264
    %v2266 = vadd.f32 %v1794, %v1810
    %v2267 = vadd.f32 %v2266, %v1826
    %v2268 = vadd.f32 %v2267, %v1842
    %v2269 = vadd.f32 %v2268, %v1858
    %v2270 = vadd.f32 %v2269, %v1874
    %v2271 = vadd.f32 %v2270, %v1890
    %v2272 = vadd.f32 %v2271, %v1906
    %v2273 = vadd.f32 %v2272, %v1922
    %v2274 = vrot.slane %v2273, 4
    %v2275 = vadd.f32 %v2273, %v2274
    %v2276 = vrot.slane %v2275, 2
    %v2277 = vadd.f32 %v2275, %v2276
    %v2278 = vrot.slane %v2277, 1
    %v2279 = vadd.f32 %v2277, %v2278
    %v2280 = vadd.f32 %v1795, %v1811
    %v2281 = vadd.f32 %v2280, %v1827
    %v2282 = vadd.f32 %v2281, %v1843
    %v2283 = vadd.f32 %v2282, %v1859
    %v2284 = vadd.f32 %v2283, %v1875
    %v2285 = vadd.f32 %v2284, %v1891
    %v2286 = vadd.f32 %v2285, %v1907
    %v2287 = vadd.f32 %v2286, %v1923
    %v2288 = vrot.slane %v2287, 4
    %v2289 = vadd.f32 %v2287, %v2288
    %v2290 = vrot.slane %v2289, 2
    %v2291 = vadd.f32 %v2289, %v2290
    %v2292 = vrot.slane %v2291, 1
    %v2293 = vadd.f32 %v2291, %v2292
    %v2294 = vadd.f32 %v1796, %v1812
    %v2295 = vadd.f32 %v2294, %v1828
    %v2296 = vadd.f32 %v2295, %v1844
    %v2297 = vadd.f32 %v2296, %v1860
    %v2298 = vadd.f32 %v2297, %v1876
    %v2299 = vadd.f32 %v2298, %v1892
    %v2300 = vadd.f32 %v2299, %v1908
    %v2301 = vadd.f32 %v2300, %v1924
    %v2302 = vrot.slane %v2301, 4
    %v2303 = vadd.f32 %v2301, %v2302
    %v2304 = vrot.slane %v2303, 2
    %v2305 = vadd.f32 %v2303, %v2304
    %v2306 = vrot.slane %v2305, 1
    %v2307 = vadd.f32 %v2305, %v2306
    %v2308 = vadd.f32 %v1797, %v1813
    %v2309 = vadd.f32 %v2308, %v1829
    %v2310 = vadd.f32 %v2309, %v1845
    %v2311 = vadd.f32 %v2310, %v1861
    %v2312 = vadd.f32 %v2311, %v1877
    %v2313 = vadd.f32 %v2312, %v1893
    %v2314 = vadd.f32 %v2313, %v1909
    %v2315 = vadd.f32 %v2314, %v1925
    %v2316 = vrot.slane %v2315, 4
    %v2317 = vadd.f32 %v2315, %v2316
    %v2318 = vrot.slane %v2317, 2
    %v2319 = vadd.f32 %v2317, %v2318
    %v2320 = vrot.slane %v2319, 1
    %v2321 = vadd.f32 %v2319, %v2320
    %v2322 = vadd.f32 %v1798, %v1814
    %v2323 = vadd.f32 %v2322, %v1830
    %v2324 = vadd.f32 %v2323, %v1846
    %v2325 = vadd.f32 %v2324, %v1862
    %v2326 = vadd.f32 %v2325, %v1878
    %v2327 = vadd.f32 %v2326, %v1894
    %v2328 = vadd.f32 %v2327, %v1910
    %v2329 = vadd.f32 %v2328, %v1926
    %v2330 = vrot.slane %v2329, 4
    %v2331 = vadd.f32 %v2329, %v2330
    %v2332 = vrot.slane %v2331, 2
    %v2333 = vadd.f32 %v2331, %v2332
    %v2334 = vrot.slane %v2333, 1
    %v2335 = vadd.f32 %v2333, %v2334
    %v2336 = vadd.f32 %v1799, %v1815
    %v2337 = vadd.f32 %v2336, %v1831
    %v2338 = vadd.f32 %v2337, %v1847
    %v2339 = vadd.f32 %v2338, %v1863
    %v2340 = vadd.f32 %v2339, %v1879
    %v2341 = vadd.f32 %v2340, %v1895
    %v2342 = vadd.f32 %v2341, %v1911
    %v2343 = vadd.f32 %v2342, %v1927
    %v2344 = vrot.slane %v2343, 4
    %v2345 = vadd.f32 %v2343, %v2344
    %v2346 = vrot.slane %v2345, 2
    %v2347 = vadd.f32 %v2345, %v2346
    %v2348 = vrot.slane %v2347, 1
    %v2349 = vadd.f32 %v2347, %v2348
    %v2350 = vadd.f32 %v1800, %v1816
    %v2351 = vadd.f32 %v2350, %v1832
    %v2352 = vadd.f32 %v2351, %v1848
    %v2353 = vadd.f32 %v2352, %v1864
    %v2354 = vadd.f32 %v2353, %v1880
    %v2355 = vadd.f32 %v2354, %v1896
    %v2356 = vadd.f32 %v2355, %v1912
    %v2357 = vadd.f32 %v2356, %v1928
    %v2358 = vrot.slane %v2357, 4
    %v2359 = vadd.f32 %v2357, %v2358
    %v2360 = vrot.slane %v2359, 2
    %v2361 = vadd.f32 %v2359, %v2360
    %v2362 = vrot.slane %v2361, 1
    %v2363 = vadd.f32 %v2361, %v2362
    %v2364 = vadd.f32 %v1801, %v1817
    %v2365 = vadd.f32 %v2364, %v1833
    %v2366 = vadd.f32 %v2365, %v1849
    %v2367 = vadd.f32 %v2366, %v1865
    %v2368 = vadd.f32 %v2367, %v1881
    %v2369 = vadd.f32 %v2368, %v1897
    %v2370 = vadd.f32 %v2369, %v1913
    %v2371 = vadd.f32 %v2370, %v1929
    %v2372 = vrot.slane %v2371, 4
    %v2373 = vadd.f32 %v2371, %v2372
    %v2374 = vrot.slane %v2373, 2
    %v2375 = vadd.f32 %v2373, %v2374
    %v2376 = vrot.slane %v2375, 1
    %v2377 = vadd.f32 %v2375, %v2376
    %v2378 = vld [vmem:[#allocation5] sm:$0xff]
    %v2379 = vld [vmem:[#allocation5 + $0x8] sm:$0xff]
    %v2380 = vld [vmem:[#allocation5 + $0x10] sm:$0xff]
    %v2381 = vld [vmem:[#allocation5 + $0x18] sm:$0xff]
    %v2382 = vld [vmem:[#allocation5 + $0x20] sm:$0xff]
    %v2383 = vld [vmem:[#allocation5 + $0x28] sm:$0xff]
    %v2384 = vld [vmem:[#allocation5 + $0x30] sm:$0xff]
    %v2385 = vld [vmem:[#allocation5 + $0x38] sm:$0xff]
    %v2386 = vld [vmem:[#allocation5 + $0x40] sm:$0xff]
    %v2387 = vld [vmem:[#allocation5 + $0x48] sm:$0xff]
    %v2388 = vld [vmem:[#allocation5 + $0x50] sm:$0xff]
    %v2389 = vld [vmem:[#allocation5 + $0x58] sm:$0xff]
    %v2390 = vld [vmem:[#allocation5 + $0x60] sm:$0xff]
    %v2391 = vld [vmem:[#allocation5 + $0x68] sm:$0xff]
    %v2392 = vld [vmem:[#allocation5 + $0x70] sm:$0xff]
    %v2393 = vld [vmem:[#allocation5 + $0x78] sm:$0xff]
    %v2394 = vld [vmem:[#allocation5 + $0x80] sm:$0xff]
    %v2395 = vld [vmem:[#allocation5 + $0x88] sm:$0xff]
    %v2396 = vld [vmem:[#allocation5 + $0x90] sm:$0xff]
    %v2397 = vld [vmem:[#allocation5 + $0x98] sm:$0xff]
    %v2398 = vld [vmem:[#allocation5 + $0xa0] sm:$0xff]
    %v2399 = vld [vmem:[#allocation5 + $0xa8] sm:$0xff]
    %v2400 = vld [vmem:[#allocation5 + $0xb0] sm:$0xff]
    %v2401 = vld [vmem:[#allocation5 + $0xb8] sm:$0xff]
    %v2402 = vld [vmem:[#allocation5 + $0xc0] sm:$0xff]
    %v2403 = vld [vmem:[#allocation5 + $0xc8] sm:$0xff]
    %v2404 = vld [vmem:[#allocation5 + $0xd0] sm:$0xff]
    %v2405 = vld [vmem:[#allocation5 + $0xd8] sm:$0xff]
    %v2406 = vld [vmem:[#allocation5 + $0xe0] sm:$0xff]
    %v2407 = vld [vmem:[#allocation5 + $0xe8] sm:$0xff]
    %v2408 = vld [vmem:[#allocation5 + $0xf0] sm:$0xff]
    %v2409 = vld [vmem:[#allocation5 + $0xf8] sm:$0xff]
    %v2410 = vld [vmem:[#allocation5 + $0x100] sm:$0xff]
    %v2411 = vld [vmem:[#allocation5 + $0x108] sm:$0xff]
    %v2412 = vld [vmem:[#allocation5 + $0x110] sm:$0xff]
    %v2413 = vld [vmem:[#allocation5 + $0x118] sm:$0xff]
    %v2414 = vld [vmem:[#allocation5 + $0x120] sm:$0xff]
    %v2415 = vld [vmem:[#allocation5 + $0x128] sm:$0xff]
    %v2416 = vld [vmem:[#allocation5 + $0x130] sm:$0xff]
    %v2417 = vld [vmem:[#allocation5 + $0x138] sm:$0xff]
    %v2418 = vld [vmem:[#allocation5 + $0x140] sm:$0xff]
    %v2419 = vld [vmem:[#allocation5 + $0x148] sm:$0xff]
    %v2420 = vld [vmem:[#allocation5 + $0x150] sm:$0xff]
    %v2421 = vld [vmem:[#allocation5 + $0x158] sm:$0xff]
    %v2422 = vld [vmem:[#allocation5 + $0x160] sm:$0xff]
    %v2423 = vld [vmem:[#allocation5 + $0x168] sm:$0xff]
    %v2424 = vld [vmem:[#allocation5 + $0x170] sm:$0xff]
    %v2425 = vld [vmem:[#allocation5 + $0x178] sm:$0xff]
    %v2426 = vld [vmem:[#allocation5 + $0x180] sm:$0xff]
    %v2427 = vld [vmem:[#allocation5 + $0x188] sm:$0xff]
    %v2428 = vld [vmem:[#allocation5 + $0x190] sm:$0xff]
    %v2429 = vld [vmem:[#allocation5 + $0x198] sm:$0xff]
    %v2430 = vld [vmem:[#allocation5 + $0x1a0] sm:$0xff]
    %v2431 = vld [vmem:[#allocation5 + $0x1a8] sm:$0xff]
    %v2432 = vld [vmem:[#allocation5 + $0x1b0] sm:$0xff]
    %v2433 = vld [vmem:[#allocation5 + $0x1b8] sm:$0xff]
    %v2434 = vld [vmem:[#allocation5 + $0x1c0] sm:$0xff]
    %v2435 = vld [vmem:[#allocation5 + $0x1c8] sm:$0xff]
    %v2436 = vld [vmem:[#allocation5 + $0x1d0] sm:$0xff]
    %v2437 = vld [vmem:[#allocation5 + $0x1d8] sm:$0xff]
    %v2438 = vld [vmem:[#allocation5 + $0x1e0] sm:$0xff]
    %v2439 = vld [vmem:[#allocation5 + $0x1e8] sm:$0xff]
    %v2440 = vld [vmem:[#allocation5 + $0x1f0] sm:$0xff]
    %v2441 = vld [vmem:[#allocation5 + $0x1f8] sm:$0xff]
    %v2442 = vld [vmem:[#allocation5 + $0x200] sm:$0xff]
    %v2443 = vld [vmem:[#allocation5 + $0x208] sm:$0xff]
    %v2444 = vld [vmem:[#allocation5 + $0x210] sm:$0xff]
    %v2445 = vld [vmem:[#allocation5 + $0x218] sm:$0xff]
    %v2446 = vld [vmem:[#allocation5 + $0x220] sm:$0xff]
    %v2447 = vld [vmem:[#allocation5 + $0x228] sm:$0xff]
    %v2448 = vld [vmem:[#allocation5 + $0x230] sm:$0xff]
    %v2449 = vld [vmem:[#allocation5 + $0x238] sm:$0xff]
    %v2450 = vld [vmem:[#allocation5 + $0x240] sm:$0xff]
    %v2451 = vld [vmem:[#allocation5 + $0x248] sm:$0xff]
    %v2452 = vld [vmem:[#allocation5 + $0x250] sm:$0xff]
    %v2453 = vld [vmem:[#allocation5 + $0x258] sm:$0xff]
    %v2454 = vld [vmem:[#allocation5 + $0x260] sm:$0xff]
    %v2455 = vld [vmem:[#allocation5 + $0x268] sm:$0xff]
    %v2456 = vld [vmem:[#allocation5 + $0x270] sm:$0xff]
    %v2457 = vld [vmem:[#allocation5 + $0x278] sm:$0xff]
    %v2458 = vld [vmem:[#allocation5 + $0x280] sm:$0xff]
    %v2459 = vld [vmem:[#allocation5 + $0x288] sm:$0xff]
    %v2460 = vld [vmem:[#allocation5 + $0x290] sm:$0xff]
    %v2461 = vld [vmem:[#allocation5 + $0x298] sm:$0xff]
    %v2462 = vld [vmem:[#allocation5 + $0x2a0] sm:$0xff]
    %v2463 = vld [vmem:[#allocation5 + $0x2a8] sm:$0xff]
    %v2464 = vld [vmem:[#allocation5 + $0x2b0] sm:$0xff]
    %v2465 = vld [vmem:[#allocation5 + $0x2b8] sm:$0xff]
    %v2466 = vld [vmem:[#allocation5 + $0x2c0] sm:$0xff]
    %v2467 = vld [vmem:[#allocation5 + $0x2c8] sm:$0xff]
    %v2468 = vld [vmem:[#allocation5 + $0x2d0] sm:$0xff]
    %v2469 = vld [vmem:[#allocation5 + $0x2d8] sm:$0xff]
    %v2470 = vld [vmem:[#allocation5 + $0x2e0] sm:$0xff]
    %v2471 = vld [vmem:[#allocation5 + $0x2e8] sm:$0xff]
    %v2472 = vld [vmem:[#allocation5 + $0x2f0] sm:$0xff]
    %v2473 = vld [vmem:[#allocation5 + $0x2f8] sm:$0xff]
    %v2474 = vld [vmem:[#allocation5 + $0x300] sm:$0xff]
    %v2475 = vld [vmem:[#allocation5 + $0x308] sm:$0xff]
    %v2476 = vld [vmem:[#allocation5 + $0x310] sm:$0xff]
    %v2477 = vld [vmem:[#allocation5 + $0x318] sm:$0xff]
    %v2478 = vld [vmem:[#allocation5 + $0x320] sm:$0xff]
    %v2479 = vld [vmem:[#allocation5 + $0x328] sm:$0xff]
    %v2480 = vld [vmem:[#allocation5 + $0x330] sm:$0xff]
    %v2481 = vld [vmem:[#allocation5 + $0x338] sm:$0xff]
    %v2482 = vld [vmem:[#allocation5 + $0x340] sm:$0xff]
    %v2483 = vld [vmem:[#allocation5 + $0x348] sm:$0xff]
    %v2484 = vld [vmem:[#allocation5 + $0x350] sm:$0xff]
    %v2485 = vld [vmem:[#allocation5 + $0x358] sm:$0xff]
    %v2486 = vld [vmem:[#allocation5 + $0x360] sm:$0xff]
    %v2487 = vld [vmem:[#allocation5 + $0x368] sm:$0xff]
    %v2488 = vld [vmem:[#allocation5 + $0x370] sm:$0xff]
    %v2489 = vld [vmem:[#allocation5 + $0x378] sm:$0xff]
    %v2490 = vld [vmem:[#allocation5 + $0x380] sm:$0xff]
    %v2491 = vld [vmem:[#allocation5 + $0x388] sm:$0xff]
    %v2492 = vld [vmem:[#allocation5 + $0x390] sm:$0xff]
    %v2493 = vld [vmem:[#allocation5 + $0x398] sm:$0xff]
    %v2494 = vld [vmem:[#allocation5 + $0x3a0] sm:$0xff]
    %v2495 = vld [vmem:[#allocation5 + $0x3a8] sm:$0xff]
    %v2496 = vld [vmem:[#allocation5 + $0x3b0] sm:$0xff]
    %v2497 = vld [vmem:[#allocation5 + $0x3b8] sm:$0xff]
    %v2498 = vld [vmem:[#allocation5 + $0x3c0] sm:$0xff]
    %v2499 = vld [vmem:[#allocation5 + $0x3c8] sm:$0xff]
    %v2500 = vld [vmem:[#allocation5 + $0x3d0] sm:$0xff]
    %v2501 = vld [vmem:[#allocation5 + $0x3d8] sm:$0xff]
    %v2502 = vld [vmem:[#allocation5 + $0x3e0] sm:$0xff]
    %v2503 = vld [vmem:[#allocation5 + $0x3e8] sm:$0xff]
    %v2504 = vld [vmem:[#allocation5 + $0x3f0] sm:$0xff]
    %v2505 = vld [vmem:[#allocation5 + $0x3f8] sm:$0xff]
    %v2506 = vld [vmem:[#allocation5 + $0x400] sm:$0xff]
    %v2507 = vld [vmem:[#allocation5 + $0x408] sm:$0xff]
    %v2508 = vld [vmem:[#allocation5 + $0x410] sm:$0xff]
    %v2509 = vld [vmem:[#allocation5 + $0x418] sm:$0xff]
    %v2510 = vld [vmem:[#allocation5 + $0x420] sm:$0xff]
    %v2511 = vld [vmem:[#allocation5 + $0x428] sm:$0xff]
    %v2512 = vld [vmem:[#allocation5 + $0x430] sm:$0xff]
    %v2513 = vld [vmem:[#allocation5 + $0x438] sm:$0xff]
    %v2514 = vld [vmem:[#allocation5 + $0x440] sm:$0xff]
    %v2515 = vld [vmem:[#allocation5 + $0x448] sm:$0xff]
    %v2516 = vld [vmem:[#allocation5 + $0x450] sm:$0xff]
    %v2517 = vld [vmem:[#allocation5 + $0x458] sm:$0xff]
    %v2518 = vld [vmem:[#allocation5 + $0x460] sm:$0xff]
    %v2519 = vld [vmem:[#allocation5 + $0x468] sm:$0xff]
    %v2520 = vld [vmem:[#allocation5 + $0x470] sm:$0xff]
    %v2521 = vld [vmem:[#allocation5 + $0x478] sm:$0xff]
    %v2522 = vld [vmem:[#allocation5 + $0x480] sm:$0xff]
    %v2523 = vld [vmem:[#allocation5 + $0x488] sm:$0xff]
    %v2524 = vld [vmem:[#allocation5 + $0x490] sm:$0xff]
    %v2525 = vld [vmem:[#allocation5 + $0x498] sm:$0xff]
    %v2526 = vld [vmem:[#allocation5 + $0x4a0] sm:$0xff]
    %v2527 = vld [vmem:[#allocation5 + $0x4a8] sm:$0xff]
    %v2528 = vld [vmem:[#allocation5 + $0x4b0] sm:$0xff]
    %v2529 = vld [vmem:[#allocation5 + $0x4b8] sm:$0xff]
    %v2530 = vld [vmem:[#allocation5 + $0x4c0] sm:$0xff]
    %v2531 = vld [vmem:[#allocation5 + $0x4c8] sm:$0xff]
    %v2532 = vld [vmem:[#allocation5 + $0x4d0] sm:$0xff]
    %v2533 = vld [vmem:[#allocation5 + $0x4d8] sm:$0xff]
    %v2534 = vld [vmem:[#allocation5 + $0x4e0] sm:$0xff]
    %v2535 = vld [vmem:[#allocation5 + $0x4e8] sm:$0xff]
    %v2536 = vld [vmem:[#allocation5 + $0x4f0] sm:$0xff]
    %v2537 = vld [vmem:[#allocation5 + $0x4f8] sm:$0xff]
    %v2538 = vld [vmem:[#allocation5 + $0x500] sm:$0xff]
    %v2539 = vld [vmem:[#allocation5 + $0x508] sm:$0xff]
    %v2540 = vld [vmem:[#allocation5 + $0x510] sm:$0xff]
    %v2541 = vld [vmem:[#allocation5 + $0x518] sm:$0xff]
    %v2542 = vld [vmem:[#allocation5 + $0x520] sm:$0xff]
    %v2543 = vld [vmem:[#allocation5 + $0x528] sm:$0xff]
    %v2544 = vld [vmem:[#allocation5 + $0x530] sm:$0xff]
    %v2545 = vld [vmem:[#allocation5 + $0x538] sm:$0xff]
    %v2546 = vld [vmem:[#allocation5 + $0x540] sm:$0xff]
    %v2547 = vld [vmem:[#allocation5 + $0x548] sm:$0xff]
    %v2548 = vld [vmem:[#allocation5 + $0x550] sm:$0xff]
    %v2549 = vld [vmem:[#allocation5 + $0x558] sm:$0xff]
    %v2550 = vld [vmem:[#allocation5 + $0x560] sm:$0xff]
    %v2551 = vld [vmem:[#allocation5 + $0x568] sm:$0xff]
    %v2552 = vld [vmem:[#allocation5 + $0x570] sm:$0xff]
    %v2553 = vld [vmem:[#allocation5 + $0x578] sm:$0xff]
    %v2554 = vld [vmem:[#allocation5 + $0x580] sm:$0xff]
    %v2555 = vld [vmem:[#allocation5 + $0x588] sm:$0xff]
    %v2556 = vld [vmem:[#allocation5 + $0x590] sm:$0xff]
    %v2557 = vld [vmem:[#allocation5 + $0x598] sm:$0xff]
    %v2558 = vld [vmem:[#allocation5 + $0x5a0] sm:$0xff]
    %v2559 = vld [vmem:[#allocation5 + $0x5a8] sm:$0xff]
    %v2560 = vld [vmem:[#allocation5 + $0x5b0] sm:$0xff]
    %v2561 = vld [vmem:[#allocation5 + $0x5b8] sm:$0xff]
    %v2562 = vld [vmem:[#allocation5 + $0x5c0] sm:$0xff]
    %v2563 = vld [vmem:[#allocation5 + $0x5c8] sm:$0xff]
    %v2564 = vld [vmem:[#allocation5 + $0x5d0] sm:$0xff]
    %v2565 = vld [vmem:[#allocation5 + $0x5d8] sm:$0xff]
    %v2566 = vld [vmem:[#allocation5 + $0x5e0] sm:$0xff]
    %v2567 = vld [vmem:[#allocation5 + $0x5e8] sm:$0xff]
    %v2568 = vld [vmem:[#allocation5 + $0x5f0] sm:$0xff]
    %v2569 = vld [vmem:[#allocation5 + $0x5f8] sm:$0xff]
    %v2570 = vld [vmem:[#allocation5 + $0x600] sm:$0xff]
    %v2571 = vld [vmem:[#allocation5 + $0x608] sm:$0xff]
    %v2572 = vld [vmem:[#allocation5 + $0x610] sm:$0xff]
    %v2573 = vld [vmem:[#allocation5 + $0x618] sm:$0xff]
    %v2574 = vld [vmem:[#allocation5 + $0x620] sm:$0xff]
    %v2575 = vld [vmem:[#allocation5 + $0x628] sm:$0xff]
    %v2576 = vld [vmem:[#allocation5 + $0x630] sm:$0xff]
    %v2577 = vld [vmem:[#allocation5 + $0x638] sm:$0xff]
    %v2578 = vld [vmem:[#allocation5 + $0x640] sm:$0xff]
    %v2579 = vld [vmem:[#allocation5 + $0x648] sm:$0xff]
    %v2580 = vld [vmem:[#allocation5 + $0x650] sm:$0xff]
    %v2581 = vld [vmem:[#allocation5 + $0x658] sm:$0xff]
    %v2582 = vld [vmem:[#allocation5 + $0x660] sm:$0xff]
    %v2583 = vld [vmem:[#allocation5 + $0x668] sm:$0xff]
    %v2584 = vld [vmem:[#allocation5 + $0x670] sm:$0xff]
    %v2585 = vld [vmem:[#allocation5 + $0x678] sm:$0xff]
    %v2586 = vld [vmem:[#allocation5 + $0x680] sm:$0xff]
    %v2587 = vld [vmem:[#allocation5 + $0x688] sm:$0xff]
    %v2588 = vld [vmem:[#allocation5 + $0x690] sm:$0xff]
    %v2589 = vld [vmem:[#allocation5 + $0x698] sm:$0xff]
    %v2590 = vld [vmem:[#allocation5 + $0x6a0] sm:$0xff]
    %v2591 = vld [vmem:[#allocation5 + $0x6a8] sm:$0xff]
    %v2592 = vld [vmem:[#allocation5 + $0x6b0] sm:$0xff]
    %v2593 = vld [vmem:[#allocation5 + $0x6b8] sm:$0xff]
    %v2594 = vld [vmem:[#allocation5 + $0x6c0] sm:$0xff]
    %v2595 = vld [vmem:[#allocation5 + $0x6c8] sm:$0xff]
    %v2596 = vld [vmem:[#allocation5 + $0x6d0] sm:$0xff]
    %v2597 = vld [vmem:[#allocation5 + $0x6d8] sm:$0xff]
    %v2598 = vld [vmem:[#allocation5 + $0x6e0] sm:$0xff]
    %v2599 = vld [vmem:[#allocation5 + $0x6e8] sm:$0xff]
    %v2600 = vld [vmem:[#allocation5 + $0x6f0] sm:$0xff]
    %v2601 = vld [vmem:[#allocation5 + $0x6f8] sm:$0xff]
    %v2602 = vld [vmem:[#allocation5 + $0x700] sm:$0xff]
    %v2603 = vld [vmem:[#allocation5 + $0x708] sm:$0xff]
    %v2604 = vld [vmem:[#allocation5 + $0x710] sm:$0xff]
    %v2605 = vld [vmem:[#allocation5 + $0x718] sm:$0xff]
    %v2606 = vld [vmem:[#allocation5 + $0x720] sm:$0xff]
    %v2607 = vld [vmem:[#allocation5 + $0x728] sm:$0xff]
    %v2608 = vld [vmem:[#allocation5 + $0x730] sm:$0xff]
    %v2609 = vld [vmem:[#allocation5 + $0x738] sm:$0xff]
    %v2610 = vld [vmem:[#allocation5 + $0x740] sm:$0xff]
    %v2611 = vld [vmem:[#allocation5 + $0x748] sm:$0xff]
    %v2612 = vld [vmem:[#allocation5 + $0x750] sm:$0xff]
    %v2613 = vld [vmem:[#allocation5 + $0x758] sm:$0xff]
    %v2614 = vld [vmem:[#allocation5 + $0x760] sm:$0xff]
    %v2615 = vld [vmem:[#allocation5 + $0x768] sm:$0xff]
    %v2616 = vld [vmem:[#allocation5 + $0x770] sm:$0xff]
    %v2617 = vld [vmem:[#allocation5 + $0x778] sm:$0xff]
    %v2618 = vld [vmem:[#allocation5 + $0x780] sm:$0xff]
    %v2619 = vld [vmem:[#allocation5 + $0x788] sm:$0xff]
    %v2620 = vld [vmem:[#allocation5 + $0x790] sm:$0xff]
    %v2621 = vld [vmem:[#allocation5 + $0x798] sm:$0xff]
    %v2622 = vld [vmem:[#allocation5 + $0x7a0] sm:$0xff]
    %v2623 = vld [vmem:[#allocation5 + $0x7a8] sm:$0xff]
    %v2624 = vld [vmem:[#allocation5 + $0x7b0] sm:$0xff]
    %v2625 = vld [vmem:[#allocation5 + $0x7b8] sm:$0xff]
    %v2626 = vld [vmem:[#allocation5 + $0x7c0] sm:$0xff]
    %v2627 = vld [vmem:[#allocation5 + $0x7c8] sm:$0xff]
    %v2628 = vld [vmem:[#allocation5 + $0x7d0] sm:$0xff]
    %v2629 = vld [vmem:[#allocation5 + $0x7d8] sm:$0xff]
    %v2630 = vld [vmem:[#allocation5 + $0x7e0] sm:$0xff]
    %v2631 = vld [vmem:[#allocation5 + $0x7e8] sm:$0xff]
    %v2632 = vld [vmem:[#allocation5 + $0x7f0] sm:$0xff]
    %v2633 = vld [vmem:[#allocation5 + $0x7f8] sm:$0xff]
    %v2634 = vld [vmem:[#allocation7] sm:$0x1]
    %v2636 = vlaneseq
    %v2637 = vshrl.u32 %v2636, 7
    %v2638 = vsub.s32 0, %v2637
    %v2639 = vrot.slane %v2634, %v2638
    %vm2673 = vcmask 1041409
    %v2674 = vsel %vm2673, %v2167, %v1943
    %v2675 = vsel %vm2673, %v2181, %v1957
    %v2676 = vsel %vm2673, %v2195, %v1971
    %v2677 = vsel %vm2673, %v2209, %v1985
    %v2678 = vsel %vm2673, %v2223, %v1999
    %v2679 = vsel %vm2673, %v2237, %v2013
    %v2680 = vsel %vm2673, %v2251, %v2027
    %v2681 = vsel %vm2673, %v2265, %v2041
    %v2682 = vsel %vm2673, %v2279, %v2055
    %v2683 = vsel %vm2673, %v2293, %v2069
    %v2684 = vsel %vm2673, %v2307, %v2083
    %v2685 = vsel %vm2673, %v2321, %v2097
    %v2686 = vsel %vm2673, %v2335, %v2111
    %v2687 = vsel %vm2673, %v2349, %v2125
    %v2688 = vsel %vm2673, %v2363, %v2139
    %v2689 = vsel %vm2673, %v2377, %v2153
    %2706 = vmatprep.subr.mxu0 0.0
    %2707 = vmatpush1.msra.mxu0 %v2378
    %2708 = vmatprep.subr.mxu0 0.0
    %2709 = vmatpush1.msra.mxu0 %v2379
    %2710 = vmatprep.subr.mxu0 0.0
    %2711 = vmatpush1.msra.mxu0 %v2380
    %2712 = vmatprep.subr.mxu0 0.0
    %2713 = vmatpush1.msra.mxu0 %v2381
    %2714 = vmatprep.subr.mxu0 0.0
    %2715 = vmatpush1.msra.mxu0 %v2382
    %2716 = vmatprep.subr.mxu0 0.0
    %2717 = vmatpush1.msra.mxu0 %v2383
    %2718 = vmatprep.subr.mxu0 0.0
    %2719 = vmatpush1.msra.mxu0 %v2384
    %2720 = vmatprep.subr.mxu0 0.0
    %2721 = vmatpush1.msra.mxu0 %v2385
    %2722 = vmatprep.subr.mxu0 0.0
    %2723 = vmatpush1.msra.mxu0 %v2386
    %2724 = vmatprep.subr.mxu0 0.0
    %2725 = vmatpush1.msra.mxu0 %v2387
    %2726 = vmatprep.subr.mxu0 0.0
    %2727 = vmatpush1.msra.mxu0 %v2388
    %2728 = vmatprep.subr.mxu0 0.0
    %2729 = vmatpush1.msra.mxu0 %v2389
    %2730 = vmatprep.subr.mxu0 0.0
    %2731 = vmatpush1.msra.mxu0 %v2390
    %2732 = vmatprep.subr.mxu0 0.0
    %2733 = vmatpush1.msra.mxu0 %v2391
    %2734 = vmatprep.subr.mxu0 0.0
    %2735 = vmatpush1.msra.mxu0 %v2392
    %2736 = vmatprep.subr.mxu0 0.0
    %2737 = vmatpush1.msra.mxu0 %v2393
    %2738 = vmatprep.subr.mxu0 0.0
    %2739 = vmatpush1.msra.mxu0 %v2394
    %2740 = vmatprep.subr.mxu0 0.0
    %2741 = vmatpush1.msra.mxu0 %v2395
    %2742 = vmatprep.subr.mxu0 0.0
    %2743 = vmatpush1.msra.mxu0 %v2396
    %2744 = vmatprep.subr.mxu0 0.0
    %2745 = vmatpush1.msra.mxu0 %v2397
    %2746 = vmatprep.subr.mxu0 0.0
    %2747 = vmatpush1.msra.mxu0 %v2398
    %2748 = vmatprep.subr.mxu0 0.0
    %2749 = vmatpush1.msra.mxu0 %v2399
    %2750 = vmatprep.subr.mxu0 0.0
    %2751 = vmatpush1.msra.mxu0 %v2400
    %2752 = vmatprep.subr.mxu0 0.0
    %2753 = vmatpush1.msra.mxu0 %v2401
    %2754 = vmatprep.subr.mxu0 0.0
    %2755 = vmatpush1.msra.mxu0 %v2402
    %2756 = vmatprep.subr.mxu0 0.0
    %2757 = vmatpush1.msra.mxu0 %v2403
    %2758 = vmatprep.subr.mxu0 0.0
    %2759 = vmatpush1.msra.mxu0 %v2404
    %2760 = vmatprep.subr.mxu0 0.0
    %2761 = vmatpush1.msra.mxu0 %v2405
    %2762 = vmatprep.subr.mxu0 0.0
    %2763 = vmatpush1.msra.mxu0 %v2406
    %2764 = vmatprep.subr.mxu0 0.0
    %2765 = vmatpush1.msra.mxu0 %v2407
    %2766 = vmatprep.subr.mxu0 0.0
    %2767 = vmatpush1.msra.mxu0 %v2408
    %2768 = vmatprep.subr.mxu0 0.0
    %2769 = vmatpush1.msra.mxu0 %v2409
    %2770 = vmatprep.mubr.f32.mxu0 %v2675
    %2771 = vmatmul.mubr.f32.gmra.mrb[0].mxu0 %v2674
    %v2772 = vpop.f32.mrb[0].mxu0
    %v2773 = vadd.f32 %v2639, %v2772
    %v2774 = vpop.f32.mrb[0].mxu0
    %2775 = vdwg.mxu0
    %2776 = vmatprep.subr.mxu0 0.0
    %2777 = vmatpush1.msra.mxu0 %v2410
    %2778 = vmatprep.subr.mxu0 0.0
    %2779 = vmatpush1.msra.mxu0 %v2411
    %2780 = vmatprep.subr.mxu0 0.0
    %2781 = vmatpush1.msra.mxu0 %v2412
    %2782 = vmatprep.subr.mxu0 0.0
    %2783 = vmatpush1.msra.mxu0 %v2413
    %2784 = vmatprep.subr.mxu0 0.0
    %2785 = vmatpush1.msra.mxu0 %v2414
    %2786 = vmatprep.subr.mxu0 0.0
    %2787 = vmatpush1.msra.mxu0 %v2415
    %2788 = vmatprep.subr.mxu0 0.0
    %2789 = vmatpush1.msra.mxu0 %v2416
    %2790 = vmatprep.subr.mxu0 0.0
    %2791 = vmatpush1.msra.mxu0 %v2417
    %2792 = vmatprep.subr.mxu0 0.0
    %2793 = vmatpush1.msra.mxu0 %v2418
    %2794 = vmatprep.subr.mxu0 0.0
    %2795 = vmatpush1.msra.mxu0 %v2419
    %2796 = vmatprep.subr.mxu0 0.0
    %2797 = vmatpush1.msra.mxu0 %v2420
    %2798 = vmatprep.subr.mxu0 0.0
    %2799 = vmatpush1.msra.mxu0 %v2421
    %2800 = vmatprep.subr.mxu0 0.0
    %2801 = vmatpush1.msra.mxu0 %v2422
    %2802 = vmatprep.subr.mxu0 0.0
    %2803 = vmatpush1.msra.mxu0 %v2423
    %2804 = vmatprep.subr.mxu0 0.0
    %2805 = vmatpush1.msra.mxu0 %v2424
    %2806 = vmatprep.subr.mxu0 0.0
    %2807 = vmatpush1.msra.mxu0 %v2425
    %2808 = vmatprep.subr.mxu0 0.0
    %2809 = vmatpush1.msra.mxu0 %v2426
    %2810 = vmatprep.subr.mxu0 0.0
    %2811 = vmatpush1.msra.mxu0 %v2427
    %2812 = vmatprep.subr.mxu0 0.0
    %2813 = vmatpush1.msra.mxu0 %v2428
    %2814 = vmatprep.subr.mxu0 0.0
    %2815 = vmatpush1.msra.mxu0 %v2429
    %2816 = vmatprep.subr.mxu0 0.0
    %2817 = vmatpush1.msra.mxu0 %v2430
    %2818 = vmatprep.subr.mxu0 0.0
    %2819 = vmatpush1.msra.mxu0 %v2431
    %2820 = vmatprep.subr.mxu0 0.0
    %2821 = vmatpush1.msra.mxu0 %v2432
    %2822 = vmatprep.subr.mxu0 0.0
    %2823 = vmatpush1.msra.mxu0 %v2433
    %2824 = vmatprep.subr.mxu0 0.0
    %2825 = vmatpush1.msra.mxu0 %v2434
    %2826 = vmatprep.subr.mxu0 0.0
    %2827 = vmatpush1.msra.mxu0 %v2435
    %2828 = vmatprep.subr.mxu0 0.0
    %2829 = vmatpush1.msra.mxu0 %v2436
    %2830 = vmatprep.subr.mxu0 0.0
    %2831 = vmatpush1.msra.mxu0 %v2437
    %2832 = vmatprep.subr.mxu0 0.0
    %2833 = vmatpush1.msra.mxu0 %v2438
    %2834 = vmatprep.subr.mxu0 0.0
    %2835 = vmatpush1.msra.mxu0 %v2439
    %2836 = vmatprep.subr.mxu0 0.0
    %2837 = vmatpush1.msra.mxu0 %v2440
    %2838 = vmatprep.subr.mxu0 0.0
    %2839 = vmatpush1.msra.mxu0 %v2441
    %2840 = vmatprep.mubr.f32.mxu0 %v2677
    %2841 = vmatmul.mubr.f32.gmra.mrb[0].mxu0 %v2676
    %v2842 = vpop.f32.mrb[0].mxu0
    %v2843 = vadd.f32 %v2773, %v2842
    %v2844 = vpop.f32.mrb[0].mxu0
    %2845 = vdwg.mxu0
    %2846 = vmatprep.subr.mxu0 0.0
    %2847 = vmatpush1.msra.mxu0 %v2442
    %2848 = vmatprep.subr.mxu0 0.0
    %2849 = vmatpush1.msra.mxu0 %v2443
    %2850 = vmatprep.subr.mxu0 0.0
    %2851 = vmatpush1.msra.mxu0 %v2444
    %2852 = vmatprep.subr.mxu0 0.0
    %2853 = vmatpush1.msra.mxu0 %v2445
    %2854 = vmatprep.subr.mxu0 0.0
    %2855 = vmatpush1.msra.mxu0 %v2446
    %2856 = vmatprep.subr.mxu0 0.0
    %2857 = vmatpush1.msra.mxu0 %v2447
    %2858 = vmatprep.subr.mxu0 0.0
    %2859 = vmatpush1.msra.mxu0 %v2448
    %2860 = vmatprep.subr.mxu0 0.0
    %2861 = vmatpush1.msra.mxu0 %v2449
    %2862 = vmatprep.subr.mxu0 0.0
    %2863 = vmatpush1.msra.mxu0 %v2450
    %2864 = vmatprep.subr.mxu0 0.0
    %2865 = vmatpush1.msra.mxu0 %v2451
    %2866 = vmatprep.subr.mxu0 0.0
    %2867 = vmatpush1.msra.mxu0 %v2452
    %2868 = vmatprep.subr.mxu0 0.0
    %2869 = vmatpush1.msra.mxu0 %v2453
    %2870 = vmatprep.subr.mxu0 0.0
    %2871 = vmatpush1.msra.mxu0 %v2454
    %2872 = vmatprep.subr.mxu0 0.0
    %2873 = vmatpush1.msra.mxu0 %v2455
    %2874 = vmatprep.subr.mxu0 0.0
    %2875 = vmatpush1.msra.mxu0 %v2456
    %2876 = vmatprep.subr.mxu0 0.0
    %2877 = vmatpush1.msra.mxu0 %v2457
    %2878 = vmatprep.subr.mxu0 0.0
    %2879 = vmatpush1.msra.mxu0 %v2458
    %2880 = vmatprep.subr.mxu0 0.0
    %2881 = vmatpush1.msra.mxu0 %v2459
    %2882 = vmatprep.subr.mxu0 0.0
    %2883 = vmatpush1.msra.mxu0 %v2460
    %2884 = vmatprep.subr.mxu0 0.0
    %2885 = vmatpush1.msra.mxu0 %v2461
    %2886 = vmatprep.subr.mxu0 0.0
    %2887 = vmatpush1.msra.mxu0 %v2462
    %2888 = vmatprep.subr.mxu0 0.0
    %2889 = vmatpush1.msra.mxu0 %v2463
    %2890 = vmatprep.subr.mxu0 0.0
    %2891 = vmatpush1.msra.mxu0 %v2464
    %2892 = vmatprep.subr.mxu0 0.0
    %2893 = vmatpush1.msra.mxu0 %v2465
    %2894 = vmatprep.subr.mxu0 0.0
    %2895 = vmatpush1.msra.mxu0 %v2466
    %2896 = vmatprep.subr.mxu0 0.0
    %2897 = vmatpush1.msra.mxu0 %v2467
    %2898 = vmatprep.subr.mxu0 0.0
    %2899 = vmatpush1.msra.mxu0 %v2468
    %2900 = vmatprep.subr.mxu0 0.0
    %2901 = vmatpush1.msra.mxu0 %v2469
    %2902 = vmatprep.subr.mxu0 0.0
    %2903 = vmatpush1.msra.mxu0 %v2470
    %2904 = vmatprep.subr.mxu0 0.0
    %2905 = vmatpush1.msra.mxu0 %v2471
    %2906 = vmatprep.subr.mxu0 0.0
    %2907 = vmatpush1.msra.mxu0 %v2472
    %2908 = vmatprep.subr.mxu0 0.0
    %2909 = vmatpush1.msra.mxu0 %v2473
    %2910 = vmatprep.mubr.f32.mxu0 %v2679
    %2911 = vmatmul.mubr.f32.gmra.mrb[0].mxu0 %v2678
    %v2912 = vpop.f32.mrb[0].mxu0
    %v2913 = vadd.f32 %v2843, %v2912
    %v2914 = vpop.f32.mrb[0].mxu0
    %2915 = vdwg.mxu0
    %2916 = vmatprep.subr.mxu0 0.0
    %2917 = vmatpush1.msra.mxu0 %v2474
    %2918 = vmatprep.subr.mxu0 0.0
    %2919 = vmatpush1.msra.mxu0 %v2475
    %2920 = vmatprep.subr.mxu0 0.0
    %2921 = vmatpush1.msra.mxu0 %v2476
    %2922 = vmatprep.subr.mxu0 0.0
    %2923 = vmatpush1.msra.mxu0 %v2477
    %2924 = vmatprep.subr.mxu0 0.0
    %2925 = vmatpush1.msra.mxu0 %v2478
    %2926 = vmatprep.subr.mxu0 0.0
    %2927 = vmatpush1.msra.mxu0 %v2479
    %2928 = vmatprep.subr.mxu0 0.0
    %2929 = vmatpush1.msra.mxu0 %v2480
    %2930 = vmatprep.subr.mxu0 0.0
    %2931 = vmatpush1.msra.mxu0 %v2481
    %2932 = vmatprep.subr.mxu0 0.0
    %2933 = vmatpush1.msra.mxu0 %v2482
    %2934 = vmatprep.subr.mxu0 0.0
    %2935 = vmatpush1.msra.mxu0 %v2483
    %2936 = vmatprep.subr.mxu0 0.0
    %2937 = vmatpush1.msra.mxu0 %v2484
    %2938 = vmatprep.subr.mxu0 0.0
    %2939 = vmatpush1.msra.mxu0 %v2485
    %2940 = vmatprep.subr.mxu0 0.0
    %2941 = vmatpush1.msra.mxu0 %v2486
    %2942 = vmatprep.subr.mxu0 0.0
    %2943 = vmatpush1.msra.mxu0 %v2487
    %2944 = vmatprep.subr.mxu0 0.0
    %2945 = vmatpush1.msra.mxu0 %v2488
    %2946 = vmatprep.subr.mxu0 0.0
    %2947 = vmatpush1.msra.mxu0 %v2489
    %2948 = vmatprep.subr.mxu0 0.0
    %2949 = vmatpush1.msra.mxu0 %v2490
    %2950 = vmatprep.subr.mxu0 0.0
    %2951 = vmatpush1.msra.mxu0 %v2491
    %2952 = vmatprep.subr.mxu0 0.0
    %2953 = vmatpush1.msra.mxu0 %v2492
    %2954 = vmatprep.subr.mxu0 0.0
    %2955 = vmatpush1.msra.mxu0 %v2493
    %2956 = vmatprep.subr.mxu0 0.0
    %2957 = vmatpush1.msra.mxu0 %v2494
    %2958 = vmatprep.subr.mxu0 0.0
    %2959 = vmatpush1.msra.mxu0 %v2495
    %2960 = vmatprep.subr.mxu0 0.0
    %2961 = vmatpush1.msra.mxu0 %v2496
    %2962 = vmatprep.subr.mxu0 0.0
    %2963 = vmatpush1.msra.mxu0 %v2497
    %2964 = vmatprep.subr.mxu0 0.0
    %2965 = vmatpush1.msra.mxu0 %v2498
    %2966 = vmatprep.subr.mxu0 0.0
    %2967 = vmatpush1.msra.mxu0 %v2499
    %2968 = vmatprep.subr.mxu0 0.0
    %2969 = vmatpush1.msra.mxu0 %v2500
    %2970 = vmatprep.subr.mxu0 0.0
    %2971 = vmatpush1.msra.mxu0 %v2501
    %2972 = vmatprep.subr.mxu0 0.0
    %2973 = vmatpush1.msra.mxu0 %v2502
    %2974 = vmatprep.subr.mxu0 0.0
    %2975 = vmatpush1.msra.mxu0 %v2503
    %2976 = vmatprep.subr.mxu0 0.0
    %2977 = vmatpush1.msra.mxu0 %v2504
    %2978 = vmatprep.subr.mxu0 0.0
    %2979 = vmatpush1.msra.mxu0 %v2505
    %2980 = vmatprep.mubr.f32.mxu0 %v2681
    %2981 = vmatmul.mubr.f32.gmra.mrb[0].mxu0 %v2680
    %v2982 = vpop.f32.mrb[0].mxu0
    %v2983 = vadd.f32 %v2913, %v2982
    %v2984 = vpop.f32.mrb[0].mxu0
    %2985 = vdwg.mxu0
    %2986 = vmatprep.subr.mxu0 0.0
    %2987 = vmatpush1.msra.mxu0 %v2506
    %2988 = vmatprep.subr.mxu0 0.0
    %2989 = vmatpush1.msra.mxu0 %v2507
    %2990 = vmatprep.subr.mxu0 0.0
    %2991 = vmatpush1.msra.mxu0 %v2508
    %2992 = vmatprep.subr.mxu0 0.0
    %2993 = vmatpush1.msra.mxu0 %v2509
    %2994 = vmatprep.subr.mxu0 0.0
    %2995 = vmatpush1.msra.mxu0 %v2510
    %2996 = vmatprep.subr.mxu0 0.0
    %2997 = vmatpush1.msra.mxu0 %v2511
    %2998 = vmatprep.subr.mxu0 0.0
    %2999 = vmatpush1.msra.mxu0 %v2512
    %3000 = vmatprep.subr.mxu0 0.0
    %3001 = vmatpush1.msra.mxu0 %v2513
    %3002 = vmatprep.subr.mxu0 0.0
    %3003 = vmatpush1.msra.mxu0 %v2514
    %3004 = vmatprep.subr.mxu0 0.0
    %3005 = vmatpush1.msra.mxu0 %v2515
    %3006 = vmatprep.subr.mxu0 0.0
    %3007 = vmatpush1.msra.mxu0 %v2516
    %3008 = vmatprep.subr.mxu0 0.0
    %3009 = vmatpush1.msra.mxu0 %v2517
    %3010 = vmatprep.subr.mxu0 0.0
    %3011 = vmatpush1.msra.mxu0 %v2518
    %3012 = vmatprep.subr.mxu0 0.0
    %3013 = vmatpush1.msra.mxu0 %v2519
    %3014 = vmatprep.subr.mxu0 0.0
    %3015 = vmatpush1.msra.mxu0 %v2520
    %3016 = vmatprep.subr.mxu0 0.0
    %3017 = vmatpush1.msra.mxu0 %v2521
    %3018 = vmatprep.subr.mxu0 0.0
    %3019 = vmatpush1.msra.mxu0 %v2522
    %3020 = vmatprep.subr.mxu0 0.0
    %3021 = vmatpush1.msra.mxu0 %v2523
    %3022 = vmatprep.subr.mxu0 0.0
    %3023 = vmatpush1.msra.mxu0 %v2524
    %3024 = vmatprep.subr.mxu0 0.0
    %3025 = vmatpush1.msra.mxu0 %v2525
    %3026 = vmatprep.subr.mxu0 0.0
    %3027 = vmatpush1.msra.mxu0 %v2526
    %3028 = vmatprep.subr.mxu0 0.0
    %3029 = vmatpush1.msra.mxu0 %v2527
    %3030 = vmatprep.subr.mxu0 0.0
    %3031 = vmatpush1.msra.mxu0 %v2528
    %3032 = vmatprep.subr.mxu0 0.0
    %3033 = vmatpush1.msra.mxu0 %v2529
    %3034 = vmatprep.subr.mxu0 0.0
    %3035 = vmatpush1.msra.mxu0 %v2530
    %3036 = vmatprep.subr.mxu0 0.0
    %3037 = vmatpush1.msra.mxu0 %v2531
    %3038 = vmatprep.subr.mxu0 0.0
    %3039 = vmatpush1.msra.mxu0 %v2532
    %3040 = vmatprep.subr.mxu0 0.0
    %3041 = vmatpush1.msra.mxu0 %v2533
    %3042 = vmatprep.subr.mxu0 0.0
    %3043 = vmatpush1.msra.mxu0 %v2534
    %3044 = vmatprep.subr.mxu0 0.0
    %3045 = vmatpush1.msra.mxu0 %v2535
    %3046 = vmatprep.subr.mxu0 0.0
    %3047 = vmatpush1.msra.mxu0 %v2536
    %3048 = vmatprep.subr.mxu0 0.0
    %3049 = vmatpush1.msra.mxu0 %v2537
    %3050 = vmatprep.mubr.f32.mxu0 %v2683
    %3051 = vmatmul.mubr.f32.gmra.mrb[0].mxu0 %v2682
    %v3052 = vpop.f32.mrb[0].mxu0
    %v3053 = vadd.f32 %v2983, %v3052
    %v3054 = vpop.f32.mrb[0].mxu0
    %3055 = vdwg.mxu0
    %3056 = vmatprep.subr.mxu0 0.0
    %3057 = vmatpush1.msra.mxu0 %v2538
    %3058 = vmatprep.subr.mxu0 0.0
    %3059 = vmatpush1.msra.mxu0 %v2539
    %3060 = vmatprep.subr.mxu0 0.0
    %3061 = vmatpush1.msra.mxu0 %v2540
    %3062 = vmatprep.subr.mxu0 0.0
    %3063 = vmatpush1.msra.mxu0 %v2541
    %3064 = vmatprep.subr.mxu0 0.0
    %3065 = vmatpush1.msra.mxu0 %v2542
    %3066 = vmatprep.subr.mxu0 0.0
    %3067 = vmatpush1.msra.mxu0 %v2543
    %3068 = vmatprep.subr.mxu0 0.0
    %3069 = vmatpush1.msra.mxu0 %v2544
    %3070 = vmatprep.subr.mxu0 0.0
    %3071 = vmatpush1.msra.mxu0 %v2545
    %3072 = vmatprep.subr.mxu0 0.0
    %3073 = vmatpush1.msra.mxu0 %v2546
    %3074 = vmatprep.subr.mxu0 0.0
    %3075 = vmatpush1.msra.mxu0 %v2547
    %3076 = vmatprep.subr.mxu0 0.0
    %3077 = vmatpush1.msra.mxu0 %v2548
    %3078 = vmatprep.subr.mxu0 0.0
    %3079 = vmatpush1.msra.mxu0 %v2549
    %3080 = vmatprep.subr.mxu0 0.0
    %3081 = vmatpush1.msra.mxu0 %v2550
    %3082 = vmatprep.subr.mxu0 0.0
    %3083 = vmatpush1.msra.mxu0 %v2551
    %3084 = vmatprep.subr.mxu0 0.0
    %3085 = vmatpush1.msra.mxu0 %v2552
    %3086 = vmatprep.subr.mxu0 0.0
    %3087 = vmatpush1.msra.mxu0 %v2553
    %3088 = vmatprep.subr.mxu0 0.0
    %3089 = vmatpush1.msra.mxu0 %v2554
    %3090 = vmatprep.subr.mxu0 0.0
    %3091 = vmatpush1.msra.mxu0 %v2555
    %3092 = vmatprep.subr.mxu0 0.0
    %3093 = vmatpush1.msra.mxu0 %v2556
    %3094 = vmatprep.subr.mxu0 0.0
    %3095 = vmatpush1.msra.mxu0 %v2557
    %3096 = vmatprep.subr.mxu0 0.0
    %3097 = vmatpush1.msra.mxu0 %v2558
    %3098 = vmatprep.subr.mxu0 0.0
    %3099 = vmatpush1.msra.mxu0 %v2559
    %3100 = vmatprep.subr.mxu0 0.0
    %3101 = vmatpush1.msra.mxu0 %v2560
    %3102 = vmatprep.subr.mxu0 0.0
    %3103 = vmatpush1.msra.mxu0 %v2561
    %3104 = vmatprep.subr.mxu0 0.0
    %3105 = vmatpush1.msra.mxu0 %v2562
    %3106 = vmatprep.subr.mxu0 0.0
    %3107 = vmatpush1.msra.mxu0 %v2563
    %3108 = vmatprep.subr.mxu0 0.0
    %3109 = vmatpush1.msra.mxu0 %v2564
    %3110 = vmatprep.subr.mxu0 0.0
    %3111 = vmatpush1.msra.mxu0 %v2565
    %3112 = vmatprep.subr.mxu0 0.0
    %3113 = vmatpush1.msra.mxu0 %v2566
    %3114 = vmatprep.subr.mxu0 0.0
    %3115 = vmatpush1.msra.mxu0 %v2567
    %3116 = vmatprep.subr.mxu0 0.0
    %3117 = vmatpush1.msra.mxu0 %v2568
    %3118 = vmatprep.subr.mxu0 0.0
    %3119 = vmatpush1.msra.mxu0 %v2569
    %3120 = vmatprep.mubr.f32.mxu0 %v2685
    %3121 = vmatmul.mubr.f32.gmra.mrb[0].mxu0 %v2684
    %v3122 = vpop.f32.mrb[0].mxu0
    %v3123 = vadd.f32 %v3053, %v3122
    %v3124 = vpop.f32.mrb[0].mxu0
    %3125 = vdwg.mxu0
    %3126 = vmatprep.subr.mxu0 0.0
    %3127 = vmatpush1.msra.mxu0 %v2570
    %3128 = vmatprep.subr.mxu0 0.0
    %3129 = vmatpush1.msra.mxu0 %v2571
    %3130 = vmatprep.subr.mxu0 0.0
    %3131 = vmatpush1.msra.mxu0 %v2572
    %3132 = vmatprep.subr.mxu0 0.0
    %3133 = vmatpush1.msra.mxu0 %v2573
    %3134 = vmatprep.subr.mxu0 0.0
    %3135 = vmatpush1.msra.mxu0 %v2574
    %3136 = vmatprep.subr.mxu0 0.0
    %3137 = vmatpush1.msra.mxu0 %v2575
    %3138 = vmatprep.subr.mxu0 0.0
    %3139 = vmatpush1.msra.mxu0 %v2576
    %3140 = vmatprep.subr.mxu0 0.0
    %3141 = vmatpush1.msra.mxu0 %v2577
    %3142 = vmatprep.subr.mxu0 0.0
    %3143 = vmatpush1.msra.mxu0 %v2578
    %3144 = vmatprep.subr.mxu0 0.0
    %3145 = vmatpush1.msra.mxu0 %v2579
    %3146 = vmatprep.subr.mxu0 0.0
    %3147 = vmatpush1.msra.mxu0 %v2580
    %3148 = vmatprep.subr.mxu0 0.0
    %3149 = vmatpush1.msra.mxu0 %v2581
    %3150 = vmatprep.subr.mxu0 0.0
    %3151 = vmatpush1.msra.mxu0 %v2582
    %3152 = vmatprep.subr.mxu0 0.0
    %3153 = vmatpush1.msra.mxu0 %v2583
    %3154 = vmatprep.subr.mxu0 0.0
    %3155 = vmatpush1.msra.mxu0 %v2584
    %3156 = vmatprep.subr.mxu0 0.0
    %3157 = vmatpush1.msra.mxu0 %v2585
    %3158 = vmatprep.subr.mxu0 0.0
    %3159 = vmatpush1.msra.mxu0 %v2586
    %3160 = vmatprep.subr.mxu0 0.0
    %3161 = vmatpush1.msra.mxu0 %v2587
    %3162 = vmatprep.subr.mxu0 0.0
    %3163 = vmatpush1.msra.mxu0 %v2588
    %3164 = vmatprep.subr.mxu0 0.0
    %3165 = vmatpush1.msra.mxu0 %v2589
    %3166 = vmatprep.subr.mxu0 0.0
    %3167 = vmatpush1.msra.mxu0 %v2590
    %3168 = vmatprep.subr.mxu0 0.0
    %3169 = vmatpush1.msra.mxu0 %v2591
    %3170 = vmatprep.subr.mxu0 0.0
    %3171 = vmatpush1.msra.mxu0 %v2592
    %3172 = vmatprep.subr.mxu0 0.0
    %3173 = vmatpush1.msra.mxu0 %v2593
    %3174 = vmatprep.subr.mxu0 0.0
    %3175 = vmatpush1.msra.mxu0 %v2594
    %3176 = vmatprep.subr.mxu0 0.0
    %3177 = vmatpush1.msra.mxu0 %v2595
    %3178 = vmatprep.subr.mxu0 0.0
    %3179 = vmatpush1.msra.mxu0 %v2596
    %3180 = vmatprep.subr.mxu0 0.0
    %3181 = vmatpush1.msra.mxu0 %v2597
    %3182 = vmatprep.subr.mxu0 0.0
    %3183 = vmatpush1.msra.mxu0 %v2598
    %3184 = vmatprep.subr.mxu0 0.0
    %3185 = vmatpush1.msra.mxu0 %v2599
    %3186 = vmatprep.subr.mxu0 0.0
    %3187 = vmatpush1.msra.mxu0 %v2600
    %3188 = vmatprep.subr.mxu0 0.0
    %3189 = vmatpush1.msra.mxu0 %v2601
    %3190 = vmatprep.mubr.f32.mxu0 %v2687
    %3191 = vmatmul.mubr.f32.gmra.mrb[0].mxu0 %v2686
    %v3192 = vpop.f32.mrb[0].mxu0
    %v3193 = vadd.f32 %v3123, %v3192
    %v3194 = vpop.f32.mrb[0].mxu0
    %3195 = vdwg.mxu0
    %3196 = vmatprep.subr.mxu0 0.0
    %3197 = vmatpush1.msra.mxu0 %v2602
    %3198 = vmatprep.subr.mxu0 0.0
    %3199 = vmatpush1.msra.mxu0 %v2603
    %3200 = vmatprep.subr.mxu0 0.0
    %3201 = vmatpush1.msra.mxu0 %v2604
    %3202 = vmatprep.subr.mxu0 0.0
    %3203 = vmatpush1.msra.mxu0 %v2605
    %3204 = vmatprep.subr.mxu0 0.0
    %3205 = vmatpush1.msra.mxu0 %v2606
    %3206 = vmatprep.subr.mxu0 0.0
    %3207 = vmatpush1.msra.mxu0 %v2607
    %3208 = vmatprep.subr.mxu0 0.0
    %3209 = vmatpush1.msra.mxu0 %v2608
    %3210 = vmatprep.subr.mxu0 0.0
    %3211 = vmatpush1.msra.mxu0 %v2609
    %3212 = vmatprep.subr.mxu0 0.0
    %3213 = vmatpush1.msra.mxu0 %v2610
    %3214 = vmatprep.subr.mxu0 0.0
    %3215 = vmatpush1.msra.mxu0 %v2611
    %3216 = vmatprep.subr.mxu0 0.0
    %3217 = vmatpush1.msra.mxu0 %v2612
    %3218 = vmatprep.subr.mxu0 0.0
    %3219 = vmatpush1.msra.mxu0 %v2613
    %3220 = vmatprep.subr.mxu0 0.0
    %3221 = vmatpush1.msra.mxu0 %v2614
    %3222 = vmatprep.subr.mxu0 0.0
    %3223 = vmatpush1.msra.mxu0 %v2615
    %3224 = vmatprep.subr.mxu0 0.0
    %3225 = vmatpush1.msra.mxu0 %v2616
    %3226 = vmatprep.subr.mxu0 0.0
    %3227 = vmatpush1.msra.mxu0 %v2617
    %3228 = vmatprep.subr.mxu0 0.0
    %3229 = vmatpush1.msra.mxu0 %v2618
    %3230 = vmatprep.subr.mxu0 0.0
    %3231 = vmatpush1.msra.mxu0 %v2619
    %3232 = vmatprep.subr.mxu0 0.0
    %3233 = vmatpush1.msra.mxu0 %v2620
    %3234 = vmatprep.subr.mxu0 0.0
    %3235 = vmatpush1.msra.mxu0 %v2621
    %3236 = vmatprep.subr.mxu0 0.0
    %3237 = vmatpush1.msra.mxu0 %v2622
    %3238 = vmatprep.subr.mxu0 0.0
    %3239 = vmatpush1.msra.mxu0 %v2623
    %3240 = vmatprep.subr.mxu0 0.0
    %3241 = vmatpush1.msra.mxu0 %v2624
    %3242 = vmatprep.subr.mxu0 0.0
    %3243 = vmatpush1.msra.mxu0 %v2625
    %3244 = vmatprep.subr.mxu0 0.0
    %3245 = vmatpush1.msra.mxu0 %v2626
    %3246 = vmatprep.subr.mxu0 0.0
    %3247 = vmatpush1.msra.mxu0 %v2627
    %3248 = vmatprep.subr.mxu0 0.0
    %3249 = vmatpush1.msra.mxu0 %v2628
    %3250 = vmatprep.subr.mxu0 0.0
    %3251 = vmatpush1.msra.mxu0 %v2629
    %3252 = vmatprep.subr.mxu0 0.0
    %3253 = vmatpush1.msra.mxu0 %v2630
    %3254 = vmatprep.subr.mxu0 0.0
    %3255 = vmatpush1.msra.mxu0 %v2631
    %3256 = vmatprep.subr.mxu0 0.0
    %3257 = vmatpush1.msra.mxu0 %v2632
    %3258 = vmatprep.subr.mxu0 0.0
    %3259 = vmatpush1.msra.mxu0 %v2633
    %3260 = vmatprep.mubr.f32.mxu0 %v2689
    %3261 = vmatmul.mubr.f32.gmra.mrb[0].mxu0 %v2688
    %v3262 = vpop.f32.mrb[0].mxu0
    %v3263 = vadd.f32 %v3193, %v3262
    %v3264 = vpop.f32.mrb[0].mxu0
    %3265 = vdwg.mxu0
    %v3266 = vtanh.pop %v3263
    %v3267 = vld [vmem:[#allocation8] sm:$0xff]
    %v3268 = vld [vmem:[#allocation8 + $0x8] sm:$0xff]
    %v3269 = vld [vmem:[#allocation8 + $0x10] sm:$0xff]
    %v3270 = vld [vmem:[#allocation8 + $0x18] sm:$0xff]
    %v3271 = vld [vmem:[#allocation8 + $0x20] sm:$0xff]
    %v3272 = vld [vmem:[#allocation8 + $0x28] sm:$0xff]
    %v3273 = vld [vmem:[#allocation8 + $0x30] sm:$0xff]
    %v3274 = vld [vmem:[#allocation8 + $0x38] sm:$0xff]
    %v3275 = vld [vmem:[#allocation8 + $0x40] sm:$0xff]
    %v3276 = vld [vmem:[#allocation8 + $0x48] sm:$0xff]
    %v3277 = vld [vmem:[#allocation8 + $0x50] sm:$0xff]
    %v3278 = vld [vmem:[#allocation8 + $0x58] sm:$0xff]
    %v3279 = vld [vmem:[#allocation8 + $0x60] sm:$0xff]
    %v3280 = vld [vmem:[#allocation8 + $0x68] sm:$0xff]
    %v3281 = vld [vmem:[#allocation8 + $0x70] sm:$0xff]
    %v3282 = vld [vmem:[#allocation8 + $0x78] sm:$0xff]
    %v3283 = vld [vmem:[#allocation8 + $0x80] sm:$0xff]
    %v3284 = vld [vmem:[#allocation8 + $0x88] sm:$0xff]
    %v3285 = vld [vmem:[#allocation8 + $0x90] sm:$0xff]
    %v3286 = vld [vmem:[#allocation8 + $0x98] sm:$0xff]
    %v3287 = vld [vmem:[#allocation8 + $0xa0] sm:$0xff]
    %v3288 = vld [vmem:[#allocation8 + $0xa8] sm:$0xff]
    %v3289 = vld [vmem:[#allocation8 + $0xb0] sm:$0xff]
    %v3290 = vld [vmem:[#allocation8 + $0xb8] sm:$0xff]
    %v3291 = vld [vmem:[#allocation8 + $0xc0] sm:$0xff]
    %v3292 = vld [vmem:[#allocation8 + $0xc8] sm:$0xff]
    %v3293 = vld [vmem:[#allocation8 + $0xd0] sm:$0xff]
    %v3294 = vld [vmem:[#allocation8 + $0xd8] sm:$0xff]
    %v3295 = vld [vmem:[#allocation8 + $0xe0] sm:$0xff]
    %v3296 = vld [vmem:[#allocation8 + $0xe8] sm:$0xff]
    %v3297 = vld [vmem:[#allocation8 + $0xf0] sm:$0xff]
    %v3298 = vld [vmem:[#allocation8 + $0xf8] sm:$0xff]
    %v3299 = vld [vmem:[#allocation10] sm:$0x3]
    %v3301 = vlaneseq
    %v3302 = vshrl.u32 %v3301, 7
    %v3303 = vsub.s32 0, %v3302
    %v3304 = vrot.slane %v3299, %v3303
    %v3305 = vlaneseq
    %v3306 = vshrl.u32 %v3305, 7
    %v3307 = vsub.s32 1, %v3306
    %v3308 = vrot.slane %v3299, %v3307
    %3311 = vmatprep.subr.mxu0 %v3268
    %3312 = vmatpush1.msra.mxu0 %v3267
    %3313 = vmatprep.subr.mxu0 %v3270
    %3314 = vmatpush1.msra.mxu0 %v3269
    %3315 = vmatprep.subr.mxu0 %v3272
    %3316 = vmatpush1.msra.mxu0 %v3271
    %3317 = vmatprep.subr.mxu0 %v3274
    %3318 = vmatpush1.msra.mxu0 %v3273
    %3319 = vmatprep.subr.mxu0 %v3276
    %3320 = vmatpush1.msra.mxu0 %v3275
    %3321 = vmatprep.subr.mxu0 %v3278
    %3322 = vmatpush1.msra.mxu0 %v3277
    %3323 = vmatprep.subr.mxu0 %v3280
    %3324 = vmatpush1.msra.mxu0 %v3279
    %3325 = vmatprep.subr.mxu0 %v3282
    %3326 = vmatpush1.msra.mxu0 %v3281
    %3327 = vmatprep.subr.mxu0 %v3284
    %3328 = vmatpush1.msra.mxu0 %v3283
    %3329 = vmatprep.subr.mxu0 %v3286
    %3330 = vmatpush1.msra.mxu0 %v3285
    %3331 = vmatprep.subr.mxu0 %v3288
    %3332 = vmatpush1.msra.mxu0 %v3287
    %3333 = vmatprep.subr.mxu0 %v3290
    %3334 = vmatpush1.msra.mxu0 %v3289
    %3335 = vmatprep.subr.mxu0 %v3292
    %3336 = vmatpush1.msra.mxu0 %v3291
    %3337 = vmatprep.subr.mxu0 %v3294
    %3338 = vmatpush1.msra.mxu0 %v3293
    %3339 = vmatprep.subr.mxu0 %v3296
    %3340 = vmatpush1.msra.mxu0 %v3295
    %3341 = vmatprep.subr.mxu0 %v3298
    %3342 = vmatpush1.msra.mxu0 %v3297
    %3343 = vmatprep.subr.mxu0 0.0
    %3344 = vmatpush1.msra.mxu0 0.0
    %3345 = vmatprep.subr.mxu0 0.0
    %3346 = vmatpush1.msra.mxu0 0.0
    %3347 = vmatprep.subr.mxu0 0.0
    %3348 = vmatpush1.msra.mxu0 0.0
    %3349 = vmatprep.subr.mxu0 0.0
    %3350 = vmatpush1.msra.mxu0 0.0
    %3351 = vmatprep.subr.mxu0 0.0
    %3352 = vmatpush1.msra.mxu0 0.0
    %3353 = vmatprep.subr.mxu0 0.0
    %3354 = vmatpush1.msra.mxu0 0.0
    %3355 = vmatprep.subr.mxu0 0.0
    %3356 = vmatpush1.msra.mxu0 0.0
    %3357 = vmatprep.subr.mxu0 0.0
    %3358 = vmatpush1.msra.mxu0 0.0
    %3359 = vmatprep.subr.mxu0 0.0
    %3360 = vmatpush1.msra.mxu0 0.0
    %3361 = vmatprep.subr.mxu0 0.0
    %3362 = vmatpush1.msra.mxu0 0.0
    %3363 = vmatprep.subr.mxu0 0.0
    %3364 = vmatpush1.msra.mxu0 0.0
    %3365 = vmatprep.subr.mxu0 0.0
    %3366 = vmatpush1.msra.mxu0 0.0
    %3367 = vmatprep.subr.mxu0 0.0
    %3368 = vmatpush1.msra.mxu0 0.0
    %3369 = vmatprep.subr.mxu0 0.0
    %3370 = vmatpush1.msra.mxu0 0.0
    %3371 = vmatprep.subr.mxu0 0.0
    %3372 = vmatpush1.msra.mxu0 0.0
    %3373 = vmatprep.subr.mxu0 0.0
    %3374 = vmatpush1.msra.mxu0 0.0
    %3375 = vmatprep.mubr.f32.mxu0 0.0
    %3376 = vmatmul.mubr.f32.gmra.mrb[0].mxu0 %v3266
    %v3377 = vpop.f32.mrb[0].mxu0
    %v3378 = vadd.f32 %v3304, %v3377
    %v3379 = vpop.f32.mrb[0].mxu0
    %v3380 = vadd.f32 %v3308, %v3379
    %3381 = vdwg.mxu0
    %v3382 = vmul.f32 %v3378, 0.5
    %v3383 = vmul.f32 %v3380, 0.5
    %v3384 = vmul.f32 %v3378, 0.044715
    %v3385 = vmul.f32 %v3380, 0.044715
    %v3386 = vmul.f32 %v3384, %v3378
    %v3387 = vmul.f32 %v3385, %v3380
    %v3388 = vmul.f32 %v3386, %v3378
    %v3389 = vmul.f32 %v3387, %v3380
    %v3390 = vadd.f32 %v3378, %v3388
    %v3391 = vadd.f32 %v3380, %v3389
    %v3392 = vmul.f32 %v3390, 0.7978846
    %v3393 = vmul.f32 %v3391, 0.7978846
    %v3394 = vtanh.pop %v3392
    %v3395 = vtanh.pop %v3393
    %v3396 = vadd.f32 %v3394, 1.0
    %v3397 = vadd.f32 %v3395, 1.0
    %v3398 = vmul.f32 %v3382, %v3396
    %v3399 = vmul.f32 %v3383, %v3397
    %vm3400 = vcmask 1041408
    %v3401 = vsel %vm3400, %v3398, 0.0
    %v3402 = vsel %vm3400, %v3399, 0.0
    %v3403 = vadd.f32 %v3401, %v3402
    %3404 = vadd.xlane.f32.xlu0 %v3403
    %v3405 = vpop.xlane.xlu0 %3404
    %v3406 = vrcp.pop 256.0
    %v3407 = vmul.f32 %v3405, %v3406
    %v3408 = vsub.f32 %v3398, %v3407
    %v3409 = vsub.f32 %v3399, %v3407
    %v3410 = vmul.f32 %v3408, %v3408
    %v3411 = vmul.f32 %v3409, %v3409
    %v3412 = vsel %vm3400, %v3410, 0.0
    %v3413 = vsel %vm3400, %v3411, 0.0
    %v3414 = vadd.f32 %v3412, %v3413
    %3415 = vadd.xlane.f32.xlu0 %v3414
    %v3416 = vpop.xlane.xlu0 %3415
    %v3417 = vmul.f32 %v3416, %v3406
    %v3418 = vadd.f32 %v3417, 1e-12
    %v3419 = vrsqrt.pop %v3418
    %v3420 = vmul.f32 %v3408, %v3419
    %v3421 = vmul.f32 %v3409, %v3419
    %v3422 = vld [vmem:[#allocation11] sm:$0x3]
    %v3424 = vlaneseq
    %v3425 = vshrl.u32 %v3424, 7
    %v3426 = vsub.s32 0, %v3425
    %v3427 = vrot.slane %v3422, %v3426
    %v3428 = vlaneseq
    %v3429 = vshrl.u32 %v3428, 7
    %v3430 = vsub.s32 1, %v3429
    %v3431 = vrot.slane %v3422, %v3430
    %v3434 = vmul.f32 %v3420, %v3427
    %v3435 = vmul.f32 %v3421, %v3431
    %v3436 = vld [vmem:[#allocation13] sm:$0x3]
    %v3438 = vlaneseq
    %v3439 = vshrl.u32 %v3438, 7
    %v3440 = vsub.s32 0, %v3439
    %v3441 = vrot.slane %v3436, %v3440
    %v3442 = vlaneseq
    %v3443 = vshrl.u32 %v3442, 7
    %v3444 = vsub.s32 1, %v3443
    %v3445 = vrot.slane %v3436, %v3444
    %v3448 = vadd.f32 %v3434, %v3441
    %v3449 = vadd.f32 %v3435, %v3445
    %v3450 = vld [vmem:[#allocation14] sm:$0xff]
    %v3451 = vld [vmem:[#allocation14 + $0x8] sm:$0xff]
    %v3452 = vld [vmem:[#allocation14 + $0x10] sm:$0xff]
    %v3453 = vld [vmem:[#allocation14 + $0x18] sm:$0xff]
    %v3454 = vld [vmem:[#allocation14 + $0x20] sm:$0xff]
    %v3455 = vld [vmem:[#allocation14 + $0x28] sm:$0xff]
    %v3456 = vld [vmem:[#allocation14 + $0x30] sm:$0xff]
    %v3457 = vld [vmem:[#allocation14 + $0x38] sm:$0xff]
    %v3458 = vld [vmem:[#allocation14 + $0x40] sm:$0xff]
    %v3459 = vld [vmem:[#allocation14 + $0x48] sm:$0xff]
    %v3460 = vld [vmem:[#allocation14 + $0x50] sm:$0xff]
    %v3461 = vld [vmem:[#allocation14 + $0x58] sm:$0xff]
    %v3462 = vld [vmem:[#allocation14 + $0x60] sm:$0xff]
    %v3463 = vld [vmem:[#allocation14 + $0x68] sm:$0xff]
    %v3464 = vld [vmem:[#allocation14 + $0x70] sm:$0xff]
    %v3465 = vld [vmem:[#allocation14 + $0x78] sm:$0xff]
    %v3466 = vld [vmem:[#allocation14 + $0x80] sm:$0xff]
    %v3467 = vld [vmem:[#allocation14 + $0x88] sm:$0xff]
    %v3468 = vld [vmem:[#allocation14 + $0x90] sm:$0xff]
    %v3469 = vld [vmem:[#allocation14 + $0x98] sm:$0xff]
    %v3470 = vld [vmem:[#allocation14 + $0xa0] sm:$0xff]
    %v3471 = vld [vmem:[#allocation14 + $0xa8] sm:$0xff]
    %v3472 = vld [vmem:[#allocation14 + $0xb0] sm:$0xff]
    %v3473 = vld [vmem:[#allocation14 + $0xb8] sm:$0xff]
    %v3474 = vld [vmem:[#allocation14 + $0xc0] sm:$0xff]
    %v3475 = vld [vmem:[#allocation14 + $0xc8] sm:$0xff]
    %v3476 = vld [vmem:[#allocation14 + $0xd0] sm:$0xff]
    %v3477 = vld [vmem:[#allocation14 + $0xd8] sm:$0xff]
    %v3478 = vld [vmem:[#allocation14 + $0xe0] sm:$0xff]
    %v3479 = vld [vmem:[#allocation14 + $0xe8] sm:$0xff]
    %v3480 = vld [vmem:[#allocation14 + $0xf0] sm:$0xff]
    %v3481 = vld [vmem:[#allocation14 + $0xf8] sm:$0xff]
    %v3482 = vld [vmem:[#allocation16] sm:$0x1]
    %v3484 = vlaneseq
    %v3485 = vshrl.u32 %v3484, 7
    %v3486 = vsub.s32 0, %v3485
    %v3487 = vrot.slane %v3482, %v3486
    %3489 = vmatprep.subr.mxu0 0.0
    %3490 = vmatpush1.msra.mxu0 %v3450
    %3491 = vmatprep.subr.mxu0 0.0
    %3492 = vmatpush1.msra.mxu0 %v3451
    %3493 = vmatprep.subr.mxu0 0.0
    %3494 = vmatpush1.msra.mxu0 %v3452
    %3495 = vmatprep.subr.mxu0 0.0
    %3496 = vmatpush1.msra.mxu0 %v3453
    %3497 = vmatprep.subr.mxu0 0.0
    %3498 = vmatpush1.msra.mxu0 %v3454
    %3499 = vmatprep.subr.mxu0 0.0
    %3500 = vmatpush1.msra.mxu0 %v3455
    %3501 = vmatprep.subr.mxu0 0.0
    %3502 = vmatpush1.msra.mxu0 %v3456
    %3503 = vmatprep.subr.mxu0 0.0
    %3504 = vmatpush1.msra.mxu0 %v3457
    %3505 = vmatprep.subr.mxu0 0.0
    %3506 = vmatpush1.msra.mxu0 %v3458
    %3507 = vmatprep.subr.mxu0 0.0
    %3508 = vmatpush1.msra.mxu0 %v3459
    %3509 = vmatprep.subr.mxu0 0.0
    %3510 = vmatpush1.msra.mxu0 %v3460
    %3511 = vmatprep.subr.mxu0 0.0
    %3512 = vmatpush1.msra.mxu0 %v3461
    %3513 = vmatprep.subr.mxu0 0.0
    %3514 = vmatpush1.msra.mxu0 %v3462
    %3515 = vmatprep.subr.mxu0 0.0
    %3516 = vmatpush1.msra.mxu0 %v3463
    %3517 = vmatprep.subr.mxu0 0.0
    %3518 = vmatpush1.msra.mxu0 %v3464
    %3519 = vmatprep.subr.mxu0 0.0
    %3520 = vmatpush1.msra.mxu0 %v3465
    %3521 = vmatprep.subr.mxu0 0.0
    %3522 = vmatpush1.msra.mxu0 %v3466
    %3523 = vmatprep.subr.mxu0 0.0
    %3524 = vmatpush1.msra.mxu0 %v3467
    %3525 = vmatprep.subr.mxu0 0.0
    %3526 = vmatpush1.msra.mxu0 %v3468
    %3527 = vmatprep.subr.mxu0 0.0
    %3528 = vmatpush1.msra.mxu0 %v3469
    %3529 = vmatprep.subr.mxu0 0.0
    %3530 = vmatpush1.msra.mxu0 %v3470
    %3531 = vmatprep.subr.mxu0 0.0
    %3532 = vmatpush1.msra.mxu0 %v3471
    %3533 = vmatprep.subr.mxu0 0.0
    %3534 = vmatpush1.msra.mxu0 %v3472
    %3535 = vmatprep.subr.mxu0 0.0
    %3536 = vmatpush1.msra.mxu0 %v3473
    %3537 = vmatprep.subr.mxu0 0.0
    %3538 = vmatpush1.msra.mxu0 %v3474
    %3539 = vmatprep.subr.mxu0 0.0
    %3540 = vmatpush1.msra.mxu0 %v3475
    %3541 = vmatprep.subr.mxu0 0.0
    %3542 = vmatpush1.msra.mxu0 %v3476
    %3543 = vmatprep.subr.mxu0 0.0
    %3544 = vmatpush1.msra.mxu0 %v3477
    %3545 = vmatprep.subr.mxu0 0.0
    %3546 = vmatpush1.msra.mxu0 %v3478
    %3547 = vmatprep.subr.mxu0 0.0
    %3548 = vmatpush1.msra.mxu0 %v3479
    %3549 = vmatprep.subr.mxu0 0.0
    %3550 = vmatpush1.msra.mxu0 %v3480
    %3551 = vmatprep.subr.mxu0 0.0
    %3552 = vmatpush1.msra.mxu0 %v3481
    %3553 = vmatprep.mubr.f32.mxu0 %v3449
    %3554 = vmatmul.mubr.f32.gmra.mrb[0].mxu0 %v3448
    %v3555 = vpop.f32.mrb[0].mxu0
    %v3556 = vadd.f32 %v3487, %v3555
    %v3557 = vpop.f32.mrb[0].mxu0
    %3558 = vdwg.mxu0
    %3559 = vst [vmem:[#allocation17] sm:$0x3] %v3556
    // Predicated region
    $region78: #{tpu_custom_call.1} parent=1 // pred_check
      _
    $region79: #{tpu_custom_call.1} parent=1 // pred_check_branch
      %3561 = sbr.rel (0) target = $region81
    $region80: #{tpu_custom_call.1} parent=1 // pred_region
      %s3563 = ssub.s32 32, 32
      %3564 = vsyncadd [#allocation4], %s3563
      %s3566 = sshll.u32 [#allocation17], 4
      %s3567 = int_to_ptr.vmem [resolvable:$true] %s3566
      %3569 = dma.vmem_to_hbm [thread:$0]  %s3567, 32, %s10, [#allocation4]
    $region81: #{tpu_custom_call.1} parent=1 // pred_fallthru
      _
    // Predicated region
    $region82: #{tpu_custom_call.1} parent=1 // pred_check
      _
    $region83: #{tpu_custom_call.1} parent=1 // pred_check_branch
      %3571 = sbr.rel (0) target = $region85
    $region84: #{tpu_custom_call.1} parent=1 // pred_region
      %3572 = dma.done [#allocation4], 32
    $region85: #{tpu_custom_call.1} parent=1 // pred_fallthru
      _
    %3573 = vsyncpa [#allocation3], 1
    %3574 = vsyncpa [#allocation6], 1
    %3575 = vsyncpa [#allocation9], 1
    %3576 = vsyncpa [#allocation12], 1
    %3577 = vsyncpa [#allocation15], 1
    %3578 = vsyncpa [#allocation4], 1

</llo_original>
